<compile_context>
chip_gen: v7x
topology: tpu7x:2x2x1
jax: 0.10.0
libtpu: 0.0.40
codegen_flags: <defaults>
</compile_context>

<pallas_src>
import functools
import math
from typing import NamedTuple

import jax
import jax.numpy as jnp
from jax.experimental import pallas as pl
from jax.experimental.pallas import tpu as pltpu

SQRT2 = math.sqrt(2.0)
LANE = 128


def _cdiv(a, b):
    return -(-a // b)


# ----------------------------- Pallas kernel ------------------------------

def _conv_kernel(x_ref, h_ref, w_ref, b_ref, *rest, ke, wp, lanes, act, has_skip):
    """One (batch, lane-tile) step of a stride-1 'tap' convolution.

    x_ref : (C, lanes)       main tile of the flattened padded input (bf16)
    h_ref : (C, Hb)          row halo immediately following the tile (bf16)
    w_ref : (C_out, ke*ke*C) weight matrix, taps stacked along K (bf16)
    b_ref : (C_out, 1)       bias (f32)  [unused when act=False]
    s_ref : (C_out, lanes)   optional residual, same flattened layout (f32)
    o_ref : (C_out, lanes)   output tile on the padded-width grid
    """
    if has_skip:
        s_ref, o_ref = rest
    else:
        (o_ref,) = rest

    # Stage tile + halo once, build the im2col block with static lane shifts and
    # contract everything in ONE big-K MXU matmul (f32 accumulation).
    x = jnp.concatenate([x_ref[...], h_ref[...]], axis=-1)          # (C, lanes+Hb)
    cols = [x[:, a * wp + b: a * wp + b + lanes]
            for a in range(ke) for b in range(ke)]
    xcol = cols[0] if len(cols) == 1 else jnp.concatenate(cols, axis=0)
    acc = jnp.dot(w_ref[...], xcol, preferred_element_type=jnp.float32)

    if act:                          # FusedLeakyReLU (the *sqrt2 is folded into w/b)
        acc = acc + b_ref[...]
        acc = jnp.where(acc >= 0.0, acc, 0.2 * acc)
    if has_skip:                     # fused residual; skip already carries the /sqrt2
        acc = acc + s_ref[...].astype(jnp.float32)
    o_ref[...] = acc.astype(o_ref.dtype)


# ------------------------- tiling geometry helper ---------------------------

class _Geom(NamedTuple):
    wp: int      # padded width (flattening stride)
    out_h: int
    out_w: int
    n_out: int   # number of meaningful flattened output positions
    L: int       # lanes per grid step (multiple of 128, lane-dense stores)
    Hb: int      # halo block lanes (multiple of 128, divides L)
    T: int       # number of lane tiles


def _conv_geometry(hp, wp, ke, c_in, c_out,
                   target_lanes=2048, step_vmem_budget=16 * 1024 * 1024):
    """Pick lane-tile sizes: >= target lanes if possible, bounded by a per-step
    VMEM budget (incl. double buffering), capped at what the image needs."""
    out_h = hp - ke + 1
    out_w = wp - ke + 1
    n_out = (out_h - 1) * wp + out_w
    halo = (ke - 1) * wp + ke
    hb = _cdiv(halo, LANE) * LANE

    def step_bytes(lanes):
        x_in = 2 * c_in * (lanes + hb) * 2            # bf16 input, double buffered
        im2col = ke * ke * c_in * lanes * 2           # staged inside the kernel
        acc = c_out * lanes * 4
        outb = 2 * c_out * lanes * 4                  # worst case f32 out, dbl buf
        skipb = 2 * c_out * lanes * 4
        wts = 2 * ke * ke * c_in * c_out * 2
        return x_in + im2col + acc + outb + skipb + wts

    m = max(1, min(target_lanes // hb, _cdiv(n_out, hb)))
    while m > 1 and step_bytes(m * hb) > step_vmem_budget:
        m -= 1
    lanes = m * hb
    return _Geom(wp=wp, out_h=out_h, out_w=out_w, n_out=n_out,
                 L=lanes, Hb=hb, T=_cdiv(n_out, lanes))


# --------------------------- pallas_call wrapper ----------------------------

def _tap_conv_flat(x_pad, w_mat, bias, skip_flat, *, ke, geom, act, out_dtype):
    """Run the tap-convolution kernel on padded input x_pad (B, C, Hp, Wp).

    Returns the FLATTENED output (B, C_out, T*L) on the padded-width grid;
    valid pixel (i, j) lives at flattened position i*wp + j (j < out_w).
    """
    bsz, ch = x_pad.shape[0], x_pad.shape[1]
    c_out, K = w_mat.shape
    L, Hb, T, wp = geom.L, geom.Hb, geom.T, geom.wp
    n_in = T * L + Hb

    x_flat = x_pad.reshape(bsz, ch, -1).astype(jnp.bfloat16)
    pad = n_in - x_flat.shape[-1]
    assert pad >= 0
    x_flat = jnp.pad(x_flat, ((0, 0), (0, 0), (0, pad)))

    w_bf = w_mat.astype(jnp.bfloat16)
    if bias is None:
        b_col = jnp.zeros((c_out, 1), jnp.float32)
    else:
        b_col = bias.reshape(c_out, 1).astype(jnp.float32)

    has_skip = skip_flat is not None
    kern = functools.partial(_conv_kernel, ke=ke, wp=wp, lanes=L,
                             act=act, has_skip=has_skip)

    hb_blocks = L // Hb                      # halo offset (t+1)*L in Hb-sized blocks
    in_specs = [
        pl.BlockSpec((None, ch, L), lambda b, t: (b, 0, t)),
        pl.BlockSpec((None, ch, Hb), lambda b, t: (b, 0, (t + 1) * hb_blocks)),
        pl.BlockSpec((c_out, K), lambda b, t: (0, 0)),
        pl.BlockSpec((c_out, 1), lambda b, t: (0, 0)),
    ]
    inputs = [x_flat, x_flat, w_bf, b_col]
    if has_skip:
        in_specs.append(pl.BlockSpec((None, c_out, L), lambda b, t: (b, 0, t)))
        inputs.append(skip_flat)

    itemsize_out = jnp.dtype(out_dtype).itemsize
    flops = 2 * bsz * T * c_out * K * L
    bytes_accessed = int(
        x_flat.size * 2 + bsz * ch * T * Hb * 2
        + w_bf.size * 2 + b_col.size * 4
        + bsz * c_out * T * L * itemsize_out
        + (skip_flat.size * 4 if has_skip else 0))

    return pl.pallas_call(
        kern,
        out_shape=jax.ShapeDtypeStruct((bsz, c_out, T * L), out_dtype),
        grid=(bsz, T),
        in_specs=in_specs,
        out_specs=pl.BlockSpec((None, c_out, L), lambda b, t: (b, 0, t)),
        compiler_params=pltpu.CompilerParams(
            dimension_semantics=("parallel", "parallel"),
            vmem_limit_bytes=48 * 1024 * 1024),
        cost_estimate=pl.CostEstimate(flops=flops, transcendentals=0,
                                      bytes_accessed=bytes_accessed),
    )(*inputs)


def _unflatten(flat, geom):
    """(B, C, T*L) flattened padded-grid output -> (B, C, out_h, out_w)."""
    b, c = flat.shape[0], flat.shape[1]
    full = geom.out_h * geom.wp
    take = min(flat.shape[-1], full)
    flat = flat[:, :, :take]
    if take < full:
        flat = jnp.pad(flat, ((0, 0), (0, 0), (0, full - take)))
    return flat.reshape(b, c, geom.out_h, geom.wp)[:, :, :, :geom.out_w]


# ------------------------------- JAX glue ----------------------------------

def make_blur_kernel(k=(1, 3, 3, 1)):
    k1 = jnp.array(k, jnp.float32)
    k2 = k1[None, :] * k1[:, None]
    return k2 / jnp.sum(k2)


def fold_blur_into_weight(blur_k, w):
    """conv(blur_pad(x), w) == conv(pad(x), w_eff) with combined padding, where
    w_eff[o, i] is the full 2-D convolution of blur_k with w[o, i]."""
    c_out, c_in, kh, kw = w.shape
    bh, bw = blur_k.shape
    w_eff = jnp.zeros((c_out, c_in, kh + bh - 1, kw + bw - 1), jnp.float32)
    for a in range(kh):
        for b in range(kw):
            w_eff = w_eff.at[:, :, a:a + bh, b:b + bw].add(
                w[:, :, a, b][:, :, None, None] * blur_k)
    return w_eff


def _space_to_depth(x):
    """(B, C, H, W) -> (B, 4C, H/2, W/2); channel order (row-phase, col-phase, c)."""
    b, c, h, w = x.shape
    x = x.reshape(b, c, h // 2, 2, w // 2, 2)
    x = x.transpose(0, 3, 5, 1, 2, 4)
    return x.reshape(b, 4 * c, h // 2, w // 2)


def _weight_matrix_s1(w):
    """(C_out, C_in, k, k) -> (C_out, k*k*C_in); taps (a, b) stacked along K."""
    c_out, c_in, kh, kw = w.shape
    return jnp.concatenate([w[:, :, a, b] for a in range(kh) for b in range(kw)],
                           axis=1)


def _weight_matrix_s2d(w):
    """Even-k stride-2 conv weight -> tap matrix for the space-to-depth input.

    Channel order inside each tap is (row-phase, col-phase, c_in), matching
    _space_to_depth.  Returns (C_out, (k/2)^2 * 4*C_in)."""
    c_out, c_in, k, _ = w.shape
    assert k % 2 == 0
    ke = k // 2
    taps = []
    for a in range(ke):
        for b in range(ke):
            taps.append(jnp.concatenate(
                [w[:, :, 2 * a + pi, 2 * b + pj]
                 for pi in range(2) for pj in range(2)], axis=1))
    return jnp.concatenate(taps, axis=1)


@jax.jit
def resblock_forward(params, x):
    """ResBlock.forward: 3 Pallas conv calls (conv1, skip, conv2+fused residual)."""
    bsz, c_in, h, w = x.shape
    c_out = params['conv2_w'].shape[0]
    # TODO(synk): odd H/W would need an extra even-ing pad before space-to-depth.
    assert h % 2 == 0 and w % 2 == 0, "even spatial dims expected (GPEN uses 2^n)"
    blur = make_blur_kernel()

    # conv1: EqualConv2d 3x3 (pad=1) + FusedLeakyReLU, sqrt2 folded into w1/b1.
    w1 = params['conv1_w'] * (SQRT2 / math.sqrt(c_in * 9))
    b1 = params['conv1_b'] * SQRT2
    x1 = jnp.pad(x, ((0, 0), (0, 0), (1, 1), (1, 1)))
    g1 = _conv_geometry(h + 2, w + 2, 3, c_in, c_in)
    h1_flat = _tap_conv_flat(x1, _weight_matrix_s1(w1), b1, None,
                             ke=3, geom=g1, act=True, out_dtype=jnp.bfloat16)
    h1 = _unflatten(h1_flat, g1)                           # (B, C, H, W) bf16

    # Shared geometry for conv2 and skip (same padded width -> residual fuses).
    hp2, wp2 = (h + 4) // 2, (w + 4) // 2
    g2 = _conv_geometry(hp2, wp2, 3, 4 * c_in, c_out)

    # skip: Blur(1,1) + EqualConv2d 1x1 stride 2 -> fused 4x4 stride-2 conv, pad 1,
    # plus 2 extra right zero-columns so it shares conv2's padded-width grid.
    # The residual /sqrt2 is folded into the skip weights; output stays f32
    # because it feeds the f32 residual add directly.
    ws = fold_blur_into_weight(blur, params['skip_w'] * (1.0 / (SQRT2 * math.sqrt(c_in))))
    xs = jnp.pad(x, ((0, 0), (0, 0), (1, 1), (1, 3)))
    xs = _space_to_depth(xs)
    skip_flat = _tap_conv_flat(xs, _weight_matrix_s2d(ws), None, None,
                               ke=2, geom=g2, act=False, out_dtype=jnp.float32)

    # conv2: Blur(2,2) + EqualConv2d 3x3 stride 2 + FusedLeakyReLU, residual fused
    # into the epilogue (the *sqrt2 cancels the module's trailing /sqrt2).
    w2 = fold_blur_into_weight(blur, params['conv2_w'] * (1.0 / math.sqrt(c_in * 9)))
    h2 = jnp.pad(h1, ((0, 0), (0, 0), (2, 2), (2, 2)))
    h2 = _space_to_depth(h2)
    out_flat = _tap_conv_flat(h2, _weight_matrix_s2d(w2), params['conv2_b'],
                              skip_flat, ke=3, geom=g2, act=True,
                              out_dtype=jnp.float32)
    return _unflatten(out_flat, g2)                        # (B, C_out, H/2, W/2)


# -------------------- pure-JAX reference (for self-check) ------------------

def _upfirdn2d_ref(x, kernel, pad):
    x = jnp.pad(x, ((0, 0), (0, 0), (pad[0], pad[1]), (pad[0], pad[1])))
    kh, kw = kernel.shape
    kf = jnp.flip(kernel, (0, 1))
    ho = x.shape[2] - kh + 1
    wo = x.shape[3] - kw + 1
    out = jnp.zeros(x.shape[:2] + (ho, wo), x.dtype)
    for i in range(kh):
        for j in range(kw):
            out = out + kf[i, j] * x[:, :, i:i + ho, j:j + wo]
    return out


def _conv2d_ref(x, w, stride, padding):
    return jax.lax.conv_general_dilated(
        x, w, (stride, stride), [(padding, padding)] * 2,
        dimension_numbers=('NCHW', 'OIHW', 'NCHW'),
        precision=jax.lax.Precision.HIGHEST)


def _fused_lrelu_ref(x, bias):
    x = x + bias[None, :, None, None]
    return jnp.where(x >= 0.0, x, 0.2 * x) * SQRT2


@jax.jit
def resblock_reference(params, x):
    c_in = x.shape[1]
    blur_k = make_blur_kernel()
    o = _conv2d_ref(x, params['conv1_w'] * (1.0 / math.sqrt(c_in * 9)), 1, 1)
    o = _fused_lrelu_ref(o, params['conv1_b'])
    o = _upfirdn2d_ref(o, blur_k, (2, 2))
    o = _conv2d_ref(o, params['conv2_w'] * (1.0 / math.sqrt(c_in * 9)), 2, 0)
    o = _fused_lrelu_ref(o, params['conv2_b'])
    s = _upfirdn2d_ref(x, blur_k, (1, 1))
    s = _conv2d_ref(s, params['skip_w'] * (1.0 / math.sqrt(c_in)), 2, 0)
    return (o + s) / SQRT2


# ---------------------------------- main ------------------------------------

if __name__ == "__main__":
    B, C_IN, C_OUT, H, W = 2, 32, 64, 16, 16

    key = jax.random.PRNGKey(0)
    k1, k2, k3, k4, k5, kx = jax.random.split(key, 6)
    params = {
        'conv1_w': jax.random.normal(k1, (C_IN, C_IN, 3, 3), jnp.float32),
        'conv1_b': 0.1 * jax.random.normal(k2, (C_IN,), jnp.float32),
        'conv2_w': jax.random.normal(k3, (C_OUT, C_IN, 3, 3), jnp.float32),
        'conv2_b': 0.1 * jax.random.normal(k4, (C_OUT,), jnp.float32),
        'skip_w': jax.random.normal(k5, (C_OUT, C_IN, 1, 1), jnp.float32),
    }
    x = jax.random.normal(kx, (B, C_IN, H, W), jnp.float32)

    out = jax.block_until_ready(resblock_forward(params, x))
    assert out.shape == (B, C_OUT, H // 2, W // 2), out.shape
    assert bool(jnp.all(jnp.isfinite(out)))

    # Cross-check against a pure-JAX (XLA) reference of the PyTorch module.
    ref = jax.block_until_ready(resblock_reference(params, x))
    max_err = float(jnp.max(jnp.abs(out - ref)))
    assert max_err < 5e-2, f"max abs err vs reference: {max_err}"

    print("KERNEL_OK")
</pallas_src>

<mosaic_0001>
module attributes {stable_mosaic.version = 11 : i64} {
  func.func @_conv_kernel(%arg0: i32, %arg1: i32, %arg2: memref<1x128x128xbf16, #tpu.memory_space<vmem>>, %arg3: memref<1x128x128xbf16, #tpu.memory_space<vmem>>, %arg4: memref<64x512xbf16, #tpu.memory_space<vmem>>, %arg5: memref<64x1xf32, #tpu.memory_space<vmem>>, %arg6: memref<1x64x128xf32, #tpu.memory_space<vmem>>) attributes {dimension_semantics = [#tpu.dimension_semantics<parallel>, #tpu.dimension_semantics<parallel>], iteration_bounds = array<i64: 2, 1>, scalar_prefetch = 0 : i64, scratch_operands = 0 : i64, tpu.core_type = #tpu.core_type<tc>, window_params = [{transform_indices = @transform_0, window_bounds = array<i64: 1, 128, 128>}, {transform_indices = @transform_1, window_bounds = array<i64: 1, 128, 128>}, {pipeline_mode = #tpu.pipeline_mode<synchronous>, transform_indices = @transform_2, window_bounds = array<i64: 64, 512>}, {pipeline_mode = #tpu.pipeline_mode<synchronous>, transform_indices = @transform_3, window_bounds = array<i64: 64, 1>}, {transform_indices = @transform_4, window_bounds = array<i64: 1, 64, 128>}]} {
    %c0 = arith.constant 0 : index
    %c0_0 = arith.constant 0 : index
    %c0_1 = arith.constant 0 : index
    %0 = vector.load %arg2[%c0, %c0_0, %c0_1] : memref<1x128x128xbf16, #tpu.memory_space<vmem>>, vector<1x128x128xbf16>
    %1 = vector.shape_cast %0 : vector<1x128x128xbf16> to vector<128x128xbf16>
    %c0_2 = arith.constant 0 : index
    %c0_3 = arith.constant 0 : index
    %c0_4 = arith.constant 0 : index
    %2 = vector.load %arg3[%c0_2, %c0_3, %c0_4] : memref<1x128x128xbf16, #tpu.memory_space<vmem>>, vector<1x128x128xbf16>
    %3 = vector.shape_cast %2 : vector<1x128x128xbf16> to vector<128x128xbf16>
    %4 = tpu.concatenate %1, %3 in 1 : vector<128x128xbf16>, vector<128x128xbf16> -> vector<128x256xbf16>
    %5 = vector.extract_strided_slice %4 {offsets = [0, 0], sizes = [128, 128], strides = [1, 1]} : vector<128x256xbf16> to vector<128x128xbf16>
    %6 = vector.extract_strided_slice %4 {offsets = [0, 1], sizes = [128, 128], strides = [1, 1]} : vector<128x256xbf16> to vector<128x128xbf16>
    %7 = vector.extract_strided_slice %4 {offsets = [0, 10], sizes = [128, 128], strides = [1, 1]} : vector<128x256xbf16> to vector<128x128xbf16>
    %8 = vector.extract_strided_slice %4 {offsets = [0, 11], sizes = [128, 128], strides = [1, 1]} : vector<128x256xbf16> to vector<128x128xbf16>
    %9 = tpu.concatenate %5, %6, %7, %8 in 0 : vector<128x128xbf16>, vector<128x128xbf16>, vector<128x128xbf16>, vector<128x128xbf16> -> vector<512x128xbf16>
    %c0_5 = arith.constant 0 : index
    %c0_6 = arith.constant 0 : index
    %10 = vector.load %arg4[%c0_5, %c0_6] : memref<64x512xbf16, #tpu.memory_space<vmem>>, vector<64x512xbf16>
    %cst = arith.constant dense<0.000000e+00> : vector<64x128xf32>
    %11 = tpu.matmul %10, %9, %cst {dimension_numbers = #tpu.dot_dimension_numbers<[1], [0], [0], [1], [0, 0, 1, 1], [], []>} : vector<64x512xbf16>, vector<512x128xbf16>, vector<64x128xf32> -> vector<64x128xf32>
    %c0_7 = arith.constant 0 : index
    %c0_8 = arith.constant 0 : index
    %c0_9 = arith.constant 0 : index
    %12 = vector.load %arg6[%c0_7, %c0_8, %c0_9] : memref<1x64x128xf32, #tpu.memory_space<vmem>>, vector<1x64x128xf32>
    %13 = vector.shape_cast %12 : vector<1x64x128xf32> to vector<64x128xf32>
    %14 = vector.shape_cast %11 : vector<64x128xf32> to vector<1x64x128xf32>
    tpu.vector_store %arg6[%c0_7, %c0_8, %c0_9], %14 {strides = array<i32>} : memref<1x64x128xf32, #tpu.memory_space<vmem>>, vector<1x64x128xf32>,
    return
  }
  func.func @transform_0(%arg0: i32, %arg1: i32) -> (i32, i32, i32) {
    %c0_i32 = arith.constant 0 : i32
    %c0_i32_0 = arith.constant 0 : i32
    return %arg0, %c0_i32, %arg1 : i32, i32, i32
  }
  func.func @transform_1(%arg0: i32, %arg1: i32) -> (i32, i32, i32) {
    %c1_i32 = arith.constant 1 : i32
    %0 = arith.addi %arg1, %c1_i32 : i32
    %c1_i32_0 = arith.constant 1 : i32
    %1 = arith.muli %0, %c1_i32_0 : i32
    %c0_i32 = arith.constant 0 : i32
    %c0_i32_1 = arith.constant 0 : i32
    return %arg0, %c0_i32, %1 : i32, i32, i32
  }
  func.func @transform_2(%arg0: i32, %arg1: i32) -> (i32, i32) {
    %c0_i32 = arith.constant 0 : i32
    %c0_i32_0 = arith.constant 0 : i32
    %c0_i32_1 = arith.constant 0 : i32
    return %c0_i32, %c0_i32_0 : i32, i32
  }
  func.func @transform_3(%arg0: i32, %arg1: i32) -> (i32, i32) {
    %c0_i32 = arith.constant 0 : i32
    %c0_i32_0 = arith.constant 0 : i32
    %c0_i32_1 = arith.constant 0 : i32
    return %c0_i32, %c0_i32_0 : i32, i32
  }
  func.func @transform_4(%arg0: i32, %arg1: i32) -> (i32, i32, i32) {
    %c0_i32 = arith.constant 0 : i32
    %c0_i32_0 = arith.constant 0 : i32
    return %arg0, %c0_i32, %arg1 : i32, i32, i32
  }
}

module attributes {stable_mosaic.version = 11 : i64} {
  func.func @_conv_kernel(%arg0: i32, %arg1: i32, %arg2: memref<1x32x384xbf16, #tpu.memory_space<vmem>>, %arg3: memref<1x32x128xbf16, #tpu.memory_space<vmem>>, %arg4: memref<32x288xbf16, #tpu.memory_space<vmem>>, %arg5: memref<32x1xf32, #tpu.memory_space<vmem>>, %arg6: memref<1x32x384xbf16, #tpu.memory_space<vmem>>) attributes {dimension_semantics = [#tpu.dimension_semantics<parallel>, #tpu.dimension_semantics<parallel>], iteration_bounds = array<i64: 2, 1>, scalar_prefetch = 0 : i64, scratch_operands = 0 : i64, tpu.core_type = #tpu.core_type<tc>, window_params = [{transform_indices = @transform_0, window_bounds = array<i64: 1, 32, 384>}, {transform_indices = @transform_1, window_bounds = array<i64: 1, 32, 128>}, {pipeline_mode = #tpu.pipeline_mode<synchronous>, transform_indices = @transform_2, window_bounds = array<i64: 32, 288>}, {pipeline_mode = #tpu.pipeline_mode<synchronous>, transform_indices = @transform_3, window_bounds = array<i64: 32, 1>}, {transform_indices = @transform_4, window_bounds = array<i64: 1, 32, 384>}]} {
    %c0 = arith.constant 0 : index
    %c0_0 = arith.constant 0 : index
    %c0_1 = arith.constant 0 : index
    %0 = vector.load %arg2[%c0, %c0_0, %c0_1] : memref<1x32x384xbf16, #tpu.memory_space<vmem>>, vector<1x32x384xbf16>
    %1 = vector.shape_cast %0 : vector<1x32x384xbf16> to vector<32x384xbf16>
    %c0_2 = arith.constant 0 : index
    %c0_3 = arith.constant 0 : index
    %c0_4 = arith.constant 0 : index
    %2 = vector.load %arg3[%c0_2, %c0_3, %c0_4] : memref<1x32x128xbf16, #tpu.memory_space<vmem>>, vector<1x32x128xbf16>
    %3 = vector.shape_cast %2 : vector<1x32x128xbf16> to vector<32x128xbf16>
    %4 = tpu.concatenate %1, %3 in 1 : vector<32x384xbf16>, vector<32x128xbf16> -> vector<32x512xbf16>
    %5 = vector.extract_strided_slice %4 {offsets = [0, 0], sizes = [32, 384], strides = [1, 1]} : vector<32x512xbf16> to vector<32x384xbf16>
    %6 = vector.extract_strided_slice %4 {offsets = [0, 1], sizes = [32, 384], strides = [1, 1]} : vector<32x512xbf16> to vector<32x384xbf16>
    %7 = vector.extract_strided_slice %4 {offsets = [0, 2], sizes = [32, 384], strides = [1, 1]} : vector<32x512xbf16> to vector<32x384xbf16>
    %8 = vector.extract_strided_slice %4 {offsets = [0, 18], sizes = [32, 384], strides = [1, 1]} : vector<32x512xbf16> to vector<32x384xbf16>
    %9 = vector.extract_strided_slice %4 {offsets = [0, 19], sizes = [32, 384], strides = [1, 1]} : vector<32x512xbf16> to vector<32x384xbf16>
    %10 = vector.extract_strided_slice %4 {offsets = [0, 20], sizes = [32, 384], strides = [1, 1]} : vector<32x512xbf16> to vector<32x384xbf16>
    %11 = vector.extract_strided_slice %4 {offsets = [0, 36], sizes = [32, 384], strides = [1, 1]} : vector<32x512xbf16> to vector<32x384xbf16>
    %12 = vector.extract_strided_slice %4 {offsets = [0, 37], sizes = [32, 384], strides = [1, 1]} : vector<32x512xbf16> to vector<32x384xbf16>
    %13 = vector.extract_strided_slice %4 {offsets = [0, 38], sizes = [32, 384], strides = [1, 1]} : vector<32x512xbf16> to vector<32x384xbf16>
    %14 = tpu.concatenate %5, %6, %7, %8, %9, %10, %11, %12, %13 in 0 : vector<32x384xbf16>, vector<32x384xbf16>, vector<32x384xbf16>, vector<32x384xbf16>, vector<32x384xbf16>, vector<32x384xbf16>, vector<32x384xbf16>, vector<32x384xbf16>, vector<32x384xbf16> -> vector<288x384xbf16>
    %c0_5 = arith.constant 0 : index
    %c0_6 = arith.constant 0 : index
    %15 = vector.load %arg4[%c0_5, %c0_6] : memref<32x288xbf16, #tpu.memory_space<vmem>>, vector<32x288xbf16>
    %cst = arith.constant dense<0.000000e+00> : vector<32x384xf32>
    %16 = tpu.matmul %15, %14, %cst {dimension_numbers = #tpu.dot_dimension_numbers<[1], [0], [0], [1], [0, 0, 1, 1], [], []>} : vector<32x288xbf16>, vector<288x384xbf16>, vector<32x384xf32> -> vector<32x384xf32>
    %c0_7 = arith.constant 0 : index
    %c0_8 = arith.constant 0 : index
    %17 = vector.load %arg5[%c0_7, %c0_8] : memref<32x1xf32, #tpu.memory_space<vmem>>, vector<32x1xf32>
    %18 = vector.broadcast %17 : vector<32x1xf32> to vector<32x384xf32>
    %19 = arith.addf %16, %18 : vector<32x384xf32>
    %cst_9 = arith.constant 0.000000e+00 : f32
    %20 = vector.broadcast %cst_9 : f32 to vector<32x384xf32>
    %21 = arith.cmpf oge, %19, %20 : vector<32x384xf32>
    %cst_10 = arith.constant 2.000000e-01 : f32
    %22 = vector.broadcast %cst_10 : f32 to vector<32x384xf32>
    %23 = arith.mulf %22, %19 : vector<32x384xf32>
    %24 = arith.select %21, %19, %23 : vector<32x384xi1>, vector<32x384xf32>
    %25 = arith.truncf %24 : vector<32x384xf32> to vector<32x384xbf16>
    %c0_11 = arith.constant 0 : index
    %c0_12 = arith.constant 0 : index
    %c0_13 = arith.constant 0 : index
    %26 = vector.load %arg6[%c0_11, %c0_12, %c0_13] : memref<1x32x384xbf16, #tpu.memory_space<vmem>>, vector<1x32x384xbf16>
    %27 = vector.shape_cast %26 : vector<1x32x384xbf16> to vector<32x384xbf16>
    %28 = vector.shape_cast %25 : vector<32x384xbf16> to vector<1x32x384xbf16>
    tpu.vector_store %arg6[%c0_11, %c0_12, %c0_13], %28 {strides = array<i32>} : memref<1x32x384xbf16, #tpu.memory_space<vmem>>, vector<1x32x384xbf16>,
    return
  }
  func.func @transform_0(%arg0: i32, %arg1: i32) -> (i32, i32, i32) {
    %c0_i32 = arith.constant 0 : i32
    %c0_i32_0 = arith.constant 0 : i32
    return %arg0, %c0_i32, %arg1 : i32, i32, i32
  }
  func.func @transform_1(%arg0: i32, %arg1: i32) -> (i32, i32, i32) {
    %c1_i32 = arith.constant 1 : i32
    %0 = arith.addi %arg1, %c1_i32 : i32
    %c3_i32 = arith.constant 3 : i32
    %1 = arith.muli %0, %c3_i32 : i32
    %c0_i32 = arith.constant 0 : i32
    %c0_i32_0 = arith.constant 0 : i32
    return %arg0, %c0_i32, %1 : i32, i32, i32
  }
  func.func @transform_2(%arg0: i32, %arg1: i32) -> (i32, i32) {
    %c0_i32 = arith.constant 0 : i32
    %c0_i32_0 = arith.constant 0 : i32
    %c0_i32_1 = arith.constant 0 : i32
    return %c0_i32, %c0_i32_0 : i32, i32
  }
  func.func @transform_3(%arg0: i32, %arg1: i32) -> (i32, i32) {
    %c0_i32 = arith.constant 0 : i32
    %c0_i32_0 = arith.constant 0 : i32
    %c0_i32_1 = arith.constant 0 : i32
    return %c0_i32, %c0_i32_0 : i32, i32
  }
  func.func @transform_4(%arg0: i32, %arg1: i32) -> (i32, i32, i32) {
    %c0_i32 = arith.constant 0 : i32
    %c0_i32_0 = arith.constant 0 : i32
    return %arg0, %c0_i32, %arg1 : i32, i32, i32
  }
}

module attributes {stable_mosaic.version = 11 : i64} {
  func.func @_conv_kernel(%arg0: i32, %arg1: i32, %arg2: memref<1x128x128xbf16, #tpu.memory_space<vmem>>, %arg3: memref<1x128x128xbf16, #tpu.memory_space<vmem>>, %arg4: memref<64x1152xbf16, #tpu.memory_space<vmem>>, %arg5: memref<64x1xf32, #tpu.memory_space<vmem>>, %arg6: memref<1x64x128xf32, #tpu.memory_space<vmem>>, %arg7: memref<1x64x128xf32, #tpu.memory_space<vmem>>) attributes {dimension_semantics = [#tpu.dimension_semantics<parallel>, #tpu.dimension_semantics<parallel>], iteration_bounds = array<i64: 2, 1>, scalar_prefetch = 0 : i64, scratch_operands = 0 : i64, tpu.core_type = #tpu.core_type<tc>, window_params = [{transform_indices = @transform_0, window_bounds = array<i64: 1, 128, 128>}, {transform_indices = @transform_1, window_bounds = array<i64: 1, 128, 128>}, {pipeline_mode = #tpu.pipeline_mode<synchronous>, transform_indices = @transform_2, window_bounds = array<i64: 64, 1152>}, {pipeline_mode = #tpu.pipeline_mode<synchronous>, transform_indices = @transform_3, window_bounds = array<i64: 64, 1>}, {transform_indices = @transform_4, window_bounds = array<i64: 1, 64, 128>}, {transform_indices = @transform_5, window_bounds = array<i64: 1, 64, 128>}]} {
    %c0 = arith.constant 0 : index
    %c0_0 = arith.constant 0 : index
    %c0_1 = arith.constant 0 : index
    %0 = vector.load %arg2[%c0, %c0_0, %c0_1] : memref<1x128x128xbf16, #tpu.memory_space<vmem>>, vector<1x128x128xbf16>
    %1 = vector.shape_cast %0 : vector<1x128x128xbf16> to vector<128x128xbf16>
    %c0_2 = arith.constant 0 : index
    %c0_3 = arith.constant 0 : index
    %c0_4 = arith.constant 0 : index
    %2 = vector.load %arg3[%c0_2, %c0_3, %c0_4] : memref<1x128x128xbf16, #tpu.memory_space<vmem>>, vector<1x128x128xbf16>
    %3 = vector.shape_cast %2 : vector<1x128x128xbf16> to vector<128x128xbf16>
    %4 = tpu.concatenate %1, %3 in 1 : vector<128x128xbf16>, vector<128x128xbf16> -> vector<128x256xbf16>
    %5 = vector.extract_strided_slice %4 {offsets = [0, 0], sizes = [128, 128], strides = [1, 1]} : vector<128x256xbf16> to vector<128x128xbf16>
    %6 = vector.extract_strided_slice %4 {offsets = [0, 1], sizes = [128, 128], strides = [1, 1]} : vector<128x256xbf16> to vector<128x128xbf16>
    %7 = vector.extract_strided_slice %4 {offsets = [0, 2], sizes = [128, 128], strides = [1, 1]} : vector<128x256xbf16> to vector<128x128xbf16>
    %8 = vector.extract_strided_slice %4 {offsets = [0, 10], sizes = [128, 128], strides = [1, 1]} : vector<128x256xbf16> to vector<128x128xbf16>
    %9 = vector.extract_strided_slice %4 {offsets = [0, 11], sizes = [128, 128], strides = [1, 1]} : vector<128x256xbf16> to vector<128x128xbf16>
    %10 = vector.extract_strided_slice %4 {offsets = [0, 12], sizes = [128, 128], strides = [1, 1]} : vector<128x256xbf16> to vector<128x128xbf16>
    %11 = vector.extract_strided_slice %4 {offsets = [0, 20], sizes = [128, 128], strides = [1, 1]} : vector<128x256xbf16> to vector<128x128xbf16>
    %12 = vector.extract_strided_slice %4 {offsets = [0, 21], sizes = [128, 128], strides = [1, 1]} : vector<128x256xbf16> to vector<128x128xbf16>
    %13 = vector.extract_strided_slice %4 {offsets = [0, 22], sizes = [128, 128], strides = [1, 1]} : vector<128x256xbf16> to vector<128x128xbf16>
    %14 = tpu.concatenate %5, %6, %7, %8, %9, %10, %11, %12, %13 in 0 : vector<128x128xbf16>, vector<128x128xbf16>, vector<128x128xbf16>, vector<128x128xbf16>, vector<128x128xbf16>, vector<128x128xbf16>, vector<128x128xbf16>, vector<128x128xbf16>, vector<128x128xbf16> -> vector<1152x128xbf16>
    %c0_5 = arith.constant 0 : index
    %c0_6 = arith.constant 0 : index
    %15 = vector.load %arg4[%c0_5, %c0_6] : memref<64x1152xbf16, #tpu.memory_space<vmem>>, vector<64x1152xbf16>
    %cst = arith.constant dense<0.000000e+00> : vector<64x128xf32>
    %16 = tpu.matmul %15, %14, %cst {dimension_numbers = #tpu.dot_dimension_numbers<[1], [0], [0], [1], [0, 0, 1, 1], [], []>} : vector<64x1152xbf16>, vector<1152x128xbf16>, vector<64x128xf32> -> vector<64x128xf32>
    %c0_7 = arith.constant 0 : index
    %c0_8 = arith.constant 0 : index
    %17 = vector.load %arg5[%c0_7, %c0_8] : memref<64x1xf32, #tpu.memory_space<vmem>>, vector<64x1xf32>
    %18 = vector.broadcast %17 : vector<64x1xf32> to vector<64x128xf32>
    %19 = arith.addf %16, %18 : vector<64x128xf32>
    %cst_9 = arith.constant 0.000000e+00 : f32
    %20 = vector.broadcast %cst_9 : f32 to vector<64x128xf32>
    %21 = arith.cmpf oge, %19, %20 : vector<64x128xf32>
    %cst_10 = arith.constant 2.000000e-01 : f32
    %22 = vector.broadcast %cst_10 : f32 to vector<64x128xf32>
    %23 = arith.mulf %22, %19 : vector<64x128xf32>
    %24 = arith.select %21, %19, %23 : vector<64x128xi1>, vector<64x128xf32>
    %c0_11 = arith.constant 0 : index
    %c0_12 = arith.constant 0 : index
    %c0_13 = arith.constant 0 : index
    %25 = vector.load %arg6[%c0_11, %c0_12, %c0_13] : memref<1x64x128xf32, #tpu.memory_space<vmem>>, vector<1x64x128xf32>
    %26 = vector.shape_cast %25 : vector<1x64x128xf32> to vector<64x128xf32>
    %27 = arith.addf %24, %26 : vector<64x128xf32>
    %c0_14 = arith.constant 0 : index
    %c0_15 = arith.constant 0 : index
    %c0_16 = arith.constant 0 : index
    %28 = vector.load %arg7[%c0_14, %c0_15, %c0_16] : memref<1x64x128xf32, #tpu.memory_space<vmem>>, vector<1x64x128xf32>
    %29 = vector.shape_cast %28 : vector<1x64x128xf32> to vector<64x128xf32>
    %30 = vector.shape_cast %27 : vector<64x128xf32> to vector<1x64x128xf32>
    tpu.vector_store %arg7[%c0_14, %c0_15, %c0_16], %30 {strides = array<i32>} : memref<1x64x128xf32, #tpu.memory_space<vmem>>, vector<1x64x128xf32>,
    return
  }
  func.func @transform_0(%arg0: i32, %arg1: i32) -> (i32, i32, i32) {
    %c0_i32 = arith.constant 0 : i32
    %c0_i32_0 = arith.constant 0 : i32
    return %arg0, %c0_i32, %arg1 : i32, i32, i32
  }
  func.func @transform_1(%arg0: i32, %arg1: i32) -> (i32, i32, i32) {
    %c1_i32 = arith.constant 1 : i32
    %0 = arith.addi %arg1, %c1_i32 : i32
    %c1_i32_0 = arith.constant 1 : i32
    %1 = arith.muli %0, %c1_i32_0 : i32
    %c0_i32 = arith.constant 0 : i32
    %c0_i32_1 = arith.constant 0 : i32
    return %arg0, %c0_i32, %1 : i32, i32, i32
  }
  func.func @transform_2(%arg0: i32, %arg1: i32) -> (i32, i32) {
    %c0_i32 = arith.constant 0 : i32
    %c0_i32_0 = arith.constant 0 : i32
    %c0_i32_1 = arith.constant 0 : i32
    return %c0_i32, %c0_i32_0 : i32, i32
  }
  func.func @transform_3(%arg0: i32, %arg1: i32) -> (i32, i32) {
    %c0_i32 = arith.constant 0 : i32
    %c0_i32_0 = arith.constant 0 : i32
    %c0_i32_1 = arith.constant 0 : i32
    return %c0_i32, %c0_i32_0 : i32, i32
  }
  func.func @transform_4(%arg0: i32, %arg1: i32) -> (i32, i32, i32) {
    %c0_i32 = arith.constant 0 : i32
    %c0_i32_0 = arith.constant 0 : i32
    return %arg0, %c0_i32, %arg1 : i32, i32, i32
  }
  func.func @transform_5(%arg0: i32, %arg1: i32) -> (i32, i32, i32) {
    %c0_i32 = arith.constant 0 : i32
    %c0_i32_0 = arith.constant 0 : i32
    return %arg0, %c0_i32, %arg1 : i32, i32, i32
  }
}

</mosaic_0001>

<llo_original>
// kernel: resblock_forward.4
$region0: #{resblock_forward.4}
  #allocation0 [shape = 'u32[]', space=smem, size = 0x4, offset = 0x4, fixed_abs, tag = 'smem constant byte address 0x4 - core index']
  #allocation1 [shape = 'u32[144,128]{1,0:T(1,128)}', space=vmem, size = 0x12000, scoped, tag = 'internal scratch']
  %s0 = inlined_call_operand.vmem [shape: bf16[2,128,256], index: 0, kind: input, shape index: {}, may-alias: {0,1}]
  %s1 = inlined_call_operand.vmem [shape: bf16[2,128,256], index: 1, kind: input, shape index: {}, may-alias: {0,1}]
  %s2 = inlined_call_operand.vmem [shape: bf16[64,512], index: 2, kind: input, shape index: {}]
  %s3 = inlined_call_operand.vmem [shape: f32[64,1], index: 3, kind: input, shape index: {}]
  %s4 = inlined_call_operand.vmem [shape: f32[2,64,128], index: 4, kind: output, shape index: {}]
  %s5 = sld [smem:[#allocation0]]
  $region131: #{resblock_forward.4} parent=0
    _
  %s7 = ssub.s32 1, %s5
  %s8 = scalar_select 0, %s7, %s5
  $region1: #{resblock_forward.4} parent=0
    #allocation2 [shape = 'u8[65536]{0}', space=vmem, size = 0x10000, scoped, tag = 'input window, operand 0']
    #allocation3 [shape = 'u8[65536]{0}', space=vmem, size = 0x10000, scoped, tag = 'input window, operand 1']
    loop: start=0, step=1, limit=4
    $region2: #{resblock_forward.4} parent=1 // loop_pre_header
      _
    $region3: #{resblock_forward.4} parent=1 // loop_header
      %s10 = sphi 0, %s14
      %p11 = scmp.ge.s32.totalorder %s10, 4
      %s17 = sphi 0, %s29
      %s18 = sphi 0, %s25
      %s19 = sphi 0, %s17
      %s20 = sphi 0, %s18
      %s21 = sphi 0, %s19
      %s22 = sphi 0, %s20
      %s34 = sphi 0, %s36
      %s37 = sphi 0, %s34
      %s38 = sphi 0, %s37
      %s54 = sphi 0, %s38
      %s64 = sphi 0, %s66
      %s67 = sphi 0, %s64
      %s68 = sphi 0, %s67
      %s84 = sphi 0, %s68
      %s88 = sphi 0, %s88
      %s90 = sphi 0, %s88
      %s91 = sphi 0, %s90
      %s105 = sphi 0, %s91
      %s109 = sphi 0, %s109
      %s111 = sphi 0, %s109
      %s112 = sphi 0, %s111
      %s126 = sphi 0, %s112
      %s134 = sphi 0, %s136
      %s137 = sphi 0, %s134
      %s138 = sphi 0, %s137
      %s154 = sphi 0, %s138
    $region4: #{resblock_forward.4} parent=1 // loop_header_branch
      %13 = sbr.rel (%p11) target = $region8
    $region5: #{resblock_forward.4} parent=1 // loop_body
      %s15 = ssub.s32 %s10, 1
      %s16 = ssub.s32 %s10, 2
      %s23 = sadd.s32 1, %s18
      %p24 = scmp.ge.s32.totalorder %s23, 1
      %s25 = scalar_select %p24, 0, %s23
      %s26 = sadd.s32 1, %s17
      %s27 = scalar_select %p24, %s26, %s17
      %p28 = scmp.ge.s32.totalorder %s27, 2
      %s29 = scalar_select %p28, 0, %s27
      %s30 = ssub.s32 %s17, %s29
      %s31 = ssub.s32 %s18, %s25
      %s32 = sor.u32 %s30, %s31
      %p33 = scmp.eq.s32.totalorder %s32, 0
      %s35 = sadd.s32 %s34, 1
      %s36 = scalar_select %p33, %s34, %s35
      %p39 = pneg %p33
      %p40 = scmp.eq.s32.totalorder %s10, 1
      %p41 = por %p39, %p40
      %p42 = scmp.ne.s32.totalorder %s34, %s37
      %p43 = scmp.eq.s32.totalorder %s10, 0
      %p44 = por %p42, %p43
      %p45 = scmp.ne.s32.totalorder %s34, %s37
      %p46 = scmp.eq.s32.totalorder %s15, 1
      %p47 = por %p45, %p46
      %p48 = scmp.ne.s32.totalorder %s37, %s38
      %p49 = scmp.eq.s32.totalorder %s15, 0
      %p50 = por %p48, %p49
      %p51 = scmp.ne.s32.totalorder %s37, %s38
      %p52 = scmp.eq.s32.totalorder %s16, 1
      %p53 = por %p51, %p52
      %p55 = scmp.ne.s32.totalorder %s38, %s54
      %p56 = scmp.eq.s32.totalorder %s16, 0
      %p57 = por %p55, %p56
      %s58 = sadd.s32 %s18, 1
      %s59 = sadd.s32 %s25, 1
      %s60 = ssub.s32 %s17, %s29
      %s61 = ssub.s32 %s58, %s59
      %s62 = sor.u32 %s60, %s61
      %p63 = scmp.eq.s32.totalorder %s62, 0
      %s65 = sadd.s32 %s64, 1
      %s66 = scalar_select %p63, %s64, %s65
      %p69 = pneg %p63
      %p70 = scmp.eq.s32.totalorder %s10, 1
      %p71 = por %p69, %p70
      %p72 = scmp.ne.s32.totalorder %s64, %s67
      %p73 = scmp.eq.s32.totalorder %s10, 0
      %p74 = por %p72, %p73
      %p75 = scmp.ne.s32.totalorder %s64, %s67
      %p76 = scmp.eq.s32.totalorder %s15, 1
      %p77 = por %p75, %p76
      %p78 = scmp.ne.s32.totalorder %s67, %s68
      %p79 = scmp.eq.s32.totalorder %s15, 0
      %p80 = por %p78, %p79
      %p81 = scmp.ne.s32.totalorder %s67, %s68
      %p82 = scmp.eq.s32.totalorder %s16, 1
      %p83 = por %p81, %p82
      %p85 = scmp.ne.s32.totalorder %s68, %s84
      %p86 = scmp.eq.s32.totalorder %s16, 0
      %p87 = por %p85, %p86
      %s89 = sadd.s32 %s88, 1
      %p92 = scmp.eq.s32.totalorder %s10, 1
      %p93 = scmp.ne.s32.totalorder %s88, %s90
      %p94 = scmp.eq.s32.totalorder %s10, 0
      %p95 = por %p93, %p94
      %p96 = scmp.ne.s32.totalorder %s88, %s90
      %p97 = scmp.eq.s32.totalorder %s15, 1
      %p98 = por %p96, %p97
      %p99 = scmp.ne.s32.totalorder %s90, %s91
      %p100 = scmp.eq.s32.totalorder %s15, 0
      %p101 = por %p99, %p100
      %p102 = scmp.ne.s32.totalorder %s90, %s91
      %p103 = scmp.eq.s32.totalorder %s16, 1
      %p104 = por %p102, %p103
      %p106 = scmp.ne.s32.totalorder %s91, %s105
      %p107 = scmp.eq.s32.totalorder %s16, 0
      %p108 = por %p106, %p107
      %s110 = sadd.s32 %s109, 1
      %p113 = scmp.eq.s32.totalorder %s10, 1
      %p114 = scmp.ne.s32.totalorder %s109, %s111
      %p115 = scmp.eq.s32.totalorder %s10, 0
      %p116 = por %p114, %p115
      %p117 = scmp.ne.s32.totalorder %s109, %s111
      %p118 = scmp.eq.s32.totalorder %s15, 1
      %p119 = por %p117, %p118
      %p120 = scmp.ne.s32.totalorder %s111, %s112
      %p121 = scmp.eq.s32.totalorder %s15, 0
      %p122 = por %p120, %p121
      %p123 = scmp.ne.s32.totalorder %s111, %s112
      %p124 = scmp.eq.s32.totalorder %s16, 1
      %p125 = por %p123, %p124
      %p127 = scmp.ne.s32.totalorder %s112, %s126
      %p128 = scmp.eq.s32.totalorder %s16, 0
      %p129 = por %p127, %p128
      %s130 = ssub.s32 %s17, %s29
      %s131 = ssub.s32 %s18, %s25
      %s132 = sor.u32 %s130, %s131
      %p133 = scmp.eq.s32.totalorder %s132, 0
      %s135 = sadd.s32 %s134, 1
      %s136 = scalar_select %p133, %s134, %s135
      %p139 = pneg %p133
      %p140 = scmp.eq.s32.totalorder %s10, 1
      %p141 = por %p139, %p140
      %p142 = scmp.ne.s32.totalorder %s134, %s137
      %p143 = scmp.eq.s32.totalorder %s10, 0
      %p144 = por %p142, %p143
      %p145 = scmp.ne.s32.totalorder %s134, %s137
      %p146 = scmp.eq.s32.totalorder %s15, 1
      %p147 = por %p145, %p146
      %p148 = scmp.ne.s32.totalorder %s137, %s138
      %p149 = scmp.eq.s32.totalorder %s15, 0
      %p150 = por %p148, %p149
      %p151 = scmp.ne.s32.totalorder %s137, %s138
      %p152 = scmp.eq.s32.totalorder %s16, 1
      %p153 = por %p151, %p152
      %p155 = scmp.ne.s32.totalorder %s138, %s154
      %p156 = scmp.eq.s32.totalorder %s16, 0
      %p157 = por %p155, %p156
      %p158 = scmp.le.s32.totalorder 1, %s10
      %p159 = scmp.lt.s32.totalorder %s10, 3
      %p160 = pnand %p158, %p159
      %p161 = pneg %p160
      // Predicated region
      $region9: #{resblock_forward.4} parent=5 // pred_check
        _
      $region10: #{resblock_forward.4} parent=5 // pred_check_branch
        %163 = sbr.rel (%p160) target = $region12
      $region11: #{resblock_forward.4} parent=5 // pred_region
        %s164 = ssub.s32 %s10, 1
        // Predicated region
        $region13: #{resblock_forward.4} parent=11 // pred_check
          %p165 = pneg %p101
        $region14: #{resblock_forward.4} parent=11 // pred_check_branch
          %167 = sbr.rel (%p165) target = $region16
        $region15: #{resblock_forward.4} parent=11 // pred_region
          _
        $region16: #{resblock_forward.4} parent=11 // pred_fallthru
          _
        // Predicated region
        $region17: #{resblock_forward.4} parent=11 // pred_check
          %p168 = pneg %p122
        $region18: #{resblock_forward.4} parent=11 // pred_check_branch
          %170 = sbr.rel (%p168) target = $region20
        $region19: #{resblock_forward.4} parent=11 // pred_region
          _
        $region20: #{resblock_forward.4} parent=11 // pred_fallthru
          _
      $region12: #{resblock_forward.4} parent=5 // pred_fallthru
        _
      %p171 = scmp.lt.s32.totalorder %s10, 2
      // Predicated region
      $region21: #{resblock_forward.4} parent=5 // pred_check
        %p172 = pneg %p171
      $region22: #{resblock_forward.4} parent=5 // pred_check_branch
        %174 = sbr.rel (%p172) target = $region24
      $region23: #{resblock_forward.4} parent=5 // pred_region
        // Predicated region
        $region25: #{resblock_forward.4} parent=23 // pred_check
          %p175 = pneg %p44
        $region26: #{resblock_forward.4} parent=23 // pred_check_branch
          %177 = sbr.rel (%p175) target = $region28
        $region27: #{resblock_forward.4} parent=23 // pred_region
          %s178 = sand.u32 %s34, 1
          %s179 = sand.u32 %s34, 1
          %s180 = smul.addr %s179, 64
          %s181 = scalar_lea.vmem [#allocation2], %s180
          %s182 = smul.addr %s17, 32
          %s183 = sadd.s32 %s18, %s182
          %s184 = smul.addr %s183, 4
          %s185 = scalar_lea.vmem %s0, %s184
          // Predicated region
          $region29: #{resblock_forward.4} parent=27 // pred_check
            _
          $region30: #{resblock_forward.4} parent=27 // pred_check_branch
            %187 = sbr.rel (0) target = $region32
          $region31: #{resblock_forward.4} parent=27 // pred_region
            // Predicated region
            $region33: #{resblock_forward.4} parent=31 // pred_check
              _
            $region34: #{resblock_forward.4} parent=31 // pred_check_branch
              %189 = sbr.rel target = $region36
            $region35: #{resblock_forward.4} parent=31 // pred_region
              // Predicated region
              $region48: #{resblock_forward.4} parent=35 // pred_check
                _
              $region49: #{resblock_forward.4} parent=35 // pred_check_branch
                %234 = sbr.rel (0) target = $region51
              $region50: #{resblock_forward.4} parent=35 // pred_region
                loop: start=0, step=1, limit=1
                $region52: #{resblock_forward.4} parent=50 // loop_pre_header
                  _
                $region53: #{resblock_forward.4} parent=50 // loop_header
                  %s236 = sphi 0, %s240
                  %p237 = scmp.ge.s32.totalorder %s236, 1
                  %s241 = sphi %s185, %s185
                  %s242 = sphi %s181, %s181
                $region54: #{resblock_forward.4} parent=50 // loop_header_branch
                  %239 = sbr.rel (%p237) target = $region58
                $region55: #{resblock_forward.4} parent=50 // loop_body
                  _
                $region56: #{resblock_forward.4} parent=50 // loop_footer
                  %s240 = sadd.s32 1, %s236
                $region57: #{resblock_forward.4} parent=50 // loop_footer_branch
                  %235 = sbr.rel target = $region53
                $region58: #{resblock_forward.4} parent=50 // loop_exit
                  _
                loop: start=0, step=1, limit=1
                $region59: #{resblock_forward.4} parent=50 // loop_pre_header
                  _
                $region60: #{resblock_forward.4} parent=50 // loop_header
                  %s245 = sphi 0, %s249
                  %p246 = scmp.ge.s32.totalorder %s245, 1
                  %s250 = sphi %s185, %s185
                  %s251 = sphi %s181, %s181
                $region61: #{resblock_forward.4} parent=50 // loop_header_branch
                  %248 = sbr.rel (%p246) target = $region65
                $region62: #{resblock_forward.4} parent=50 // loop_body
                  %v252 = vld [vmem:[%s250] sm:$0xf]
                  %253 = vst [vmem:[%s251] sm:$0xf] %v252
                  %v254 = vld [vmem:[%s250 + $0x8] sm:$0xf]
                  %255 = vst [vmem:[%s251 + $0x4] sm:$0xf] %v254
                  %v256 = vld [vmem:[%s250 + $0x10] sm:$0xf]
                  %257 = vst [vmem:[%s251 + $0x8] sm:$0xf] %v256
                  %v258 = vld [vmem:[%s250 + $0x18] sm:$0xf]
                  %259 = vst [vmem:[%s251 + $0xc] sm:$0xf] %v258
                  %v260 = vld [vmem:[%s250 + $0x20] sm:$0xf]
                  %261 = vst [vmem:[%s251 + $0x10] sm:$0xf] %v260
                  %v262 = vld [vmem:[%s250 + $0x28] sm:$0xf]
                  %263 = vst [vmem:[%s251 + $0x14] sm:$0xf] %v262
                  %v264 = vld [vmem:[%s250 + $0x30] sm:$0xf]
                  %265 = vst [vmem:[%s251 + $0x18] sm:$0xf] %v264
                  %v266 = vld [vmem:[%s250 + $0x38] sm:$0xf]
                  %267 = vst [vmem:[%s251 + $0x1c] sm:$0xf] %v266
                  %v268 = vld [vmem:[%s250 + $0x40] sm:$0xf]
                  %269 = vst [vmem:[%s251 + $0x20] sm:$0xf] %v268
                  %v270 = vld [vmem:[%s250 + $0x48] sm:$0xf]
                  %271 = vst [vmem:[%s251 + $0x24] sm:$0xf] %v270
                  %v272 = vld [vmem:[%s250 + $0x50] sm:$0xf]
                  %273 = vst [vmem:[%s251 + $0x28] sm:$0xf] %v272
                  %v274 = vld [vmem:[%s250 + $0x58] sm:$0xf]
                  %275 = vst [vmem:[%s251 + $0x2c] sm:$0xf] %v274
                  %v276 = vld [vmem:[%s250 + $0x60] sm:$0xf]
                  %277 = vst [vmem:[%s251 + $0x30] sm:$0xf] %v276
                  %v278 = vld [vmem:[%s250 + $0x68] sm:$0xf]
                  %279 = vst [vmem:[%s251 + $0x34] sm:$0xf] %v278
                  %v280 = vld [vmem:[%s250 + $0x70] sm:$0xf]
                  %281 = vst [vmem:[%s251 + $0x38] sm:$0xf] %v280
                  %v282 = vld [vmem:[%s250 + $0x78] sm:$0xf]
                  %283 = vst [vmem:[%s251 + $0x3c] sm:$0xf] %v282
                $region63: #{resblock_forward.4} parent=50 // loop_footer
                  %s249 = sadd.s32 1, %s245
                $region64: #{resblock_forward.4} parent=50 // loop_footer_branch
                  %244 = sbr.rel target = $region60
                $region65: #{resblock_forward.4} parent=50 // loop_exit
                  _
              $region51: #{resblock_forward.4} parent=35 // pred_fallthru
                _
            $region36: #{resblock_forward.4} parent=31 // pred_fallthru
              _
            // Predicated region
            $region37: #{resblock_forward.4} parent=31 // pred_check
              _
            $region38: #{resblock_forward.4} parent=31 // pred_check_branch
              %191 = sbr.rel (0) target = $region40
            $region39: #{resblock_forward.4} parent=31 // pred_region
              loop: start=0, step=1, limit=1
              $region41: #{resblock_forward.4} parent=39 // loop_pre_header
                _
              $region42: #{resblock_forward.4} parent=39 // loop_header
                %s194 = sphi 0, %s198
                %p195 = scmp.ge.s32.totalorder %s194, 1
                %s199 = sphi %s185, %s185
                %s200 = sphi %s181, %s181
              $region43: #{resblock_forward.4} parent=39 // loop_header_branch
                %197 = sbr.rel (%p195) target = $region47
              $region44: #{resblock_forward.4} parent=39 // loop_body
                %v201 = vld [vmem:[%s199] sm:$0xf]
                %202 = vst [vmem:[%s200] sm:$0xf] %v201
                %v203 = vld [vmem:[%s199 + $0x8] sm:$0xf]
                %204 = vst [vmem:[%s200 + $0x4] sm:$0xf] %v203
                %v205 = vld [vmem:[%s199 + $0x10] sm:$0xf]
                %206 = vst [vmem:[%s200 + $0x8] sm:$0xf] %v205
                %v207 = vld [vmem:[%s199 + $0x18] sm:$0xf]
                %208 = vst [vmem:[%s200 + $0xc] sm:$0xf] %v207
                %v209 = vld [vmem:[%s199 + $0x20] sm:$0xf]
                %210 = vst [vmem:[%s200 + $0x10] sm:$0xf] %v209
                %v211 = vld [vmem:[%s199 + $0x28] sm:$0xf]
                %212 = vst [vmem:[%s200 + $0x14] sm:$0xf] %v211
                %v213 = vld [vmem:[%s199 + $0x30] sm:$0xf]
                %214 = vst [vmem:[%s200 + $0x18] sm:$0xf] %v213
                %v215 = vld [vmem:[%s199 + $0x38] sm:$0xf]
                %216 = vst [vmem:[%s200 + $0x1c] sm:$0xf] %v215
                %v217 = vld [vmem:[%s199 + $0x40] sm:$0xf]
                %218 = vst [vmem:[%s200 + $0x20] sm:$0xf] %v217
                %v219 = vld [vmem:[%s199 + $0x48] sm:$0xf]
                %220 = vst [vmem:[%s200 + $0x24] sm:$0xf] %v219
                %v221 = vld [vmem:[%s199 + $0x50] sm:$0xf]
                %222 = vst [vmem:[%s200 + $0x28] sm:$0xf] %v221
                %v223 = vld [vmem:[%s199 + $0x58] sm:$0xf]
                %224 = vst [vmem:[%s200 + $0x2c] sm:$0xf] %v223
                %v225 = vld [vmem:[%s199 + $0x60] sm:$0xf]
                %226 = vst [vmem:[%s200 + $0x30] sm:$0xf] %v225
                %v227 = vld [vmem:[%s199 + $0x68] sm:$0xf]
                %228 = vst [vmem:[%s200 + $0x34] sm:$0xf] %v227
                %v229 = vld [vmem:[%s199 + $0x70] sm:$0xf]
                %230 = vst [vmem:[%s200 + $0x38] sm:$0xf] %v229
                %v231 = vld [vmem:[%s199 + $0x78] sm:$0xf]
                %232 = vst [vmem:[%s200 + $0x3c] sm:$0xf] %v231
              $region45: #{resblock_forward.4} parent=39 // loop_footer
                %s198 = sadd.s32 1, %s194
              $region46: #{resblock_forward.4} parent=39 // loop_footer_branch
                %193 = sbr.rel target = $region42
              $region47: #{resblock_forward.4} parent=39 // loop_exit
                _
            $region40: #{resblock_forward.4} parent=31 // pred_fallthru
              _
          $region32: #{resblock_forward.4} parent=27 // pred_fallthru
            _
          %284 = vnop
        $region28: #{resblock_forward.4} parent=23 // pred_fallthru
          _
        // Predicated region
        $region66: #{resblock_forward.4} parent=23 // pred_check
          %p285 = pneg %p74
        $region67: #{resblock_forward.4} parent=23 // pred_check_branch
          %287 = sbr.rel (%p285) target = $region69
        $region68: #{resblock_forward.4} parent=23 // pred_region
          %s288 = sand.u32 %s64, 1
          %s289 = sand.u32 %s64, 1
          %s290 = smul.addr %s289, 64
          %s291 = scalar_lea.vmem [#allocation3], %s290
          %s292 = sadd.s32 %s18, 1
          %s293 = smul.addr %s17, 32
          %s294 = sadd.s32 %s292, %s293
          %s295 = smul.addr %s294, 4
          %s296 = scalar_lea.vmem %s1, %s295
          // Predicated region
          $region70: #{resblock_forward.4} parent=68 // pred_check
            _
          $region71: #{resblock_forward.4} parent=68 // pred_check_branch
            %298 = sbr.rel (0) target = $region73
          $region72: #{resblock_forward.4} parent=68 // pred_region
            // Predicated region
            $region74: #{resblock_forward.4} parent=72 // pred_check
              _
            $region75: #{resblock_forward.4} parent=72 // pred_check_branch
              %300 = sbr.rel target = $region77
            $region76: #{resblock_forward.4} parent=72 // pred_region
              // Predicated region
              $region89: #{resblock_forward.4} parent=76 // pred_check
                _
              $region90: #{resblock_forward.4} parent=76 // pred_check_branch
                %345 = sbr.rel (0) target = $region92
              $region91: #{resblock_forward.4} parent=76 // pred_region
                loop: start=0, step=1, limit=1
                $region93: #{resblock_forward.4} parent=91 // loop_pre_header
                  _
                $region94: #{resblock_forward.4} parent=91 // loop_header
                  %s347 = sphi 0, %s351
                  %p348 = scmp.ge.s32.totalorder %s347, 1
                  %s352 = sphi %s296, %s296
                  %s353 = sphi %s291, %s291
                $region95: #{resblock_forward.4} parent=91 // loop_header_branch
                  %350 = sbr.rel (%p348) target = $region99
                $region96: #{resblock_forward.4} parent=91 // loop_body
                  _
                $region97: #{resblock_forward.4} parent=91 // loop_footer
                  %s351 = sadd.s32 1, %s347
                $region98: #{resblock_forward.4} parent=91 // loop_footer_branch
                  %346 = sbr.rel target = $region94
                $region99: #{resblock_forward.4} parent=91 // loop_exit
                  _
                loop: start=0, step=1, limit=1
                $region100: #{resblock_forward.4} parent=91 // loop_pre_header
                  _
                $region101: #{resblock_forward.4} parent=91 // loop_header
                  %s356 = sphi 0, %s360
                  %p357 = scmp.ge.s32.totalorder %s356, 1
                  %s361 = sphi %s296, %s296
                  %s362 = sphi %s291, %s291
                $region102: #{resblock_forward.4} parent=91 // loop_header_branch
                  %359 = sbr.rel (%p357) target = $region106
                $region103: #{resblock_forward.4} parent=91 // loop_body
                  %v363 = vld [vmem:[%s361] sm:$0xf]
                  %364 = vst [vmem:[%s362] sm:$0xf] %v363
                  %v365 = vld [vmem:[%s361 + $0x8] sm:$0xf]
                  %366 = vst [vmem:[%s362 + $0x4] sm:$0xf] %v365
                  %v367 = vld [vmem:[%s361 + $0x10] sm:$0xf]
                  %368 = vst [vmem:[%s362 + $0x8] sm:$0xf] %v367
                  %v369 = vld [vmem:[%s361 + $0x18] sm:$0xf]
                  %370 = vst [vmem:[%s362 + $0xc] sm:$0xf] %v369
                  %v371 = vld [vmem:[%s361 + $0x20] sm:$0xf]
                  %372 = vst [vmem:[%s362 + $0x10] sm:$0xf] %v371
                  %v373 = vld [vmem:[%s361 + $0x28] sm:$0xf]
                  %374 = vst [vmem:[%s362 + $0x14] sm:$0xf] %v373
                  %v375 = vld [vmem:[%s361 + $0x30] sm:$0xf]
                  %376 = vst [vmem:[%s362 + $0x18] sm:$0xf] %v375
                  %v377 = vld [vmem:[%s361 + $0x38] sm:$0xf]
                  %378 = vst [vmem:[%s362 + $0x1c] sm:$0xf] %v377
                  %v379 = vld [vmem:[%s361 + $0x40] sm:$0xf]
                  %380 = vst [vmem:[%s362 + $0x20] sm:$0xf] %v379
                  %v381 = vld [vmem:[%s361 + $0x48] sm:$0xf]
                  %382 = vst [vmem:[%s362 + $0x24] sm:$0xf] %v381
                  %v383 = vld [vmem:[%s361 + $0x50] sm:$0xf]
                  %384 = vst [vmem:[%s362 + $0x28] sm:$0xf] %v383
                  %v385 = vld [vmem:[%s361 + $0x58] sm:$0xf]
                  %386 = vst [vmem:[%s362 + $0x2c] sm:$0xf] %v385
                  %v387 = vld [vmem:[%s361 + $0x60] sm:$0xf]
                  %388 = vst [vmem:[%s362 + $0x30] sm:$0xf] %v387
                  %v389 = vld [vmem:[%s361 + $0x68] sm:$0xf]
                  %390 = vst [vmem:[%s362 + $0x34] sm:$0xf] %v389
                  %v391 = vld [vmem:[%s361 + $0x70] sm:$0xf]
                  %392 = vst [vmem:[%s362 + $0x38] sm:$0xf] %v391
                  %v393 = vld [vmem:[%s361 + $0x78] sm:$0xf]
                  %394 = vst [vmem:[%s362 + $0x3c] sm:$0xf] %v393
                $region104: #{resblock_forward.4} parent=91 // loop_footer
                  %s360 = sadd.s32 1, %s356
                $region105: #{resblock_forward.4} parent=91 // loop_footer_branch
                  %355 = sbr.rel target = $region101
                $region106: #{resblock_forward.4} parent=91 // loop_exit
                  _
              $region92: #{resblock_forward.4} parent=76 // pred_fallthru
                _
            $region77: #{resblock_forward.4} parent=72 // pred_fallthru
              _
            // Predicated region
            $region78: #{resblock_forward.4} parent=72 // pred_check
              _
            $region79: #{resblock_forward.4} parent=72 // pred_check_branch
              %302 = sbr.rel (0) target = $region81
            $region80: #{resblock_forward.4} parent=72 // pred_region
              loop: start=0, step=1, limit=1
              $region82: #{resblock_forward.4} parent=80 // loop_pre_header
                _
              $region83: #{resblock_forward.4} parent=80 // loop_header
                %s305 = sphi 0, %s309
                %p306 = scmp.ge.s32.totalorder %s305, 1
                %s310 = sphi %s296, %s296
                %s311 = sphi %s291, %s291
              $region84: #{resblock_forward.4} parent=80 // loop_header_branch
                %308 = sbr.rel (%p306) target = $region88
              $region85: #{resblock_forward.4} parent=80 // loop_body
                %v312 = vld [vmem:[%s310] sm:$0xf]
                %313 = vst [vmem:[%s311] sm:$0xf] %v312
                %v314 = vld [vmem:[%s310 + $0x8] sm:$0xf]
                %315 = vst [vmem:[%s311 + $0x4] sm:$0xf] %v314
                %v316 = vld [vmem:[%s310 + $0x10] sm:$0xf]
                %317 = vst [vmem:[%s311 + $0x8] sm:$0xf] %v316
                %v318 = vld [vmem:[%s310 + $0x18] sm:$0xf]
                %319 = vst [vmem:[%s311 + $0xc] sm:$0xf] %v318
                %v320 = vld [vmem:[%s310 + $0x20] sm:$0xf]
                %321 = vst [vmem:[%s311 + $0x10] sm:$0xf] %v320
                %v322 = vld [vmem:[%s310 + $0x28] sm:$0xf]
                %323 = vst [vmem:[%s311 + $0x14] sm:$0xf] %v322
                %v324 = vld [vmem:[%s310 + $0x30] sm:$0xf]
                %325 = vst [vmem:[%s311 + $0x18] sm:$0xf] %v324
                %v326 = vld [vmem:[%s310 + $0x38] sm:$0xf]
                %327 = vst [vmem:[%s311 + $0x1c] sm:$0xf] %v326
                %v328 = vld [vmem:[%s310 + $0x40] sm:$0xf]
                %329 = vst [vmem:[%s311 + $0x20] sm:$0xf] %v328
                %v330 = vld [vmem:[%s310 + $0x48] sm:$0xf]
                %331 = vst [vmem:[%s311 + $0x24] sm:$0xf] %v330
                %v332 = vld [vmem:[%s310 + $0x50] sm:$0xf]
                %333 = vst [vmem:[%s311 + $0x28] sm:$0xf] %v332
                %v334 = vld [vmem:[%s310 + $0x58] sm:$0xf]
                %335 = vst [vmem:[%s311 + $0x2c] sm:$0xf] %v334
                %v336 = vld [vmem:[%s310 + $0x60] sm:$0xf]
                %337 = vst [vmem:[%s311 + $0x30] sm:$0xf] %v336
                %v338 = vld [vmem:[%s310 + $0x68] sm:$0xf]
                %339 = vst [vmem:[%s311 + $0x34] sm:$0xf] %v338
                %v340 = vld [vmem:[%s310 + $0x70] sm:$0xf]
                %341 = vst [vmem:[%s311 + $0x38] sm:$0xf] %v340
                %v342 = vld [vmem:[%s310 + $0x78] sm:$0xf]
                %343 = vst [vmem:[%s311 + $0x3c] sm:$0xf] %v342
              $region86: #{resblock_forward.4} parent=80 // loop_footer
                %s309 = sadd.s32 1, %s305
              $region87: #{resblock_forward.4} parent=80 // loop_footer_branch
                %304 = sbr.rel target = $region83
              $region88: #{resblock_forward.4} parent=80 // loop_exit
                _
            $region81: #{resblock_forward.4} parent=72 // pred_fallthru
              _
          $region73: #{resblock_forward.4} parent=68 // pred_fallthru
            _
          %395 = vnop
        $region69: #{resblock_forward.4} parent=23 // pred_fallthru
          _
      $region24: #{resblock_forward.4} parent=5 // pred_fallthru
        _
      %p396 = scmp.le.s32.totalorder 1, %s10
      %p397 = scmp.lt.s32.totalorder %s10, 3
      %p398 = pnand %p396, %p397
      %p399 = pneg %p398
      // Predicated region
      $region107: #{resblock_forward.4} parent=5 // pred_check
        _
      $region108: #{resblock_forward.4} parent=5 // pred_check_branch
        %401 = sbr.rel (%p398) target = $region110
      $region109: #{resblock_forward.4} parent=5 // pred_region
        %s402 = ssub.s32 %s10, 1
        %s403 = sand.u32 %s37, 1
        %s404 = sand.u32 %s37, 1
        %s405 = smul.addr %s404, 64
        %s406 = scalar_lea.vmem [#allocation2], %s405
        // Predicated region
        $region111: #{resblock_forward.4} parent=109 // pred_check
          %p407 = pneg %p50
        $region112: #{resblock_forward.4} parent=109 // pred_check_branch
          %409 = sbr.rel (%p407) target = $region114
        $region113: #{resblock_forward.4} parent=109 // pred_region
          _
        $region114: #{resblock_forward.4} parent=109 // pred_fallthru
          _
        %s410 = sand.u32 %s67, 1
        %s411 = sand.u32 %s67, 1
        %s412 = smul.addr %s411, 64
        %s413 = scalar_lea.vmem [#allocation3], %s412
        // Predicated region
        $region115: #{resblock_forward.4} parent=109 // pred_check
          %p414 = pneg %p80
        $region116: #{resblock_forward.4} parent=109 // pred_check_branch
          %416 = sbr.rel (%p414) target = $region118
        $region117: #{resblock_forward.4} parent=109 // pred_region
          _
        $region118: #{resblock_forward.4} parent=109 // pred_fallthru
          _
        %s417 = sand.u32 %s37, 1
        %s418 = sand.u32 %s37, 1
        %s419 = smul.addr %s418, 64
        %s420 = scalar_lea.vmem [#allocation2], %s419
        %p421 = pneg %p50
        %p422 = pneg %p47
        %s423 = sand.u32 %s67, 1
        %s424 = sand.u32 %s67, 1
        %s425 = smul.addr %s424, 64
        %s426 = scalar_lea.vmem [#allocation3], %s425
        %p427 = pneg %p80
        %p428 = pneg %p77
        %p429 = pneg %p101
        %p430 = pneg %p98
        %p431 = pneg %p122
        %p432 = pneg %p119
        %p433 = pneg %p150
        %p434 = pneg %p147
        %p435 = scmp.lt.s32.totalorder %s19, 1
        %s436 = scalar_select %p435, %s19, 1
        %p437 = scmp.lt.s32.totalorder %s20, 0
        %s438 = scalar_select %p437, %s20, 0
        %s439 = smul.addr %s436, 8
        %s440 = sadd.s32 %s438, %s439
        %s441 = smul.addr %s440, 8
        %s442 = scalar_lea.vmem %s4, %s441
        %s443 = sadd.s32 %s20, 1
        %p444 = scmp.lt.s32.totalorder %s19, 1
        %s445 = scalar_select %p444, %s19, 1
        %p446 = scmp.lt.s32.totalorder %s20, 0
        %s447 = scalar_select %p446, %s20, 0
        %s448 = smul.addr %s445, 8
        %s449 = sadd.s32 %s447, %s448
        %s450 = smul.addr %s449, 8
        %s451 = scalar_lea.vmem %s4, %s450
        %v453 = vld [vmem:[%s406] sm:$0xf]
        %v454 = vld [vmem:[%s406 + $0x4] sm:$0xf]
        %v455 = vld [vmem:[%s406 + $0x8] sm:$0xf]
        %v456 = vld [vmem:[%s406 + $0xc] sm:$0xf]
        %v457 = vld [vmem:[%s406 + $0x10] sm:$0xf]
        %v458 = vld [vmem:[%s406 + $0x14] sm:$0xf]
        %v459 = vld [vmem:[%s406 + $0x18] sm:$0xf]
        %v460 = vld [vmem:[%s406 + $0x1c] sm:$0xf]
        %v461 = vld [vmem:[%s406 + $0x20] sm:$0xf]
        %v462 = vld [vmem:[%s406 + $0x24] sm:$0xf]
        %v463 = vld [vmem:[%s406 + $0x28] sm:$0xf]
        %v464 = vld [vmem:[%s406 + $0x2c] sm:$0xf]
        %v465 = vld [vmem:[%s406 + $0x30] sm:$0xf]
        %v466 = vld [vmem:[%s406 + $0x34] sm:$0xf]
        %v467 = vld [vmem:[%s406 + $0x38] sm:$0xf]
        %v468 = vld [vmem:[%s406 + $0x3c] sm:$0xf]
        %v469 = vld [vmem:[%s413] sm:$0xf]
        %v470 = vld [vmem:[%s413 + $0x4] sm:$0xf]
        %v471 = vld [vmem:[%s413 + $0x8] sm:$0xf]
        %v472 = vld [vmem:[%s413 + $0xc] sm:$0xf]
        %v473 = vld [vmem:[%s413 + $0x10] sm:$0xf]
        %v474 = vld [vmem:[%s413 + $0x14] sm:$0xf]
        %v475 = vld [vmem:[%s413 + $0x18] sm:$0xf]
        %v476 = vld [vmem:[%s413 + $0x1c] sm:$0xf]
        %v477 = vld [vmem:[%s413 + $0x20] sm:$0xf]
        %v478 = vld [vmem:[%s413 + $0x24] sm:$0xf]
        %v479 = vld [vmem:[%s413 + $0x28] sm:$0xf]
        %v480 = vld [vmem:[%s413 + $0x2c] sm:$0xf]
        %v481 = vld [vmem:[%s413 + $0x30] sm:$0xf]
        %v482 = vld [vmem:[%s413 + $0x34] sm:$0xf]
        %v483 = vld [vmem:[%s413 + $0x38] sm:$0xf]
        %v484 = vld [vmem:[%s413 + $0x3c] sm:$0xf]
        %v501 = vunpack.c.l.b16 %v453
        %v502 = vunpack.c.l.b16 %v454
        %v503 = vunpack.c.l.b16 %v455
        %v504 = vunpack.c.l.b16 %v456
        %v505 = vunpack.c.l.b16 %v457
        %v506 = vunpack.c.l.b16 %v458
        %v507 = vunpack.c.l.b16 %v459
        %v508 = vunpack.c.l.b16 %v460
        %v509 = vunpack.c.l.b16 %v461
        %v510 = vunpack.c.l.b16 %v462
        %v511 = vunpack.c.l.b16 %v463
        %v512 = vunpack.c.l.b16 %v464
        %v513 = vunpack.c.l.b16 %v465
        %v514 = vunpack.c.l.b16 %v466
        %v515 = vunpack.c.l.b16 %v467
        %v516 = vunpack.c.l.b16 %v468
        %v517 = vpack.c.b16 %v502, %v501
        %v518 = vpack.c.b16 %v504, %v503
        %v519 = vpack.c.b16 %v506, %v505
        %v520 = vpack.c.b16 %v508, %v507
        %v521 = vpack.c.b16 %v510, %v509
        %v522 = vpack.c.b16 %v512, %v511
        %v523 = vpack.c.b16 %v514, %v513
        %v524 = vpack.c.b16 %v516, %v515
        %v549 = vunpack.c.l.b16 %v469
        %v550 = vunpack.c.l.b16 %v470
        %v551 = vunpack.c.l.b16 %v471
        %v552 = vunpack.c.l.b16 %v472
        %v553 = vunpack.c.l.b16 %v473
        %v554 = vunpack.c.l.b16 %v474
        %v555 = vunpack.c.l.b16 %v475
        %v556 = vunpack.c.l.b16 %v476
        %v557 = vunpack.c.l.b16 %v477
        %v558 = vunpack.c.l.b16 %v478
        %v559 = vunpack.c.l.b16 %v479
        %v560 = vunpack.c.l.b16 %v480
        %v561 = vunpack.c.l.b16 %v481
        %v562 = vunpack.c.l.b16 %v482
        %v563 = vunpack.c.l.b16 %v483
        %v564 = vunpack.c.l.b16 %v484
        %v565 = vpack.c.b16 %v550, %v549
        %v566 = vpack.c.b16 %v552, %v551
        %v567 = vpack.c.b16 %v554, %v553
        %v568 = vpack.c.b16 %v556, %v555
        %v569 = vpack.c.b16 %v558, %v557
        %v570 = vpack.c.b16 %v560, %v559
        %v571 = vpack.c.b16 %v562, %v561
        %v572 = vpack.c.b16 %v564, %v563
        %573 = vrot.lane.b32.xlu0 %v517, 127
        %v574 = vpop.permute.xlu0 %573
        %575 = vrot.lane.b32.xlu0 %v565, 127
        %v576 = vpop.permute.xlu0 %575
        %577 = vrot.lane.b32.xlu0 %v518, 127
        %v578 = vpop.permute.xlu0 %577
        %579 = vrot.lane.b32.xlu0 %v566, 127
        %v580 = vpop.permute.xlu0 %579
        %581 = vrot.lane.b32.xlu0 %v519, 127
        %v582 = vpop.permute.xlu0 %581
        %583 = vrot.lane.b32.xlu0 %v567, 127
        %v584 = vpop.permute.xlu0 %583
        %585 = vrot.lane.b32.xlu0 %v520, 127
        %v586 = vpop.permute.xlu0 %585
        %587 = vrot.lane.b32.xlu0 %v568, 127
        %v588 = vpop.permute.xlu0 %587
        %589 = vrot.lane.b32.xlu0 %v521, 127
        %v590 = vpop.permute.xlu0 %589
        %591 = vrot.lane.b32.xlu0 %v569, 127
        %v592 = vpop.permute.xlu0 %591
        %593 = vrot.lane.b32.xlu0 %v522, 127
        %v594 = vpop.permute.xlu0 %593
        %595 = vrot.lane.b32.xlu0 %v570, 127
        %v596 = vpop.permute.xlu0 %595
        %597 = vrot.lane.b32.xlu0 %v523, 127
        %v598 = vpop.permute.xlu0 %597
        %599 = vrot.lane.b32.xlu0 %v571, 127
        %v600 = vpop.permute.xlu0 %599
        %601 = vrot.lane.b32.xlu0 %v524, 127
        %v602 = vpop.permute.xlu0 %601
        %603 = vrot.lane.b32.xlu0 %v572, 127
        %v604 = vpop.permute.xlu0 %603
        %vm605 = vcmask 1039360
        %v606 = vsel %vm605, %v574, %v576
        %v607 = vsel %vm605, %v578, %v580
        %v608 = vsel %vm605, %v582, %v584
        %v609 = vsel %vm605, %v586, %v588
        %v610 = vsel %vm605, %v590, %v592
        %v611 = vsel %vm605, %v594, %v596
        %v612 = vsel %vm605, %v598, %v600
        %v613 = vsel %vm605, %v602, %v604
        %622 = vrot.lane.b32.xlu0 %v517, 118
        %v623 = vpop.permute.xlu0 %622
        %624 = vrot.lane.b32.xlu0 %v565, 118
        %v625 = vpop.permute.xlu0 %624
        %626 = vrot.lane.b32.xlu0 %v518, 118
        %v627 = vpop.permute.xlu0 %626
        %628 = vrot.lane.b32.xlu0 %v566, 118
        %v629 = vpop.permute.xlu0 %628
        %630 = vrot.lane.b32.xlu0 %v519, 118
        %v631 = vpop.permute.xlu0 %630
        %632 = vrot.lane.b32.xlu0 %v567, 118
        %v633 = vpop.permute.xlu0 %632
        %634 = vrot.lane.b32.xlu0 %v520, 118
        %v635 = vpop.permute.xlu0 %634
        %636 = vrot.lane.b32.xlu0 %v568, 118
        %v637 = vpop.permute.xlu0 %636
        %638 = vrot.lane.b32.xlu0 %v521, 118
        %v639 = vpop.permute.xlu0 %638
        %640 = vrot.lane.b32.xlu0 %v569, 118
        %v641 = vpop.permute.xlu0 %640
        %642 = vrot.lane.b32.xlu0 %v522, 118
        %v643 = vpop.permute.xlu0 %642
        %644 = vrot.lane.b32.xlu0 %v570, 118
        %v645 = vpop.permute.xlu0 %644
        %646 = vrot.lane.b32.xlu0 %v523, 118
        %v647 = vpop.permute.xlu0 %646
        %648 = vrot.lane.b32.xlu0 %v571, 118
        %v649 = vpop.permute.xlu0 %648
        %650 = vrot.lane.b32.xlu0 %v524, 118
        %v651 = vpop.permute.xlu0 %650
        %652 = vrot.lane.b32.xlu0 %v572, 118
        %v653 = vpop.permute.xlu0 %652
        %vm654 = vcmask 965632
        %v655 = vsel %vm654, %v623, %v625
        %v656 = vsel %vm654, %v627, %v629
        %v657 = vsel %vm654, %v631, %v633
        %v658 = vsel %vm654, %v635, %v637
        %v659 = vsel %vm654, %v639, %v641
        %v660 = vsel %vm654, %v643, %v645
        %v661 = vsel %vm654, %v647, %v649
        %v662 = vsel %vm654, %v651, %v653
        %671 = vrot.lane.b32.xlu0 %v517, 117
        %v672 = vpop.permute.xlu0 %671
        %673 = vrot.lane.b32.xlu0 %v565, 117
        %v674 = vpop.permute.xlu0 %673
        %675 = vrot.lane.b32.xlu0 %v518, 117
        %v676 = vpop.permute.xlu0 %675
        %677 = vrot.lane.b32.xlu0 %v566, 117
        %v678 = vpop.permute.xlu0 %677
        %679 = vrot.lane.b32.xlu0 %v519, 117
        %v680 = vpop.permute.xlu0 %679
        %681 = vrot.lane.b32.xlu0 %v567, 117
        %v682 = vpop.permute.xlu0 %681
        %683 = vrot.lane.b32.xlu0 %v520, 117
        %v684 = vpop.permute.xlu0 %683
        %685 = vrot.lane.b32.xlu0 %v568, 117
        %v686 = vpop.permute.xlu0 %685
        %687 = vrot.lane.b32.xlu0 %v521, 117
        %v688 = vpop.permute.xlu0 %687
        %689 = vrot.lane.b32.xlu0 %v569, 117
        %v690 = vpop.permute.xlu0 %689
        %691 = vrot.lane.b32.xlu0 %v522, 117
        %v692 = vpop.permute.xlu0 %691
        %693 = vrot.lane.b32.xlu0 %v570, 117
        %v694 = vpop.permute.xlu0 %693
        %695 = vrot.lane.b32.xlu0 %v523, 117
        %v696 = vpop.permute.xlu0 %695
        %697 = vrot.lane.b32.xlu0 %v571, 117
        %v698 = vpop.permute.xlu0 %697
        %699 = vrot.lane.b32.xlu0 %v524, 117
        %v700 = vpop.permute.xlu0 %699
        %701 = vrot.lane.b32.xlu0 %v572, 117
        %v702 = vpop.permute.xlu0 %701
        %vm703 = vcmask 957440
        %v704 = vsel %vm703, %v672, %v674
        %v705 = vsel %vm703, %v676, %v678
        %v706 = vsel %vm703, %v680, %v682
        %v707 = vsel %vm703, %v684, %v686
        %v708 = vsel %vm703, %v688, %v690
        %v709 = vsel %vm703, %v692, %v694
        %v710 = vsel %vm703, %v696, %v698
        %v711 = vsel %vm703, %v700, %v702
        %v720 = vld [vmem:[%s2] sm:$0xff]
        %v721 = vld [vmem:[%s2 + $0x8] sm:$0xff]
        %v722 = vld [vmem:[%s2 + $0x10] sm:$0xff]
        %v723 = vld [vmem:[%s2 + $0x18] sm:$0xff]
        %v724 = vld [vmem:[%s2 + $0x20] sm:$0xff]
        %v725 = vld [vmem:[%s2 + $0x28] sm:$0xff]
        %v726 = vld [vmem:[%s2 + $0x30] sm:$0xff]
        %v727 = vld [vmem:[%s2 + $0x38] sm:$0xff]
        %v728 = vld [vmem:[%s2 + $0x40] sm:$0xff]
        %v729 = vld [vmem:[%s2 + $0x48] sm:$0xff]
        %v730 = vld [vmem:[%s2 + $0x50] sm:$0xff]
        %v731 = vld [vmem:[%s2 + $0x58] sm:$0xff]
        %v732 = vld [vmem:[%s2 + $0x60] sm:$0xff]
        %v733 = vld [vmem:[%s2 + $0x68] sm:$0xff]
        %v734 = vld [vmem:[%s2 + $0x70] sm:$0xff]
        %v735 = vld [vmem:[%s2 + $0x78] sm:$0xff]
        %v752 = vunpack.c.l.b16 %v720
        %v753 = vunpack.c.h.b16 %v720
        %v754 = vunpack.c.l.b16 %v721
        %v755 = vunpack.c.h.b16 %v721
        %v756 = vunpack.c.l.b16 %v722
        %v757 = vunpack.c.h.b16 %v722
        %v758 = vunpack.c.l.b16 %v723
        %v759 = vunpack.c.h.b16 %v723
        %v760 = vunpack.c.l.b16 %v724
        %v761 = vunpack.c.h.b16 %v724
        %v762 = vunpack.c.l.b16 %v725
        %v763 = vunpack.c.h.b16 %v725
        %v764 = vunpack.c.l.b16 %v726
        %v765 = vunpack.c.h.b16 %v726
        %v766 = vunpack.c.l.b16 %v727
        %v767 = vunpack.c.h.b16 %v727
        %v768 = vunpack.c.l.b16 %v728
        %v769 = vunpack.c.h.b16 %v728
        %v770 = vunpack.c.l.b16 %v729
        %v771 = vunpack.c.h.b16 %v729
        %v772 = vunpack.c.l.b16 %v730
        %v773 = vunpack.c.h.b16 %v730
        %v774 = vunpack.c.l.b16 %v731
        %v775 = vunpack.c.h.b16 %v731
        %v776 = vunpack.c.l.b16 %v732
        %v777 = vunpack.c.h.b16 %v732
        %v778 = vunpack.c.l.b16 %v733
        %v779 = vunpack.c.h.b16 %v733
        %v780 = vunpack.c.l.b16 %v734
        %v781 = vunpack.c.h.b16 %v734
        %v782 = vunpack.c.l.b16 %v735
        %v783 = vunpack.c.h.b16 %v735
        %v784 = vpack.c.b16 %v756, %v752
        %v785 = vpack.c.b16 %v757, %v753
        %v786 = vpack.c.b16 %v758, %v754
        %v787 = vpack.c.b16 %v759, %v755
        %v788 = vpack.c.b16 %v764, %v760
        %v789 = vpack.c.b16 %v765, %v761
        %v790 = vpack.c.b16 %v766, %v762
        %v791 = vpack.c.b16 %v767, %v763
        %v792 = vpack.c.b16 %v772, %v768
        %v793 = vpack.c.b16 %v773, %v769
        %v794 = vpack.c.b16 %v774, %v770
        %v795 = vpack.c.b16 %v775, %v771
        %v796 = vpack.c.b16 %v780, %v776
        %v797 = vpack.c.b16 %v781, %v777
        %v798 = vpack.c.b16 %v782, %v778
        %v799 = vpack.c.b16 %v783, %v779
        %816 = vmatprep.subr.bf16.mxu0 0
        %817 = vmatpush1.bf16.msra.mxu0 %v517
        %818 = vmatprep.subr.bf16.mxu0 0
        %819 = vmatpush1.bf16.msra.mxu0 %v518
        %820 = vmatprep.subr.bf16.mxu0 0
        %821 = vmatpush1.bf16.msra.mxu0 %v519
        %822 = vmatprep.subr.bf16.mxu0 0
        %823 = vmatpush1.bf16.msra.mxu0 %v520
        %824 = vmatprep.subr.bf16.mxu0 0
        %825 = vmatpush1.bf16.msra.mxu0 %v521
        %826 = vmatprep.subr.bf16.mxu0 0
        %827 = vmatpush1.bf16.msra.mxu0 %v522
        %828 = vmatprep.subr.bf16.mxu0 0
        %829 = vmatpush1.bf16.msra.mxu0 %v523
        %830 = vmatprep.subr.bf16.mxu0 0
        %831 = vmatpush1.bf16.msra.mxu0 %v524
        %832 = vmatprep.subr.bf16.mxu0 0
        %833 = vmatpush1.bf16.msra.mxu0 %v606
        %834 = vmatprep.subr.bf16.mxu0 0
        %835 = vmatpush1.bf16.msra.mxu0 %v607
        %836 = vmatprep.subr.bf16.mxu0 0
        %837 = vmatpush1.bf16.msra.mxu0 %v608
        %838 = vmatprep.subr.bf16.mxu0 0
        %839 = vmatpush1.bf16.msra.mxu0 %v609
        %840 = vmatprep.subr.bf16.mxu0 0
        %841 = vmatpush1.bf16.msra.mxu0 %v610
        %842 = vmatprep.subr.bf16.mxu0 0
        %843 = vmatpush1.bf16.msra.mxu0 %v611
        %844 = vmatprep.subr.bf16.mxu0 0
        %845 = vmatpush1.bf16.msra.mxu0 %v612
        %846 = vmatprep.subr.bf16.mxu0 0
        %847 = vmatpush1.bf16.msra.mxu0 %v613
        %848 = vmatprep.mubr.bf16.mxu0 %v785
        %849 = vmatmul.mubr.bf16.gmra.mrb[0].mxu0 %v784
        %v850 = vpop.f32.mrb[0].mxu0
        %v851 = vadd.f32 0.0, %v850
        %v852 = vpop.f32.mrb[0].mxu0
        %v853 = vpop.f32.mrb[0].mxu0
        %v854 = vadd.f32 0.0, %v853
        %v855 = vpop.f32.mrb[0].mxu0
        %856 = vmatprep.mubr.bf16.mxu0 %v789
        %857 = vmatmul.mubr.bf16.gmra.mrb[0].mxu0 %v788
        %v858 = vpop.f32.mrb[0].mxu0
        %v859 = vadd.f32 0.0, %v858
        %v860 = vpop.f32.mrb[0].mxu0
        %v861 = vpop.f32.mrb[0].mxu0
        %v862 = vadd.f32 0.0, %v861
        %v863 = vpop.f32.mrb[0].mxu0
        %864 = vmatprep.mubr.bf16.mxu0 %v793
        %865 = vmatmul.mubr.bf16.gmra.mrb[0].mxu0 %v792
        %v866 = vpop.f32.mrb[0].mxu0
        %v867 = vadd.f32 0.0, %v866
        %v868 = vpop.f32.mrb[0].mxu0
        %v869 = vpop.f32.mrb[0].mxu0
        %v870 = vadd.f32 0.0, %v869
        %v871 = vpop.f32.mrb[0].mxu0
        %872 = vmatprep.mubr.bf16.mxu0 %v797
        %873 = vmatmul.mubr.bf16.gmra.mrb[0].mxu0 %v796
        %v874 = vpop.f32.mrb[0].mxu0
        %v875 = vadd.f32 0.0, %v874
        %v876 = vpop.f32.mrb[0].mxu0
        %v877 = vpop.f32.mrb[0].mxu0
        %v878 = vadd.f32 0.0, %v877
        %v879 = vpop.f32.mrb[0].mxu0
        %880 = vdwg.mxu0
        %881 = vmatprep.subr.bf16.mxu0 0
        %882 = vmatpush1.bf16.msra.mxu0 %v655
        %883 = vmatprep.subr.bf16.mxu0 0
        %884 = vmatpush1.bf16.msra.mxu0 %v656
        %885 = vmatprep.subr.bf16.mxu0 0
        %886 = vmatpush1.bf16.msra.mxu0 %v657
        %887 = vmatprep.subr.bf16.mxu0 0
        %888 = vmatpush1.bf16.msra.mxu0 %v658
        %889 = vmatprep.subr.bf16.mxu0 0
        %890 = vmatpush1.bf16.msra.mxu0 %v659
        %891 = vmatprep.subr.bf16.mxu0 0
        %892 = vmatpush1.bf16.msra.mxu0 %v660
        %893 = vmatprep.subr.bf16.mxu0 0
        %894 = vmatpush1.bf16.msra.mxu0 %v661
        %895 = vmatprep.subr.bf16.mxu0 0
        %896 = vmatpush1.bf16.msra.mxu0 %v662
        %897 = vmatprep.subr.bf16.mxu0 0
        %898 = vmatpush1.bf16.msra.mxu0 %v704
        %899 = vmatprep.subr.bf16.mxu0 0
        %900 = vmatpush1.bf16.msra.mxu0 %v705
        %901 = vmatprep.subr.bf16.mxu0 0
        %902 = vmatpush1.bf16.msra.mxu0 %v706
        %903 = vmatprep.subr.bf16.mxu0 0
        %904 = vmatpush1.bf16.msra.mxu0 %v707
        %905 = vmatprep.subr.bf16.mxu0 0
        %906 = vmatpush1.bf16.msra.mxu0 %v708
        %907 = vmatprep.subr.bf16.mxu0 0
        %908 = vmatpush1.bf16.msra.mxu0 %v709
        %909 = vmatprep.subr.bf16.mxu0 0
        %910 = vmatpush1.bf16.msra.mxu0 %v710
        %911 = vmatprep.subr.bf16.mxu0 0
        %912 = vmatpush1.bf16.msra.mxu0 %v711
        %913 = vmatprep.mubr.bf16.mxu0 %v787
        %914 = vmatmul.mubr.bf16.gmra.mrb[0].mxu0 %v786
        %v915 = vpop.f32.mrb[0].mxu0
        %v916 = vadd.f32 %v851, %v915
        %v917 = vpop.f32.mrb[0].mxu0
        %v918 = vpop.f32.mrb[0].mxu0
        %v919 = vadd.f32 %v854, %v918
        %v920 = vpop.f32.mrb[0].mxu0
        %921 = vmatprep.mubr.bf16.mxu0 %v791
        %922 = vmatmul.mubr.bf16.gmra.mrb[0].mxu0 %v790
        %v923 = vpop.f32.mrb[0].mxu0
        %v924 = vadd.f32 %v859, %v923
        %v925 = vpop.f32.mrb[0].mxu0
        %v926 = vpop.f32.mrb[0].mxu0
        %v927 = vadd.f32 %v862, %v926
        %v928 = vpop.f32.mrb[0].mxu0
        %929 = vmatprep.mubr.bf16.mxu0 %v795
        %930 = vmatmul.mubr.bf16.gmra.mrb[0].mxu0 %v794
        %v931 = vpop.f32.mrb[0].mxu0
        %v932 = vadd.f32 %v867, %v931
        %v933 = vpop.f32.mrb[0].mxu0
        %v934 = vpop.f32.mrb[0].mxu0
        %v935 = vadd.f32 %v870, %v934
        %v936 = vpop.f32.mrb[0].mxu0
        %937 = vmatprep.mubr.bf16.mxu0 %v799
        %938 = vmatmul.mubr.bf16.gmra.mrb[0].mxu0 %v798
        %v939 = vpop.f32.mrb[0].mxu0
        %v940 = vadd.f32 %v875, %v939
        %v941 = vpop.f32.mrb[0].mxu0
        %v942 = vpop.f32.mrb[0].mxu0
        %v943 = vadd.f32 %v878, %v942
        %v944 = vpop.f32.mrb[0].mxu0
        %945 = vdwg.mxu0
        %946 = vst [vmem:[%s451] sm:$0xff] %v916
        %947 = vst [vmem:[%s451 + $0x8] sm:$0xff] %v919
        %948 = vst [vmem:[%s451 + $0x10] sm:$0xff] %v924
        %949 = vst [vmem:[%s451 + $0x18] sm:$0xff] %v927
        %950 = vst [vmem:[%s451 + $0x20] sm:$0xff] %v932
        %951 = vst [vmem:[%s451 + $0x28] sm:$0xff] %v935
        %952 = vst [vmem:[%s451 + $0x30] sm:$0xff] %v940
        %953 = vst [vmem:[%s451 + $0x38] sm:$0xff] %v943
        %p954 = scmp.lt.s32.totalorder %s19, 1
        %s955 = scalar_select %p954, %s19, 1
        %p956 = scmp.lt.s32.totalorder %s20, 0
        %s957 = scalar_select %p956, %s20, 0
        %s958 = smul.addr %s955, 8
        %s959 = sadd.s32 %s957, %s958
        %s960 = smul.addr %s959, 8
        %s961 = scalar_lea.vmem %s4, %s960
        // Predicated region
        $region119: #{resblock_forward.4} parent=109 // pred_check
          %p962 = pneg %p147
        $region120: #{resblock_forward.4} parent=109 // pred_check_branch
          %964 = sbr.rel (%p962) target = $region122
        $region121: #{resblock_forward.4} parent=109 // pred_region
          _
        $region122: #{resblock_forward.4} parent=109 // pred_fallthru
          _
      $region110: #{resblock_forward.4} parent=5 // pred_fallthru
        _
      %p965 = scmp.le.s32.totalorder 2, %s10
      // Predicated region
      $region123: #{resblock_forward.4} parent=5 // pred_check
        %p966 = pneg %p965
      $region124: #{resblock_forward.4} parent=5 // pred_check_branch
        %968 = sbr.rel (%p966) target = $region126
      $region125: #{resblock_forward.4} parent=5 // pred_region
        %s969 = ssub.s32 %s10, 2
        // Predicated region
        $region127: #{resblock_forward.4} parent=125 // pred_check
          %p970 = pneg %p153
        $region128: #{resblock_forward.4} parent=125 // pred_check_branch
          %972 = sbr.rel (%p970) target = $region130
        $region129: #{resblock_forward.4} parent=125 // pred_region
          %p973 = scmp.lt.s32.totalorder %s21, 1
          %s974 = scalar_select %p973, %s21, 1
          %p975 = scmp.lt.s32.totalorder %s22, 0
          %s976 = scalar_select %p975, %s22, 0
          %s977 = smul.addr %s974, 8
          %s978 = sadd.s32 %s976, %s977
          %s979 = smul.addr %s978, 8
          %s980 = scalar_lea.vmem %s4, %s979
        $region130: #{resblock_forward.4} parent=125 // pred_fallthru
          _
      $region126: #{resblock_forward.4} parent=5 // pred_fallthru
        _
    $region6: #{resblock_forward.4} parent=1 // loop_footer
      %s14 = sadd.s32 1, %s10
    $region7: #{resblock_forward.4} parent=1 // loop_footer_branch
      %9 = sbr.rel target = $region3
    $region8: #{resblock_forward.4} parent=1 // loop_exit
      _

// kernel: resblock_forward.3
$region0: #{resblock_forward.3}
  #allocation0 [shape = 'u32[]', space=smem, size = 0x4, offset = 0x4, fixed_abs, tag = 'smem constant byte address 0x4 - core index']
  #allocation1 [shape = 'u32[144,128]{1,0:T(1,128)}', space=vmem, size = 0x12000, scoped, tag = 'internal scratch']
  %s0 = inlined_call_operand.vmem [shape: bf16[2,32,512], index: 0, kind: input, shape index: {}, may-alias: {0,1}]
  %s1 = inlined_call_operand.vmem [shape: bf16[2,32,512], index: 1, kind: input, shape index: {}, may-alias: {0,1}]
  %s2 = inlined_call_operand.vmem [shape: bf16[32,288], index: 2, kind: input, shape index: {}]
  %s3 = inlined_call_operand.vmem [shape: f32[32,1], index: 3, kind: input, shape index: {}]
  %s4 = inlined_call_operand.vmem [shape: bf16[2,32,384], index: 4, kind: output, shape index: {}]
  %s5 = sld [smem:[#allocation0]]
  $region156: #{resblock_forward.3} parent=0
    _
  %s7 = ssub.s32 1, %s5
  %s8 = scalar_select 0, %s7, %s5
  $region1: #{resblock_forward.3} parent=0
    #allocation2 [shape = 'u8[49152]{0}', space=vmem, size = 0xc000, scoped, tag = 'input window, operand 0']
    #allocation3 [shape = 'u8[16384]{0}', space=vmem, size = 0x4000, scoped, tag = 'input window, operand 1']
    loop: start=0, step=1, limit=4
    $region2: #{resblock_forward.3} parent=1 // loop_pre_header
      _
    $region3: #{resblock_forward.3} parent=1 // loop_header
      %s10 = sphi 0, %s14
      %p11 = scmp.ge.s32.totalorder %s10, 4
      %s17 = sphi 0, %s29
      %s18 = sphi 0, %s25
      %s19 = sphi 0, %s17
      %s20 = sphi 0, %s18
      %s21 = sphi 0, %s19
      %s22 = sphi 0, %s20
      %s34 = sphi 0, %s36
      %s37 = sphi 0, %s34
      %s38 = sphi 0, %s37
      %s54 = sphi 0, %s38
      %s66 = sphi 0, %s68
      %s69 = sphi 0, %s66
      %s70 = sphi 0, %s69
      %s86 = sphi 0, %s70
      %s90 = sphi 0, %s90
      %s92 = sphi 0, %s90
      %s93 = sphi 0, %s92
      %s107 = sphi 0, %s93
      %s111 = sphi 0, %s111
      %s113 = sphi 0, %s111
      %s114 = sphi 0, %s113
      %s128 = sphi 0, %s114
      %s136 = sphi 0, %s138
      %s139 = sphi 0, %s136
      %s140 = sphi 0, %s139
      %s156 = sphi 0, %s140
    $region4: #{resblock_forward.3} parent=1 // loop_header_branch
      %13 = sbr.rel (%p11) target = $region8
    $region5: #{resblock_forward.3} parent=1 // loop_body
      %s15 = ssub.s32 %s10, 1
      %s16 = ssub.s32 %s10, 2
      %s23 = sadd.s32 1, %s18
      %p24 = scmp.ge.s32.totalorder %s23, 1
      %s25 = scalar_select %p24, 0, %s23
      %s26 = sadd.s32 1, %s17
      %s27 = scalar_select %p24, %s26, %s17
      %p28 = scmp.ge.s32.totalorder %s27, 2
      %s29 = scalar_select %p28, 0, %s27
      %s30 = ssub.s32 %s17, %s29
      %s31 = ssub.s32 %s18, %s25
      %s32 = sor.u32 %s30, %s31
      %p33 = scmp.eq.s32.totalorder %s32, 0
      %s35 = sadd.s32 %s34, 1
      %s36 = scalar_select %p33, %s34, %s35
      %p39 = pneg %p33
      %p40 = scmp.eq.s32.totalorder %s10, 1
      %p41 = por %p39, %p40
      %p42 = scmp.ne.s32.totalorder %s34, %s37
      %p43 = scmp.eq.s32.totalorder %s10, 0
      %p44 = por %p42, %p43
      %p45 = scmp.ne.s32.totalorder %s34, %s37
      %p46 = scmp.eq.s32.totalorder %s15, 1
      %p47 = por %p45, %p46
      %p48 = scmp.ne.s32.totalorder %s37, %s38
      %p49 = scmp.eq.s32.totalorder %s15, 0
      %p50 = por %p48, %p49
      %p51 = scmp.ne.s32.totalorder %s37, %s38
      %p52 = scmp.eq.s32.totalorder %s16, 1
      %p53 = por %p51, %p52
      %p55 = scmp.ne.s32.totalorder %s38, %s54
      %p56 = scmp.eq.s32.totalorder %s16, 0
      %p57 = por %p55, %p56
      %s58 = sadd.s32 %s18, 1
      %s59 = smul.u32 %s58, 3
      %s60 = sadd.s32 %s25, 1
      %s61 = smul.u32 %s60, 3
      %s62 = ssub.s32 %s17, %s29
      %s63 = ssub.s32 %s59, %s61
      %s64 = sor.u32 %s62, %s63
      %p65 = scmp.eq.s32.totalorder %s64, 0
      %s67 = sadd.s32 %s66, 1
      %s68 = scalar_select %p65, %s66, %s67
      %p71 = pneg %p65
      %p72 = scmp.eq.s32.totalorder %s10, 1
      %p73 = por %p71, %p72
      %p74 = scmp.ne.s32.totalorder %s66, %s69
      %p75 = scmp.eq.s32.totalorder %s10, 0
      %p76 = por %p74, %p75
      %p77 = scmp.ne.s32.totalorder %s66, %s69
      %p78 = scmp.eq.s32.totalorder %s15, 1
      %p79 = por %p77, %p78
      %p80 = scmp.ne.s32.totalorder %s69, %s70
      %p81 = scmp.eq.s32.totalorder %s15, 0
      %p82 = por %p80, %p81
      %p83 = scmp.ne.s32.totalorder %s69, %s70
      %p84 = scmp.eq.s32.totalorder %s16, 1
      %p85 = por %p83, %p84
      %p87 = scmp.ne.s32.totalorder %s70, %s86
      %p88 = scmp.eq.s32.totalorder %s16, 0
      %p89 = por %p87, %p88
      %s91 = sadd.s32 %s90, 1
      %p94 = scmp.eq.s32.totalorder %s10, 1
      %p95 = scmp.ne.s32.totalorder %s90, %s92
      %p96 = scmp.eq.s32.totalorder %s10, 0
      %p97 = por %p95, %p96
      %p98 = scmp.ne.s32.totalorder %s90, %s92
      %p99 = scmp.eq.s32.totalorder %s15, 1
      %p100 = por %p98, %p99
      %p101 = scmp.ne.s32.totalorder %s92, %s93
      %p102 = scmp.eq.s32.totalorder %s15, 0
      %p103 = por %p101, %p102
      %p104 = scmp.ne.s32.totalorder %s92, %s93
      %p105 = scmp.eq.s32.totalorder %s16, 1
      %p106 = por %p104, %p105
      %p108 = scmp.ne.s32.totalorder %s93, %s107
      %p109 = scmp.eq.s32.totalorder %s16, 0
      %p110 = por %p108, %p109
      %s112 = sadd.s32 %s111, 1
      %p115 = scmp.eq.s32.totalorder %s10, 1
      %p116 = scmp.ne.s32.totalorder %s111, %s113
      %p117 = scmp.eq.s32.totalorder %s10, 0
      %p118 = por %p116, %p117
      %p119 = scmp.ne.s32.totalorder %s111, %s113
      %p120 = scmp.eq.s32.totalorder %s15, 1
      %p121 = por %p119, %p120
      %p122 = scmp.ne.s32.totalorder %s113, %s114
      %p123 = scmp.eq.s32.totalorder %s15, 0
      %p124 = por %p122, %p123
      %p125 = scmp.ne.s32.totalorder %s113, %s114
      %p126 = scmp.eq.s32.totalorder %s16, 1
      %p127 = por %p125, %p126
      %p129 = scmp.ne.s32.totalorder %s114, %s128
      %p130 = scmp.eq.s32.totalorder %s16, 0
      %p131 = por %p129, %p130
      %s132 = ssub.s32 %s17, %s29
      %s133 = ssub.s32 %s18, %s25
      %s134 = sor.u32 %s132, %s133
      %p135 = scmp.eq.s32.totalorder %s134, 0
      %s137 = sadd.s32 %s136, 1
      %s138 = scalar_select %p135, %s136, %s137
      %p141 = pneg %p135
      %p142 = scmp.eq.s32.totalorder %s10, 1
      %p143 = por %p141, %p142
      %p144 = scmp.ne.s32.totalorder %s136, %s139
      %p145 = scmp.eq.s32.totalorder %s10, 0
      %p146 = por %p144, %p145
      %p147 = scmp.ne.s32.totalorder %s136, %s139
      %p148 = scmp.eq.s32.totalorder %s15, 1
      %p149 = por %p147, %p148
      %p150 = scmp.ne.s32.totalorder %s139, %s140
      %p151 = scmp.eq.s32.totalorder %s15, 0
      %p152 = por %p150, %p151
      %p153 = scmp.ne.s32.totalorder %s139, %s140
      %p154 = scmp.eq.s32.totalorder %s16, 1
      %p155 = por %p153, %p154
      %p157 = scmp.ne.s32.totalorder %s140, %s156
      %p158 = scmp.eq.s32.totalorder %s16, 0
      %p159 = por %p157, %p158
      %p160 = scmp.le.s32.totalorder 1, %s10
      %p161 = scmp.lt.s32.totalorder %s10, 3
      %p162 = pnand %p160, %p161
      %p163 = pneg %p162
      // Predicated region
      $region9: #{resblock_forward.3} parent=5 // pred_check
        _
      $region10: #{resblock_forward.3} parent=5 // pred_check_branch
        %165 = sbr.rel (%p162) target = $region12
      $region11: #{resblock_forward.3} parent=5 // pred_region
        %s166 = ssub.s32 %s10, 1
        // Predicated region
        $region13: #{resblock_forward.3} parent=11 // pred_check
          %p167 = pneg %p103
        $region14: #{resblock_forward.3} parent=11 // pred_check_branch
          %169 = sbr.rel (%p167) target = $region16
        $region15: #{resblock_forward.3} parent=11 // pred_region
          _
        $region16: #{resblock_forward.3} parent=11 // pred_fallthru
          _
        // Predicated region
        $region17: #{resblock_forward.3} parent=11 // pred_check
          %p170 = pneg %p124
        $region18: #{resblock_forward.3} parent=11 // pred_check_branch
          %172 = sbr.rel (%p170) target = $region20
        $region19: #{resblock_forward.3} parent=11 // pred_region
          _
        $region20: #{resblock_forward.3} parent=11 // pred_fallthru
          _
      $region12: #{resblock_forward.3} parent=5 // pred_fallthru
        _
      %p173 = scmp.lt.s32.totalorder %s10, 2
      // Predicated region
      $region21: #{resblock_forward.3} parent=5 // pred_check
        %p174 = pneg %p173
      $region22: #{resblock_forward.3} parent=5 // pred_check_branch
        %176 = sbr.rel (%p174) target = $region24
      $region23: #{resblock_forward.3} parent=5 // pred_region
        // Predicated region
        $region25: #{resblock_forward.3} parent=23 // pred_check
          %p177 = pneg %p44
        $region26: #{resblock_forward.3} parent=23 // pred_check_branch
          %179 = sbr.rel (%p177) target = $region28
        $region27: #{resblock_forward.3} parent=23 // pred_region
          %s180 = sand.u32 %s34, 1
          %s181 = sand.u32 %s34, 1
          %s182 = smul.addr %s181, 48
          %s183 = scalar_lea.vmem [#allocation2], %s182
          %s184 = smul.u32 3, %s18
          %s185 = ssub.s32 4, %s184
          %p186 = scmp.lt.s32.totalorder %s185, 3
          %s187 = scalar_select %p186, %s185, 3
          %s188 = smul.u32 256, %s187
          %p189 = scmp.ne.s32.totalorder 0, %s188
          %s190 = smul.addr %s17, 16
          %s191 = sadd.s32 %s184, %s190
          %s192 = smul.addr %s191, 4
          %s193 = scalar_lea.vmem %s0, %s192
          %s194 = smul.u32 %s187, 4
          // Predicated region
          $region29: #{resblock_forward.3} parent=27 // pred_check
            %p195 = pneg %p189
          $region30: #{resblock_forward.3} parent=27 // pred_check_branch
            %197 = sbr.rel (%p195) target = $region32
          $region31: #{resblock_forward.3} parent=27 // pred_region
            %p198 = scmp.lt.u32.totalorder %s194, 8
            %p199 = pneg %p198
            // Predicated region
            $region33: #{resblock_forward.3} parent=31 // pred_check
              _
            $region34: #{resblock_forward.3} parent=31 // pred_check_branch
              %201 = sbr.rel (%p198) target = $region36
            $region35: #{resblock_forward.3} parent=31 // pred_region
              %s222 = sand.u32 %s194, 7
              %p223 = scmp.eq.s32.totalorder %s222, 0
              // Predicated region
              $region48: #{resblock_forward.3} parent=35 // pred_check
                %p224 = pneg %p223
              $region49: #{resblock_forward.3} parent=35 // pred_check_branch
                %226 = sbr.rel (%p224) target = $region51
              $region50: #{resblock_forward.3} parent=35 // pred_region
                %s227 = sshrl.u32 %s194, 3
                %s228 = sshrl.u32 %s227, 4
                // While loop
                $region52: #{resblock_forward.3} parent=50 // loop_pre_header
                  _
                $region53: #{resblock_forward.3} parent=50 // loop_header
                  %s232 = sphi 0, %s234
                  %p233 = scmp.ge.s32.totalorder %s232, %s228
                  %s237 = sphi 0, %s370
                  %s238 = sphi %s193, %s373
                  %s239 = sphi %s183, %s374
                $region54: #{resblock_forward.3} parent=50 // loop_header_branch
                  %236 = sbr.rel (%p233) target = $region58
                $region55: #{resblock_forward.3} parent=50 // loop_body
                  %v240 = vld [vmem:[%s238] sm:$0xff]
                  %241 = vst [vmem:[%s239] sm:$0xff] %v240
                  %v242 = vld [vmem:[%s238 + $0x8] sm:$0xff]
                  %243 = vst [vmem:[%s239 + $0x8] sm:$0xff] %v242
                  %v244 = vld [vmem:[%s238 + $0x10] sm:$0xff]
                  %245 = vst [vmem:[%s239 + $0x10] sm:$0xff] %v244
                  %v246 = vld [vmem:[%s238 + $0x18] sm:$0xff]
                  %247 = vst [vmem:[%s239 + $0x18] sm:$0xff] %v246
                  %v248 = vld [vmem:[%s238 + $0x20] sm:$0xff]
                  %249 = vst [vmem:[%s239 + $0x20] sm:$0xff] %v248
                  %v250 = vld [vmem:[%s238 + $0x28] sm:$0xff]
                  %251 = vst [vmem:[%s239 + $0x28] sm:$0xff] %v250
                  %v252 = vld [vmem:[%s238 + $0x30] sm:$0xff]
                  %253 = vst [vmem:[%s239 + $0x30] sm:$0xff] %v252
                  %v254 = vld [vmem:[%s238 + $0x38] sm:$0xff]
                  %255 = vst [vmem:[%s239 + $0x38] sm:$0xff] %v254
                  %v256 = vld [vmem:[%s238 + $0x40] sm:$0xff]
                  %257 = vst [vmem:[%s239 + $0x40] sm:$0xff] %v256
                  %v258 = vld [vmem:[%s238 + $0x48] sm:$0xff]
                  %259 = vst [vmem:[%s239 + $0x48] sm:$0xff] %v258
                  %v260 = vld [vmem:[%s238 + $0x50] sm:$0xff]
                  %261 = vst [vmem:[%s239 + $0x50] sm:$0xff] %v260
                  %v262 = vld [vmem:[%s238 + $0x58] sm:$0xff]
                  %263 = vst [vmem:[%s239 + $0x58] sm:$0xff] %v262
                  %v264 = vld [vmem:[%s238 + $0x60] sm:$0xff]
                  %265 = vst [vmem:[%s239 + $0x60] sm:$0xff] %v264
                  %v266 = vld [vmem:[%s238 + $0x68] sm:$0xff]
                  %267 = vst [vmem:[%s239 + $0x68] sm:$0xff] %v266
                  %v268 = vld [vmem:[%s238 + $0x70] sm:$0xff]
                  %269 = vst [vmem:[%s239 + $0x70] sm:$0xff] %v268
                  %v270 = vld [vmem:[%s238 + $0x78] sm:$0xff]
                  %271 = vst [vmem:[%s239 + $0x78] sm:$0xff] %v270
                  %v272 = vld [vmem:[%s238 + $0x10] sm:$0xff]
                  %273 = vst [vmem:[%s239 + $0xc] sm:$0xff] %v272
                  %v274 = vld [vmem:[%s238 + $0x18] sm:$0xff]
                  %275 = vst [vmem:[%s239 + $0x14] sm:$0xff] %v274
                  %v276 = vld [vmem:[%s238 + $0x20] sm:$0xff]
                  %277 = vst [vmem:[%s239 + $0x1c] sm:$0xff] %v276
                  %v278 = vld [vmem:[%s238 + $0x28] sm:$0xff]
                  %279 = vst [vmem:[%s239 + $0x24] sm:$0xff] %v278
                  %v280 = vld [vmem:[%s238 + $0x30] sm:$0xff]
                  %281 = vst [vmem:[%s239 + $0x2c] sm:$0xff] %v280
                  %v282 = vld [vmem:[%s238 + $0x38] sm:$0xff]
                  %283 = vst [vmem:[%s239 + $0x34] sm:$0xff] %v282
                  %v284 = vld [vmem:[%s238 + $0x40] sm:$0xff]
                  %285 = vst [vmem:[%s239 + $0x3c] sm:$0xff] %v284
                  %v286 = vld [vmem:[%s238 + $0x48] sm:$0xff]
                  %287 = vst [vmem:[%s239 + $0x44] sm:$0xff] %v286
                  %v288 = vld [vmem:[%s238 + $0x50] sm:$0xff]
                  %289 = vst [vmem:[%s239 + $0x4c] sm:$0xff] %v288
                  %v290 = vld [vmem:[%s238 + $0x58] sm:$0xff]
                  %291 = vst [vmem:[%s239 + $0x54] sm:$0xff] %v290
                  %v292 = vld [vmem:[%s238 + $0x60] sm:$0xff]
                  %293 = vst [vmem:[%s239 + $0x5c] sm:$0xff] %v292
                  %v294 = vld [vmem:[%s238 + $0x68] sm:$0xff]
                  %295 = vst [vmem:[%s239 + $0x64] sm:$0xff] %v294
                  %v296 = vld [vmem:[%s238 + $0x70] sm:$0xff]
                  %297 = vst [vmem:[%s239 + $0x6c] sm:$0xff] %v296
                  %v298 = vld [vmem:[%s238 + $0x78] sm:$0xff]
                  %299 = vst [vmem:[%s239 + $0x74] sm:$0xff] %v298
                  %v300 = vld [vmem:[%s238 + $0x80] sm:$0xff]
                  %301 = vst [vmem:[%s239 + $0x7c] sm:$0xff] %v300
                  %v302 = vld [vmem:[%s238 + $0x88] sm:$0xff]
                  %303 = vst [vmem:[%s239 + $0x84] sm:$0xff] %v302
                  %v304 = vld [vmem:[%s238 + $0x20] sm:$0xff]
                  %305 = vst [vmem:[%s239 + $0x18] sm:$0xff] %v304
                  %v306 = vld [vmem:[%s238 + $0x28] sm:$0xff]
                  %307 = vst [vmem:[%s239 + $0x20] sm:$0xff] %v306
                  %v308 = vld [vmem:[%s238 + $0x30] sm:$0xff]
                  %309 = vst [vmem:[%s239 + $0x28] sm:$0xff] %v308
                  %v310 = vld [vmem:[%s238 + $0x38] sm:$0xff]
                  %311 = vst [vmem:[%s239 + $0x30] sm:$0xff] %v310
                  %v312 = vld [vmem:[%s238 + $0x40] sm:$0xff]
                  %313 = vst [vmem:[%s239 + $0x38] sm:$0xff] %v312
                  %v314 = vld [vmem:[%s238 + $0x48] sm:$0xff]
                  %315 = vst [vmem:[%s239 + $0x40] sm:$0xff] %v314
                  %v316 = vld [vmem:[%s238 + $0x50] sm:$0xff]
                  %317 = vst [vmem:[%s239 + $0x48] sm:$0xff] %v316
                  %v318 = vld [vmem:[%s238 + $0x58] sm:$0xff]
                  %319 = vst [vmem:[%s239 + $0x50] sm:$0xff] %v318
                  %v320 = vld [vmem:[%s238 + $0x60] sm:$0xff]
                  %321 = vst [vmem:[%s239 + $0x58] sm:$0xff] %v320
                  %v322 = vld [vmem:[%s238 + $0x68] sm:$0xff]
                  %323 = vst [vmem:[%s239 + $0x60] sm:$0xff] %v322
                  %v324 = vld [vmem:[%s238 + $0x70] sm:$0xff]
                  %325 = vst [vmem:[%s239 + $0x68] sm:$0xff] %v324
                  %v326 = vld [vmem:[%s238 + $0x78] sm:$0xff]
                  %327 = vst [vmem:[%s239 + $0x70] sm:$0xff] %v326
                  %v328 = vld [vmem:[%s238 + $0x80] sm:$0xff]
                  %329 = vst [vmem:[%s239 + $0x78] sm:$0xff] %v328
                  %v330 = vld [vmem:[%s238 + $0x88] sm:$0xff]
                  %331 = vst [vmem:[%s239 + $0x80] sm:$0xff] %v330
                  %v332 = vld [vmem:[%s238 + $0x90] sm:$0xff]
                  %333 = vst [vmem:[%s239 + $0x88] sm:$0xff] %v332
                  %v334 = vld [vmem:[%s238 + $0x98] sm:$0xff]
                  %335 = vst [vmem:[%s239 + $0x90] sm:$0xff] %v334
                  %v336 = vld [vmem:[%s238 + $0x30] sm:$0xff]
                  %337 = vst [vmem:[%s239 + $0x24] sm:$0xff] %v336
                  %v338 = vld [vmem:[%s238 + $0x38] sm:$0xff]
                  %339 = vst [vmem:[%s239 + $0x2c] sm:$0xff] %v338
                  %v340 = vld [vmem:[%s238 + $0x40] sm:$0xff]
                  %341 = vst [vmem:[%s239 + $0x34] sm:$0xff] %v340
                  %v342 = vld [vmem:[%s238 + $0x48] sm:$0xff]
                  %343 = vst [vmem:[%s239 + $0x3c] sm:$0xff] %v342
                  %v344 = vld [vmem:[%s238 + $0x50] sm:$0xff]
                  %345 = vst [vmem:[%s239 + $0x44] sm:$0xff] %v344
                  %v346 = vld [vmem:[%s238 + $0x58] sm:$0xff]
                  %347 = vst [vmem:[%s239 + $0x4c] sm:$0xff] %v346
                  %v348 = vld [vmem:[%s238 + $0x60] sm:$0xff]
                  %349 = vst [vmem:[%s239 + $0x54] sm:$0xff] %v348
                  %v350 = vld [vmem:[%s238 + $0x68] sm:$0xff]
                  %351 = vst [vmem:[%s239 + $0x5c] sm:$0xff] %v350
                  %v352 = vld [vmem:[%s238 + $0x70] sm:$0xff]
                  %353 = vst [vmem:[%s239 + $0x64] sm:$0xff] %v352
                  %v354 = vld [vmem:[%s238 + $0x78] sm:$0xff]
                  %355 = vst [vmem:[%s239 + $0x6c] sm:$0xff] %v354
                  %v356 = vld [vmem:[%s238 + $0x80] sm:$0xff]
                  %357 = vst [vmem:[%s239 + $0x74] sm:$0xff] %v356
                  %v358 = vld [vmem:[%s238 + $0x88] sm:$0xff]
                  %359 = vst [vmem:[%s239 + $0x7c] sm:$0xff] %v358
                  %v360 = vld [vmem:[%s238 + $0x90] sm:$0xff]
                  %361 = vst [vmem:[%s239 + $0x84] sm:$0xff] %v360
                  %v362 = vld [vmem:[%s238 + $0x98] sm:$0xff]
                  %363 = vst [vmem:[%s239 + $0x8c] sm:$0xff] %v362
                  %v364 = vld [vmem:[%s238 + $0xa0] sm:$0xff]
                  %365 = vst [vmem:[%s239 + $0x94] sm:$0xff] %v364
                  %v366 = vld [vmem:[%s238 + $0xa8] sm:$0xff]
                  %367 = vst [vmem:[%s239 + $0x9c] sm:$0xff] %v366
                  %s368 = sadd.s32 1, %s237
                  %p369 = scmp.ge.s32.totalorder %s368, %s228
                  %s370 = scalar_select %p369, 0, %s368
                  %s371 = smul.u32 %s370, 128
                  %s372 = smul.u32 %s370, 128
                  %s373 = scalar_lea.vmem %s193, %s371
                  %s374 = scalar_lea.vmem %s183, %s372 [#allocation2]
                $region56: #{resblock_forward.3} parent=50 // loop_footer
                  %s234 = sadd.s32 %s232, 1
                $region57: #{resblock_forward.3} parent=50 // loop_footer_branch
                  %231 = sbr.rel target = $region53
                $region58: #{resblock_forward.3} parent=50 // loop_exit
                  _
                %s375 = sshrl.u32 %s227, 4
                %s376 = sand.u32 %s227, 15
                %s377 = smul.u32 %s375, 16
                %s378 = smul.u32 128, %s377
                %s379 = sshra.s32 %s378, 4
                %s380 = scalar_lea.vmem %s193, %s379
                %s381 = smul.u32 128, %s377
                %s382 = sshra.s32 %s381, 4
                %s383 = scalar_lea.vmem %s183, %s382 [#allocation2]
                // While loop
                $region59: #{resblock_forward.3} parent=50 // loop_pre_header
                  _
                $region60: #{resblock_forward.3} parent=50 // loop_header
                  %s387 = sphi 0, %s389
                  %p388 = scmp.ge.s32.totalorder %s387, %s376
                  %s392 = sphi 0, %s405
                  %s393 = sphi %s380, %s408
                  %s394 = sphi %s383, %s409
                $region61: #{resblock_forward.3} parent=50 // loop_header_branch
                  %391 = sbr.rel (%p388) target = $region65
                $region62: #{resblock_forward.3} parent=50 // loop_body
                  %v395 = vld [vmem:[%s393] sm:$0xff]
                  %396 = vst [vmem:[%s394] sm:$0xff] %v395
                  %v397 = vld [vmem:[%s393 + $0x10] sm:$0xff]
                  %398 = vst [vmem:[%s394 + $0xc] sm:$0xff] %v397
                  %v399 = vld [vmem:[%s393 + $0x20] sm:$0xff]
                  %400 = vst [vmem:[%s394 + $0x18] sm:$0xff] %v399
                  %v401 = vld [vmem:[%s393 + $0x30] sm:$0xff]
                  %402 = vst [vmem:[%s394 + $0x24] sm:$0xff] %v401
                  %s403 = sadd.s32 1, %s392
                  %p404 = scmp.ge.s32.totalorder %s403, %s376
                  %s405 = scalar_select %p404, 0, %s403
                  %s406 = smul.u32 %s405, 8
                  %s407 = smul.u32 %s405, 8
                  %s408 = scalar_lea.vmem %s380, %s406
                  %s409 = scalar_lea.vmem %s383, %s407 [#allocation2]
                $region63: #{resblock_forward.3} parent=50 // loop_footer
                  %s389 = sadd.s32 %s387, 1
                $region64: #{resblock_forward.3} parent=50 // loop_footer_branch
                  %386 = sbr.rel target = $region60
                $region65: #{resblock_forward.3} parent=50 // loop_exit
                  _
              $region51: #{resblock_forward.3} parent=35 // pred_fallthru
                _
              %p410 = pneg %p223
              // Predicated region
              $region66: #{resblock_forward.3} parent=35 // pred_check
                _
              $region67: #{resblock_forward.3} parent=35 // pred_check_branch
                %412 = sbr.rel (%p223) target = $region69
              $region68: #{resblock_forward.3} parent=35 // pred_region
                %s413 = sand.u32 %s194, 7
                %s414 = ssub.s32 %s194, %s413
                %s415 = scalar_lea.vmem %s193, %s414
                %s416 = ssub.s32 %s194, %s413
                %s417 = scalar_lea.vmem %s183, %s416 [#allocation2]
                %s418 = sshrl.u32 %s194, 3
                %s419 = sshrl.u32 %s418, 4
                // While loop
                $region70: #{resblock_forward.3} parent=68 // loop_pre_header
                  _
                $region71: #{resblock_forward.3} parent=68 // loop_header
                  %s423 = sphi 0, %s425
                  %p424 = scmp.ge.s32.totalorder %s423, %s419
                  %s428 = sphi 0, %s561
                  %s429 = sphi %s193, %s564
                  %s430 = sphi %s183, %s565
                $region72: #{resblock_forward.3} parent=68 // loop_header_branch
                  %427 = sbr.rel (%p424) target = $region76
                $region73: #{resblock_forward.3} parent=68 // loop_body
                  %v431 = vld [vmem:[%s429] sm:$0xff]
                  %432 = vst [vmem:[%s430] sm:$0xff] %v431
                  %v433 = vld [vmem:[%s429 + $0x8] sm:$0xff]
                  %434 = vst [vmem:[%s430 + $0x8] sm:$0xff] %v433
                  %v435 = vld [vmem:[%s429 + $0x10] sm:$0xff]
                  %436 = vst [vmem:[%s430 + $0x10] sm:$0xff] %v435
                  %v437 = vld [vmem:[%s429 + $0x18] sm:$0xff]
                  %438 = vst [vmem:[%s430 + $0x18] sm:$0xff] %v437
                  %v439 = vld [vmem:[%s429 + $0x20] sm:$0xff]
                  %440 = vst [vmem:[%s430 + $0x20] sm:$0xff] %v439
                  %v441 = vld [vmem:[%s429 + $0x28] sm:$0xff]
                  %442 = vst [vmem:[%s430 + $0x28] sm:$0xff] %v441
                  %v443 = vld [vmem:[%s429 + $0x30] sm:$0xff]
                  %444 = vst [vmem:[%s430 + $0x30] sm:$0xff] %v443
                  %v445 = vld [vmem:[%s429 + $0x38] sm:$0xff]
                  %446 = vst [vmem:[%s430 + $0x38] sm:$0xff] %v445
                  %v447 = vld [vmem:[%s429 + $0x40] sm:$0xff]
                  %448 = vst [vmem:[%s430 + $0x40] sm:$0xff] %v447
                  %v449 = vld [vmem:[%s429 + $0x48] sm:$0xff]
                  %450 = vst [vmem:[%s430 + $0x48] sm:$0xff] %v449
                  %v451 = vld [vmem:[%s429 + $0x50] sm:$0xff]
                  %452 = vst [vmem:[%s430 + $0x50] sm:$0xff] %v451
                  %v453 = vld [vmem:[%s429 + $0x58] sm:$0xff]
                  %454 = vst [vmem:[%s430 + $0x58] sm:$0xff] %v453
                  %v455 = vld [vmem:[%s429 + $0x60] sm:$0xff]
                  %456 = vst [vmem:[%s430 + $0x60] sm:$0xff] %v455
                  %v457 = vld [vmem:[%s429 + $0x68] sm:$0xff]
                  %458 = vst [vmem:[%s430 + $0x68] sm:$0xff] %v457
                  %v459 = vld [vmem:[%s429 + $0x70] sm:$0xff]
                  %460 = vst [vmem:[%s430 + $0x70] sm:$0xff] %v459
                  %v461 = vld [vmem:[%s429 + $0x78] sm:$0xff]
                  %462 = vst [vmem:[%s430 + $0x78] sm:$0xff] %v461
                  %v463 = vld [vmem:[%s429 + $0x10] sm:$0xff]
                  %464 = vst [vmem:[%s430 + $0xc] sm:$0xff] %v463
                  %v465 = vld [vmem:[%s429 + $0x18] sm:$0xff]
                  %466 = vst [vmem:[%s430 + $0x14] sm:$0xff] %v465
                  %v467 = vld [vmem:[%s429 + $0x20] sm:$0xff]
                  %468 = vst [vmem:[%s430 + $0x1c] sm:$0xff] %v467
                  %v469 = vld [vmem:[%s429 + $0x28] sm:$0xff]
                  %470 = vst [vmem:[%s430 + $0x24] sm:$0xff] %v469
                  %v471 = vld [vmem:[%s429 + $0x30] sm:$0xff]
                  %472 = vst [vmem:[%s430 + $0x2c] sm:$0xff] %v471
                  %v473 = vld [vmem:[%s429 + $0x38] sm:$0xff]
                  %474 = vst [vmem:[%s430 + $0x34] sm:$0xff] %v473
                  %v475 = vld [vmem:[%s429 + $0x40] sm:$0xff]
                  %476 = vst [vmem:[%s430 + $0x3c] sm:$0xff] %v475
                  %v477 = vld [vmem:[%s429 + $0x48] sm:$0xff]
                  %478 = vst [vmem:[%s430 + $0x44] sm:$0xff] %v477
                  %v479 = vld [vmem:[%s429 + $0x50] sm:$0xff]
                  %480 = vst [vmem:[%s430 + $0x4c] sm:$0xff] %v479
                  %v481 = vld [vmem:[%s429 + $0x58] sm:$0xff]
                  %482 = vst [vmem:[%s430 + $0x54] sm:$0xff] %v481
                  %v483 = vld [vmem:[%s429 + $0x60] sm:$0xff]
                  %484 = vst [vmem:[%s430 + $0x5c] sm:$0xff] %v483
                  %v485 = vld [vmem:[%s429 + $0x68] sm:$0xff]
                  %486 = vst [vmem:[%s430 + $0x64] sm:$0xff] %v485
                  %v487 = vld [vmem:[%s429 + $0x70] sm:$0xff]
                  %488 = vst [vmem:[%s430 + $0x6c] sm:$0xff] %v487
                  %v489 = vld [vmem:[%s429 + $0x78] sm:$0xff]
                  %490 = vst [vmem:[%s430 + $0x74] sm:$0xff] %v489
                  %v491 = vld [vmem:[%s429 + $0x80] sm:$0xff]
                  %492 = vst [vmem:[%s430 + $0x7c] sm:$0xff] %v491
                  %v493 = vld [vmem:[%s429 + $0x88] sm:$0xff]
                  %494 = vst [vmem:[%s430 + $0x84] sm:$0xff] %v493
                  %v495 = vld [vmem:[%s429 + $0x20] sm:$0xff]
                  %496 = vst [vmem:[%s430 + $0x18] sm:$0xff] %v495
                  %v497 = vld [vmem:[%s429 + $0x28] sm:$0xff]
                  %498 = vst [vmem:[%s430 + $0x20] sm:$0xff] %v497
                  %v499 = vld [vmem:[%s429 + $0x30] sm:$0xff]
                  %500 = vst [vmem:[%s430 + $0x28] sm:$0xff] %v499
                  %v501 = vld [vmem:[%s429 + $0x38] sm:$0xff]
                  %502 = vst [vmem:[%s430 + $0x30] sm:$0xff] %v501
                  %v503 = vld [vmem:[%s429 + $0x40] sm:$0xff]
                  %504 = vst [vmem:[%s430 + $0x38] sm:$0xff] %v503
                  %v505 = vld [vmem:[%s429 + $0x48] sm:$0xff]
                  %506 = vst [vmem:[%s430 + $0x40] sm:$0xff] %v505
                  %v507 = vld [vmem:[%s429 + $0x50] sm:$0xff]
                  %508 = vst [vmem:[%s430 + $0x48] sm:$0xff] %v507
                  %v509 = vld [vmem:[%s429 + $0x58] sm:$0xff]
                  %510 = vst [vmem:[%s430 + $0x50] sm:$0xff] %v509
                  %v511 = vld [vmem:[%s429 + $0x60] sm:$0xff]
                  %512 = vst [vmem:[%s430 + $0x58] sm:$0xff] %v511
                  %v513 = vld [vmem:[%s429 + $0x68] sm:$0xff]
                  %514 = vst [vmem:[%s430 + $0x60] sm:$0xff] %v513
                  %v515 = vld [vmem:[%s429 + $0x70] sm:$0xff]
                  %516 = vst [vmem:[%s430 + $0x68] sm:$0xff] %v515
                  %v517 = vld [vmem:[%s429 + $0x78] sm:$0xff]
                  %518 = vst [vmem:[%s430 + $0x70] sm:$0xff] %v517
                  %v519 = vld [vmem:[%s429 + $0x80] sm:$0xff]
                  %520 = vst [vmem:[%s430 + $0x78] sm:$0xff] %v519
                  %v521 = vld [vmem:[%s429 + $0x88] sm:$0xff]
                  %522 = vst [vmem:[%s430 + $0x80] sm:$0xff] %v521
                  %v523 = vld [vmem:[%s429 + $0x90] sm:$0xff]
                  %524 = vst [vmem:[%s430 + $0x88] sm:$0xff] %v523
                  %v525 = vld [vmem:[%s429 + $0x98] sm:$0xff]
                  %526 = vst [vmem:[%s430 + $0x90] sm:$0xff] %v525
                  %v527 = vld [vmem:[%s429 + $0x30] sm:$0xff]
                  %528 = vst [vmem:[%s430 + $0x24] sm:$0xff] %v527
                  %v529 = vld [vmem:[%s429 + $0x38] sm:$0xff]
                  %530 = vst [vmem:[%s430 + $0x2c] sm:$0xff] %v529
                  %v531 = vld [vmem:[%s429 + $0x40] sm:$0xff]
                  %532 = vst [vmem:[%s430 + $0x34] sm:$0xff] %v531
                  %v533 = vld [vmem:[%s429 + $0x48] sm:$0xff]
                  %534 = vst [vmem:[%s430 + $0x3c] sm:$0xff] %v533
                  %v535 = vld [vmem:[%s429 + $0x50] sm:$0xff]
                  %536 = vst [vmem:[%s430 + $0x44] sm:$0xff] %v535
                  %v537 = vld [vmem:[%s429 + $0x58] sm:$0xff]
                  %538 = vst [vmem:[%s430 + $0x4c] sm:$0xff] %v537
                  %v539 = vld [vmem:[%s429 + $0x60] sm:$0xff]
                  %540 = vst [vmem:[%s430 + $0x54] sm:$0xff] %v539
                  %v541 = vld [vmem:[%s429 + $0x68] sm:$0xff]
                  %542 = vst [vmem:[%s430 + $0x5c] sm:$0xff] %v541
                  %v543 = vld [vmem:[%s429 + $0x70] sm:$0xff]
                  %544 = vst [vmem:[%s430 + $0x64] sm:$0xff] %v543
                  %v545 = vld [vmem:[%s429 + $0x78] sm:$0xff]
                  %546 = vst [vmem:[%s430 + $0x6c] sm:$0xff] %v545
                  %v547 = vld [vmem:[%s429 + $0x80] sm:$0xff]
                  %548 = vst [vmem:[%s430 + $0x74] sm:$0xff] %v547
                  %v549 = vld [vmem:[%s429 + $0x88] sm:$0xff]
                  %550 = vst [vmem:[%s430 + $0x7c] sm:$0xff] %v549
                  %v551 = vld [vmem:[%s429 + $0x90] sm:$0xff]
                  %552 = vst [vmem:[%s430 + $0x84] sm:$0xff] %v551
                  %v553 = vld [vmem:[%s429 + $0x98] sm:$0xff]
                  %554 = vst [vmem:[%s430 + $0x8c] sm:$0xff] %v553
                  %v555 = vld [vmem:[%s429 + $0xa0] sm:$0xff]
                  %556 = vst [vmem:[%s430 + $0x94] sm:$0xff] %v555
                  %v557 = vld [vmem:[%s429 + $0xa8] sm:$0xff]
                  %558 = vst [vmem:[%s430 + $0x9c] sm:$0xff] %v557
                  %s559 = sadd.s32 1, %s428
                  %p560 = scmp.ge.s32.totalorder %s559, %s419
                  %s561 = scalar_select %p560, 0, %s559
                  %s562 = smul.u32 %s561, 128
                  %s563 = smul.u32 %s561, 128
                  %s564 = scalar_lea.vmem %s193, %s562
                  %s565 = scalar_lea.vmem %s183, %s563 [#allocation2]
                $region74: #{resblock_forward.3} parent=68 // loop_footer
                  %s425 = sadd.s32 %s423, 1
                $region75: #{resblock_forward.3} parent=68 // loop_footer_branch
                  %422 = sbr.rel target = $region71
                $region76: #{resblock_forward.3} parent=68 // loop_exit
                  _
                %s566 = sshrl.u32 %s418, 4
                %s567 = sand.u32 %s418, 15
                %s568 = smul.u32 %s566, 16
                %s569 = smul.u32 128, %s568
                %s570 = sshra.s32 %s569, 4
                %s571 = scalar_lea.vmem %s193, %s570
                %s572 = smul.u32 128, %s568
                %s573 = sshra.s32 %s572, 4
                %s574 = scalar_lea.vmem %s183, %s573 [#allocation2]
                // While loop
                $region77: #{resblock_forward.3} parent=68 // loop_pre_header
                  _
                $region78: #{resblock_forward.3} parent=68 // loop_header
                  %s578 = sphi 0, %s580
                  %p579 = scmp.ge.s32.totalorder %s578, %s567
                  %s583 = sphi 0, %s596
                  %s584 = sphi %s571, %s599
                  %s585 = sphi %s574, %s600
                $region79: #{resblock_forward.3} parent=68 // loop_header_branch
                  %582 = sbr.rel (%p579) target = $region83
                $region80: #{resblock_forward.3} parent=68 // loop_body
                  %v586 = vld [vmem:[%s584] sm:$0xff]
                  %587 = vst [vmem:[%s585] sm:$0xff] %v586
                  %v588 = vld [vmem:[%s584 + $0x10] sm:$0xff]
                  %589 = vst [vmem:[%s585 + $0xc] sm:$0xff] %v588
                  %v590 = vld [vmem:[%s584 + $0x20] sm:$0xff]
                  %591 = vst [vmem:[%s585 + $0x18] sm:$0xff] %v590
                  %v592 = vld [vmem:[%s584 + $0x30] sm:$0xff]
                  %593 = vst [vmem:[%s585 + $0x24] sm:$0xff] %v592
                  %s594 = sadd.s32 1, %s583
                  %p595 = scmp.ge.s32.totalorder %s594, %s567
                  %s596 = scalar_select %p595, 0, %s594
                  %s597 = smul.u32 %s596, 8
                  %s598 = smul.u32 %s596, 8
                  %s599 = scalar_lea.vmem %s571, %s597
                  %s600 = scalar_lea.vmem %s574, %s598 [#allocation2]
                $region81: #{resblock_forward.3} parent=68 // loop_footer
                  %s580 = sadd.s32 %s578, 1
                $region82: #{resblock_forward.3} parent=68 // loop_footer_branch
                  %577 = sbr.rel target = $region78
                $region83: #{resblock_forward.3} parent=68 // loop_exit
                  _
                %s601 = sshllo.u32 0, %s413
                loop: start=0, step=1, limit=1
                $region84: #{resblock_forward.3} parent=68 // loop_pre_header
                  _
                $region85: #{resblock_forward.3} parent=68 // loop_header
                  %s603 = sphi 0, %s607
                  %p604 = scmp.ge.s32.totalorder %s603, 1
                  %s608 = sphi %s415, %s415
                  %s609 = sphi %s417, %s417
                $region86: #{resblock_forward.3} parent=68 // loop_header_branch
                  %606 = sbr.rel (%p604) target = $region90
                $region87: #{resblock_forward.3} parent=68 // loop_body
                  %v610 = vld [vmem:[%s608] sm:%s601]
                  %611 = vst [vmem:[%s609] sm:%s601] %v610
                  %v612 = vld [vmem:[%s608 + $0x10] sm:%s601]
                  %613 = vst [vmem:[%s609 + $0xc] sm:%s601] %v612
                  %v614 = vld [vmem:[%s608 + $0x20] sm:%s601]
                  %615 = vst [vmem:[%s609 + $0x18] sm:%s601] %v614
                  %v616 = vld [vmem:[%s608 + $0x30] sm:%s601]
                  %617 = vst [vmem:[%s609 + $0x24] sm:%s601] %v616
                $region88: #{resblock_forward.3} parent=68 // loop_footer
                  %s607 = sadd.s32 1, %s603
                $region89: #{resblock_forward.3} parent=68 // loop_footer_branch
                  %602 = sbr.rel target = $region85
                $region90: #{resblock_forward.3} parent=68 // loop_exit
                  _
              $region69: #{resblock_forward.3} parent=35 // pred_fallthru
                _
            $region36: #{resblock_forward.3} parent=31 // pred_fallthru
              _
            // Predicated region
            $region37: #{resblock_forward.3} parent=31 // pred_check
              %p202 = pneg %p198
            $region38: #{resblock_forward.3} parent=31 // pred_check_branch
              %204 = sbr.rel (%p202) target = $region40
            $region39: #{resblock_forward.3} parent=31 // pred_region
              %s205 = sshllo.u32 0, %s194
              loop: start=0, step=1, limit=1
              $region41: #{resblock_forward.3} parent=39 // loop_pre_header
                _
              $region42: #{resblock_forward.3} parent=39 // loop_header
                %s207 = sphi 0, %s211
                %p208 = scmp.ge.s32.totalorder %s207, 1
                %s212 = sphi %s193, %s193
                %s213 = sphi %s183, %s183
              $region43: #{resblock_forward.3} parent=39 // loop_header_branch
                %210 = sbr.rel (%p208) target = $region47
              $region44: #{resblock_forward.3} parent=39 // loop_body
                %v214 = vld [vmem:[%s212] sm:%s205]
                %215 = vst [vmem:[%s213] sm:%s205] %v214
                %v216 = vld [vmem:[%s212 + $0x10] sm:%s205]
                %217 = vst [vmem:[%s213 + $0xc] sm:%s205] %v216
                %v218 = vld [vmem:[%s212 + $0x20] sm:%s205]
                %219 = vst [vmem:[%s213 + $0x18] sm:%s205] %v218
                %v220 = vld [vmem:[%s212 + $0x30] sm:%s205]
                %221 = vst [vmem:[%s213 + $0x24] sm:%s205] %v220
              $region45: #{resblock_forward.3} parent=39 // loop_footer
                %s211 = sadd.s32 1, %s207
              $region46: #{resblock_forward.3} parent=39 // loop_footer_branch
                %206 = sbr.rel target = $region42
              $region47: #{resblock_forward.3} parent=39 // loop_exit
                _
            $region40: #{resblock_forward.3} parent=31 // pred_fallthru
              _
          $region32: #{resblock_forward.3} parent=27 // pred_fallthru
            _
          %618 = vnop
        $region28: #{resblock_forward.3} parent=23 // pred_fallthru
          _
        // Predicated region
        $region91: #{resblock_forward.3} parent=23 // pred_check
          %p619 = pneg %p76
        $region92: #{resblock_forward.3} parent=23 // pred_check_branch
          %621 = sbr.rel (%p619) target = $region94
        $region93: #{resblock_forward.3} parent=23 // pred_region
          %s622 = sand.u32 %s66, 1
          %s623 = sand.u32 %s66, 1
          %s624 = smul.addr %s623, 16
          %s625 = scalar_lea.vmem [#allocation3], %s624
          %s626 = sadd.s32 %s18, 1
          %s627 = smul.u32 %s626, 3
          %s628 = smul.addr %s17, 16
          %s629 = sadd.s32 %s627, %s628
          %s630 = smul.addr %s629, 4
          %s631 = scalar_lea.vmem %s1, %s630
          // Predicated region
          $region95: #{resblock_forward.3} parent=93 // pred_check
            _
          $region96: #{resblock_forward.3} parent=93 // pred_check_branch
            %633 = sbr.rel (0) target = $region98
          $region97: #{resblock_forward.3} parent=93 // pred_region
            // Predicated region
            $region99: #{resblock_forward.3} parent=97 // pred_check
              _
            $region100: #{resblock_forward.3} parent=97 // pred_check_branch
              %635 = sbr.rel target = $region102
            $region101: #{resblock_forward.3} parent=97 // pred_region
              // Predicated region
              $region114: #{resblock_forward.3} parent=101 // pred_check
                _
              $region115: #{resblock_forward.3} parent=101 // pred_check_branch
                %656 = sbr.rel (0) target = $region117
              $region116: #{resblock_forward.3} parent=101 // pred_region
                loop: start=0, step=1, limit=1
                $region118: #{resblock_forward.3} parent=116 // loop_pre_header
                  _
                $region119: #{resblock_forward.3} parent=116 // loop_header
                  %s658 = sphi 0, %s662
                  %p659 = scmp.ge.s32.totalorder %s658, 1
                  %s663 = sphi %s631, %s631
                  %s664 = sphi %s625, %s625
                $region120: #{resblock_forward.3} parent=116 // loop_header_branch
                  %661 = sbr.rel (%p659) target = $region124
                $region121: #{resblock_forward.3} parent=116 // loop_body
                  _
                $region122: #{resblock_forward.3} parent=116 // loop_footer
                  %s662 = sadd.s32 1, %s658
                $region123: #{resblock_forward.3} parent=116 // loop_footer_branch
                  %657 = sbr.rel target = $region119
                $region124: #{resblock_forward.3} parent=116 // loop_exit
                  _
                loop: start=0, step=1, limit=1
                $region125: #{resblock_forward.3} parent=116 // loop_pre_header
                  _
                $region126: #{resblock_forward.3} parent=116 // loop_header
                  %s667 = sphi 0, %s671
                  %p668 = scmp.ge.s32.totalorder %s667, 1
                  %s672 = sphi %s631, %s631
                  %s673 = sphi %s625, %s625
                $region127: #{resblock_forward.3} parent=116 // loop_header_branch
                  %670 = sbr.rel (%p668) target = $region131
                $region128: #{resblock_forward.3} parent=116 // loop_body
                  %v674 = vld [vmem:[%s672] sm:$0xf]
                  %675 = vst [vmem:[%s673] sm:$0xf] %v674
                  %v676 = vld [vmem:[%s672 + $0x10] sm:$0xf]
                  %677 = vst [vmem:[%s673 + $0x4] sm:$0xf] %v676
                  %v678 = vld [vmem:[%s672 + $0x20] sm:$0xf]
                  %679 = vst [vmem:[%s673 + $0x8] sm:$0xf] %v678
                  %v680 = vld [vmem:[%s672 + $0x30] sm:$0xf]
                  %681 = vst [vmem:[%s673 + $0xc] sm:$0xf] %v680
                $region129: #{resblock_forward.3} parent=116 // loop_footer
                  %s671 = sadd.s32 1, %s667
                $region130: #{resblock_forward.3} parent=116 // loop_footer_branch
                  %666 = sbr.rel target = $region126
                $region131: #{resblock_forward.3} parent=116 // loop_exit
                  _
              $region117: #{resblock_forward.3} parent=101 // pred_fallthru
                _
            $region102: #{resblock_forward.3} parent=97 // pred_fallthru
              _
            // Predicated region
            $region103: #{resblock_forward.3} parent=97 // pred_check
              _
            $region104: #{resblock_forward.3} parent=97 // pred_check_branch
              %637 = sbr.rel (0) target = $region106
            $region105: #{resblock_forward.3} parent=97 // pred_region
              loop: start=0, step=1, limit=1
              $region107: #{resblock_forward.3} parent=105 // loop_pre_header
                _
              $region108: #{resblock_forward.3} parent=105 // loop_header
                %s640 = sphi 0, %s644
                %p641 = scmp.ge.s32.totalorder %s640, 1
                %s645 = sphi %s631, %s631
                %s646 = sphi %s625, %s625
              $region109: #{resblock_forward.3} parent=105 // loop_header_branch
                %643 = sbr.rel (%p641) target = $region113
              $region110: #{resblock_forward.3} parent=105 // loop_body
                %v647 = vld [vmem:[%s645] sm:$0xf]
                %648 = vst [vmem:[%s646] sm:$0xf] %v647
                %v649 = vld [vmem:[%s645 + $0x10] sm:$0xf]
                %650 = vst [vmem:[%s646 + $0x4] sm:$0xf] %v649
                %v651 = vld [vmem:[%s645 + $0x20] sm:$0xf]
                %652 = vst [vmem:[%s646 + $0x8] sm:$0xf] %v651
                %v653 = vld [vmem:[%s645 + $0x30] sm:$0xf]
                %654 = vst [vmem:[%s646 + $0xc] sm:$0xf] %v653
              $region111: #{resblock_forward.3} parent=105 // loop_footer
                %s644 = sadd.s32 1, %s640
              $region112: #{resblock_forward.3} parent=105 // loop_footer_branch
                %639 = sbr.rel target = $region108
              $region113: #{resblock_forward.3} parent=105 // loop_exit
                _
            $region106: #{resblock_forward.3} parent=97 // pred_fallthru
              _
          $region98: #{resblock_forward.3} parent=93 // pred_fallthru
            _
          %682 = vnop
        $region94: #{resblock_forward.3} parent=23 // pred_fallthru
          _
      $region24: #{resblock_forward.3} parent=5 // pred_fallthru
        _
      %p683 = scmp.le.s32.totalorder 1, %s10
      %p684 = scmp.lt.s32.totalorder %s10, 3
      %p685 = pnand %p683, %p684
      %p686 = pneg %p685
      // Predicated region
      $region132: #{resblock_forward.3} parent=5 // pred_check
        _
      $region133: #{resblock_forward.3} parent=5 // pred_check_branch
        %688 = sbr.rel (%p685) target = $region135
      $region134: #{resblock_forward.3} parent=5 // pred_region
        %s689 = ssub.s32 %s10, 1
        %s690 = sand.u32 %s37, 1
        %s691 = sand.u32 %s37, 1
        %s692 = smul.addr %s691, 48
        %s693 = scalar_lea.vmem [#allocation2], %s692
        // Predicated region
        $region136: #{resblock_forward.3} parent=134 // pred_check
          %p694 = pneg %p50
        $region137: #{resblock_forward.3} parent=134 // pred_check_branch
          %696 = sbr.rel (%p694) target = $region139
        $region138: #{resblock_forward.3} parent=134 // pred_region
          _
        $region139: #{resblock_forward.3} parent=134 // pred_fallthru
          _
        %s697 = sand.u32 %s69, 1
        %s698 = sand.u32 %s69, 1
        %s699 = smul.addr %s698, 16
        %s700 = scalar_lea.vmem [#allocation3], %s699
        // Predicated region
        $region140: #{resblock_forward.3} parent=134 // pred_check
          %p701 = pneg %p82
        $region141: #{resblock_forward.3} parent=134 // pred_check_branch
          %703 = sbr.rel (%p701) target = $region143
        $region142: #{resblock_forward.3} parent=134 // pred_region
          _
        $region143: #{resblock_forward.3} parent=134 // pred_fallthru
          _
        %s704 = sand.u32 %s37, 1
        %s705 = sand.u32 %s37, 1
        %s706 = smul.addr %s705, 48
        %s707 = scalar_lea.vmem [#allocation2], %s706
        %p708 = pneg %p50
        %p709 = pneg %p47
        %s710 = sand.u32 %s69, 1
        %s711 = sand.u32 %s69, 1
        %s712 = smul.addr %s711, 16
        %s713 = scalar_lea.vmem [#allocation3], %s712
        %p714 = pneg %p82
        %p715 = pneg %p79
        %p716 = pneg %p103
        %p717 = pneg %p100
        %p718 = pneg %p124
        %p719 = pneg %p121
        %p720 = pneg %p152
        %p721 = pneg %p149
        %s722 = smul.u32 3, %s20
        %p723 = scmp.lt.s32.totalorder %s19, 1
        %s724 = scalar_select %p723, %s19, 1
        %p725 = scmp.lt.s32.totalorder %s722, 2
        %s726 = scalar_select %p725, %s722, 2
        %s727 = smul.addr %s724, 12
        %s728 = sadd.s32 %s726, %s727
        %s729 = smul.addr %s728, 4
        %s730 = scalar_lea.vmem %s4, %s729
        %s731 = smul.u32 3, %s20
        %s732 = ssub.s32 4, %s731
        %p733 = scmp.lt.s32.totalorder %s732, 3
        %s734 = scalar_select %p733, %s732, 3
        %s735 = smul.u32 256, %s734
        %s736 = sadd.s32 %s20, 1
        %s737 = smul.u32 %s736, 3
        %s738 = smul.u32 3, %s20
        %p739 = scmp.lt.s32.totalorder %s19, 1
        %s740 = scalar_select %p739, %s19, 1
        %p741 = scmp.lt.s32.totalorder %s738, 2
        %s742 = scalar_select %p741, %s738, 2
        %s743 = smul.addr %s740, 12
        %s744 = sadd.s32 %s742, %s743
        %s745 = smul.addr %s744, 4
        %s746 = scalar_lea.vmem %s4, %s745
        %s747 = smul.u32 3, %s20
        %v749 = vld [vmem:[%s693] sm:$0xff]
        %v750 = vld [vmem:[%s693 + $0x8] sm:$0xf]
        %v751 = vld [vmem:[%s693 + $0xc] sm:$0xff]
        %v752 = vld [vmem:[%s693 + $0x14] sm:$0xf]
        %v753 = vld [vmem:[%s693 + $0x18] sm:$0xff]
        %v754 = vld [vmem:[%s693 + $0x20] sm:$0xf]
        %v755 = vld [vmem:[%s693 + $0x24] sm:$0xff]
        %v756 = vld [vmem:[%s693 + $0x2c] sm:$0xf]
        %v757 = vld [vmem:[%s700] sm:$0xf]
        %v758 = vld [vmem:[%s700 + $0x4] sm:$0xf]
        %v759 = vld [vmem:[%s700 + $0x8] sm:$0xf]
        %v760 = vld [vmem:[%s700 + $0xc] sm:$0xf]
        %v769 = vunpack.c.l.b16 %v749
        %v770 = vunpack.c.h.b16 %v749
        %v771 = vunpack.c.l.b16 %v750
        %v772 = vunpack.c.l.b16 %v751
        %v773 = vunpack.c.h.b16 %v751
        %v774 = vunpack.c.l.b16 %v752
        %v775 = vunpack.c.l.b16 %v753
        %v776 = vunpack.c.h.b16 %v753
        %v777 = vunpack.c.l.b16 %v754
        %v778 = vunpack.c.l.b16 %v755
        %v779 = vunpack.c.h.b16 %v755
        %v780 = vunpack.c.l.b16 %v756
        %v781 = vpack.c.b16 %v772, %v769
        %v782 = vpack.c.b16 %v773, %v770
        %v783 = vpack.c.b16 %v774, %v771
        %v784 = vpack.c.b16 %v778, %v775
        %v785 = vpack.c.b16 %v779, %v776
        %v786 = vpack.c.b16 %v780, %v777
        %v797 = vunpack.c.l.b16 %v757
        %v798 = vunpack.c.l.b16 %v758
        %v799 = vunpack.c.l.b16 %v759
        %v800 = vunpack.c.l.b16 %v760
        %v801 = vpack.c.b16 %v798, %v797
        %v802 = vpack.c.b16 %v800, %v799
        %803 = vrot.lane.b32.xlu0 %v781, 127
        %v804 = vpop.permute.xlu0 %803
        %805 = vrot.lane.b32.xlu0 %v782, 127
        %v806 = vpop.permute.xlu0 %805
        %807 = vrot.lane.b32.xlu0 %v783, 127
        %v808 = vpop.permute.xlu0 %807
        %809 = vrot.lane.b32.xlu0 %v801, 127
        %v810 = vpop.permute.xlu0 %809
        %811 = vrot.lane.b32.xlu0 %v784, 127
        %v812 = vpop.permute.xlu0 %811
        %813 = vrot.lane.b32.xlu0 %v785, 127
        %v814 = vpop.permute.xlu0 %813
        %815 = vrot.lane.b32.xlu0 %v786, 127
        %v816 = vpop.permute.xlu0 %815
        %817 = vrot.lane.b32.xlu0 %v802, 127
        %v818 = vpop.permute.xlu0 %817
        %vm819 = vcmask 1039360
        %v820 = vsel %vm819, %v804, %v806
        %v821 = vsel %vm819, %v806, %v808
        %v822 = vsel %vm819, %v808, %v810
        %v823 = vsel %vm819, %v812, %v814
        %v824 = vsel %vm819, %v814, %v816
        %v825 = vsel %vm819, %v816, %v818
        %832 = vrot.lane.b32.xlu0 %v781, 126
        %v833 = vpop.permute.xlu0 %832
        %834 = vrot.lane.b32.xlu0 %v782, 126
        %v835 = vpop.permute.xlu0 %834
        %836 = vrot.lane.b32.xlu0 %v783, 126
        %v837 = vpop.permute.xlu0 %836
        %838 = vrot.lane.b32.xlu0 %v801, 126
        %v839 = vpop.permute.xlu0 %838
        %840 = vrot.lane.b32.xlu0 %v784, 126
        %v841 = vpop.permute.xlu0 %840
        %842 = vrot.lane.b32.xlu0 %v785, 126
        %v843 = vpop.permute.xlu0 %842
        %844 = vrot.lane.b32.xlu0 %v786, 126
        %v845 = vpop.permute.xlu0 %844
        %846 = vrot.lane.b32.xlu0 %v802, 126
        %v847 = vpop.permute.xlu0 %846
        %vm848 = vcmask 1031168
        %v849 = vsel %vm848, %v833, %v835
        %v850 = vsel %vm848, %v835, %v837
        %v851 = vsel %vm848, %v837, %v839
        %v852 = vsel %vm848, %v841, %v843
        %v853 = vsel %vm848, %v843, %v845
        %v854 = vsel %vm848, %v845, %v847
        %861 = vrot.lane.b32.xlu0 %v781, 110
        %v862 = vpop.permute.xlu0 %861
        %863 = vrot.lane.b32.xlu0 %v782, 110
        %v864 = vpop.permute.xlu0 %863
        %865 = vrot.lane.b32.xlu0 %v783, 110
        %v866 = vpop.permute.xlu0 %865
        %867 = vrot.lane.b32.xlu0 %v801, 110
        %v868 = vpop.permute.xlu0 %867
        %869 = vrot.lane.b32.xlu0 %v784, 110
        %v870 = vpop.permute.xlu0 %869
        %871 = vrot.lane.b32.xlu0 %v785, 110
        %v872 = vpop.permute.xlu0 %871
        %873 = vrot.lane.b32.xlu0 %v786, 110
        %v874 = vpop.permute.xlu0 %873
        %875 = vrot.lane.b32.xlu0 %v802, 110
        %v876 = vpop.permute.xlu0 %875
        %vm877 = vcmask 900096
        %v878 = vsel %vm877, %v862, %v864
        %v879 = vsel %vm877, %v864, %v866
        %v880 = vsel %vm877, %v866, %v868
        %v881 = vsel %vm877, %v870, %v872
        %v882 = vsel %vm877, %v872, %v874
        %v883 = vsel %vm877, %v874, %v876
        %890 = vrot.lane.b32.xlu0 %v781, 109
        %v891 = vpop.permute.xlu0 %890
        %892 = vrot.lane.b32.xlu0 %v782, 109
        %v893 = vpop.permute.xlu0 %892
        %894 = vrot.lane.b32.xlu0 %v783, 109
        %v895 = vpop.permute.xlu0 %894
        %896 = vrot.lane.b32.xlu0 %v801, 109
        %v897 = vpop.permute.xlu0 %896
        %898 = vrot.lane.b32.xlu0 %v784, 109
        %v899 = vpop.permute.xlu0 %898
        %900 = vrot.lane.b32.xlu0 %v785, 109
        %v901 = vpop.permute.xlu0 %900
        %902 = vrot.lane.b32.xlu0 %v786, 109
        %v903 = vpop.permute.xlu0 %902
        %904 = vrot.lane.b32.xlu0 %v802, 109
        %v905 = vpop.permute.xlu0 %904
        %vm906 = vcmask 891904
        %v907 = vsel %vm906, %v891, %v893
        %v908 = vsel %vm906, %v893, %v895
        %v909 = vsel %vm906, %v895, %v897
        %v910 = vsel %vm906, %v899, %v901
        %v911 = vsel %vm906, %v901, %v903
        %v912 = vsel %vm906, %v903, %v905
        %919 = vrot.lane.b32.xlu0 %v781, 108
        %v920 = vpop.permute.xlu0 %919
        %921 = vrot.lane.b32.xlu0 %v782, 108
        %v922 = vpop.permute.xlu0 %921
        %923 = vrot.lane.b32.xlu0 %v783, 108
        %v924 = vpop.permute.xlu0 %923
        %925 = vrot.lane.b32.xlu0 %v801, 108
        %v926 = vpop.permute.xlu0 %925
        %927 = vrot.lane.b32.xlu0 %v784, 108
        %v928 = vpop.permute.xlu0 %927
        %929 = vrot.lane.b32.xlu0 %v785, 108
        %v930 = vpop.permute.xlu0 %929
        %931 = vrot.lane.b32.xlu0 %v786, 108
        %v932 = vpop.permute.xlu0 %931
        %933 = vrot.lane.b32.xlu0 %v802, 108
        %v934 = vpop.permute.xlu0 %933
        %vm935 = vcmask 883712
        %v936 = vsel %vm935, %v920, %v922
        %v937 = vsel %vm935, %v922, %v924
        %v938 = vsel %vm935, %v924, %v926
        %v939 = vsel %vm935, %v928, %v930
        %v940 = vsel %vm935, %v930, %v932
        %v941 = vsel %vm935, %v932, %v934
        %948 = vrot.lane.b32.xlu0 %v781, 92
        %v949 = vpop.permute.xlu0 %948
        %950 = vrot.lane.b32.xlu0 %v782, 92
        %v951 = vpop.permute.xlu0 %950
        %952 = vrot.lane.b32.xlu0 %v783, 92
        %v953 = vpop.permute.xlu0 %952
        %954 = vrot.lane.b32.xlu0 %v801, 92
        %v955 = vpop.permute.xlu0 %954
        %956 = vrot.lane.b32.xlu0 %v784, 92
        %v957 = vpop.permute.xlu0 %956
        %958 = vrot.lane.b32.xlu0 %v785, 92
        %v959 = vpop.permute.xlu0 %958
        %960 = vrot.lane.b32.xlu0 %v786, 92
        %v961 = vpop.permute.xlu0 %960
        %962 = vrot.lane.b32.xlu0 %v802, 92
        %v963 = vpop.permute.xlu0 %962
        %vm964 = vcmask 752640
        %v965 = vsel %vm964, %v949, %v951
        %v966 = vsel %vm964, %v951, %v953
        %v967 = vsel %vm964, %v953, %v955
        %v968 = vsel %vm964, %v957, %v959
        %v969 = vsel %vm964, %v959, %v961
        %v970 = vsel %vm964, %v961, %v963
        %977 = vrot.lane.b32.xlu0 %v781, 91
        %v978 = vpop.permute.xlu0 %977
        %979 = vrot.lane.b32.xlu0 %v782, 91
        %v980 = vpop.permute.xlu0 %979
        %981 = vrot.lane.b32.xlu0 %v783, 91
        %v982 = vpop.permute.xlu0 %981
        %983 = vrot.lane.b32.xlu0 %v801, 91
        %v984 = vpop.permute.xlu0 %983
        %985 = vrot.lane.b32.xlu0 %v784, 91
        %v986 = vpop.permute.xlu0 %985
        %987 = vrot.lane.b32.xlu0 %v785, 91
        %v988 = vpop.permute.xlu0 %987
        %989 = vrot.lane.b32.xlu0 %v786, 91
        %v990 = vpop.permute.xlu0 %989
        %991 = vrot.lane.b32.xlu0 %v802, 91
        %v992 = vpop.permute.xlu0 %991
        %vm993 = vcmask 744448
        %v994 = vsel %vm993, %v978, %v980
        %v995 = vsel %vm993, %v980, %v982
        %v996 = vsel %vm993, %v982, %v984
        %v997 = vsel %vm993, %v986, %v988
        %v998 = vsel %vm993, %v988, %v990
        %v999 = vsel %vm993, %v990, %v992
        %1006 = vrot.lane.b32.xlu0 %v781, 90
        %v1007 = vpop.permute.xlu0 %1006
        %1008 = vrot.lane.b32.xlu0 %v782, 90
        %v1009 = vpop.permute.xlu0 %1008
        %1010 = vrot.lane.b32.xlu0 %v783, 90
        %v1011 = vpop.permute.xlu0 %1010
        %1012 = vrot.lane.b32.xlu0 %v801, 90
        %v1013 = vpop.permute.xlu0 %1012
        %1014 = vrot.lane.b32.xlu0 %v784, 90
        %v1015 = vpop.permute.xlu0 %1014
        %1016 = vrot.lane.b32.xlu0 %v785, 90
        %v1017 = vpop.permute.xlu0 %1016
        %1018 = vrot.lane.b32.xlu0 %v786, 90
        %v1019 = vpop.permute.xlu0 %1018
        %1020 = vrot.lane.b32.xlu0 %v802, 90
        %v1021 = vpop.permute.xlu0 %1020
        %vm1022 = vcmask 736256
        %v1023 = vsel %vm1022, %v1007, %v1009
        %v1024 = vsel %vm1022, %v1009, %v1011
        %v1025 = vsel %vm1022, %v1011, %v1013
        %v1026 = vsel %vm1022, %v1015, %v1017
        %v1027 = vsel %vm1022, %v1017, %v1019
        %v1028 = vsel %vm1022, %v1019, %v1021
        %v1035 = vld [vmem:[%s2] sm:$0xff]
        %v1036 = vld [vmem:[%s2 + $0x8] sm:$0xf]
        %v1037 = vld [vmem:[%s2 + $0xc] sm:$0xff]
        %v1038 = vld [vmem:[%s2 + $0x14] sm:$0xf]
        %v1039 = vld [vmem:[%s2 + $0x18] sm:$0xff]
        %v1040 = vld [vmem:[%s2 + $0x20] sm:$0xf]
        %v1041 = vld [vmem:[%s2 + $0x24] sm:$0xff]
        %v1042 = vld [vmem:[%s2 + $0x2c] sm:$0xf]
        %v1043 = vld [vmem:[%s3] sm:$0xff]
        %v1044 = vld [vmem:[%s3 + $0x8] sm:$0xff]
        %v1045 = vld [vmem:[%s3 + $0x10] sm:$0xff]
        %v1046 = vld [vmem:[%s3 + $0x18] sm:$0xff]
        %1048 = vset.pattern.permute.xlu0 0
        %1049 = vperm.xlu0 %1048, %v1043
        %v1050 = vpop.permute.xlu0 %1049
        %1053 = vset.pattern.permute.xlu0 0
        %1054 = vperm.xlu0 %1053, %v1044
        %v1055 = vpop.permute.xlu0 %1054
        %1058 = vset.pattern.permute.xlu0 0
        %1059 = vperm.xlu0 %1058, %v1045
        %v1060 = vpop.permute.xlu0 %1059
        %1063 = vset.pattern.permute.xlu0 0
        %1064 = vperm.xlu0 %1063, %v1046
        %v1065 = vpop.permute.xlu0 %1064
        %v1075 = vunpack.c.l.b16 %v1035
        %v1076 = vunpack.c.h.b16 %v1035
        %v1077 = vunpack.c.l.b16 %v1036
        %v1078 = vunpack.c.l.b16 %v1037
        %v1079 = vunpack.c.h.b16 %v1037
        %v1080 = vunpack.c.l.b16 %v1038
        %v1081 = vunpack.c.l.b16 %v1039
        %v1082 = vunpack.c.h.b16 %v1039
        %v1083 = vunpack.c.l.b16 %v1040
        %v1084 = vunpack.c.l.b16 %v1041
        %v1085 = vunpack.c.h.b16 %v1041
        %v1086 = vunpack.c.l.b16 %v1042
        %v1087 = vpack.c.b16 %v1078, %v1075
        %v1088 = vpack.c.b16 %v1079, %v1076
        %v1089 = vpack.c.b16 %v1080, %v1077
        %v1090 = vpack.c.b16 %v1084, %v1081
        %v1091 = vpack.c.b16 %v1085, %v1082
        %v1092 = vpack.c.b16 %v1086, %v1083
        %vm1097 = vcmask 261120
        %v1099 = vsel %vm1097, %v1089, 0
        %v1102 = vsel %vm1097, %v1092, 0
        %1104 = vmatprep.subr.bf16.mxu0 %v782
        %1105 = vmatpush1.bf16.msra.mxu0 %v781
        %1106 = vmatprep.subr.bf16.mxu0 %v785
        %1107 = vmatpush1.bf16.msra.mxu0 %v784
        %1108 = vmatprep.subr.bf16.mxu0 %v821
        %1109 = vmatpush1.bf16.msra.mxu0 %v820
        %1110 = vmatprep.subr.bf16.mxu0 %v824
        %1111 = vmatpush1.bf16.msra.mxu0 %v823
        %1112 = vmatprep.subr.bf16.mxu0 %v850
        %1113 = vmatpush1.bf16.msra.mxu0 %v849
        %1114 = vmatprep.subr.bf16.mxu0 %v853
        %1115 = vmatpush1.bf16.msra.mxu0 %v852
        %1116 = vmatprep.subr.bf16.mxu0 %v879
        %1117 = vmatpush1.bf16.msra.mxu0 %v878
        %1118 = vmatprep.subr.bf16.mxu0 %v882
        %1119 = vmatpush1.bf16.msra.mxu0 %v881
        %1120 = vmatprep.subr.bf16.mxu0 %v908
        %1121 = vmatpush1.bf16.msra.mxu0 %v907
        %1122 = vmatprep.subr.bf16.mxu0 %v911
        %1123 = vmatpush1.bf16.msra.mxu0 %v910
        %1124 = vmatprep.subr.bf16.mxu0 %v937
        %1125 = vmatpush1.bf16.msra.mxu0 %v936
        %1126 = vmatprep.subr.bf16.mxu0 %v940
        %1127 = vmatpush1.bf16.msra.mxu0 %v939
        %1128 = vmatprep.subr.bf16.mxu0 %v966
        %1129 = vmatpush1.bf16.msra.mxu0 %v965
        %1130 = vmatprep.subr.bf16.mxu0 %v969
        %1131 = vmatpush1.bf16.msra.mxu0 %v968
        %1132 = vmatprep.subr.bf16.mxu0 %v995
        %1133 = vmatpush1.bf16.msra.mxu0 %v994
        %1134 = vmatprep.subr.bf16.mxu0 %v998
        %1135 = vmatpush1.bf16.msra.mxu0 %v997
        %1136 = vmatprep.mubr.bf16.mxu0 %v1088
        %1137 = vmatmul.mubr.bf16.gmra.mrb[0].mxu0 %v1087
        %v1138 = vpop.f32.mrb[0].mxu0
        %v1139 = vadd.f32 %v1050, %v1138
        %v1140 = vpop.f32.mrb[0].mxu0
        %v1141 = vadd.f32 %v1050, %v1140
        %v1142 = vpop.f32.mrb[0].mxu0
        %v1143 = vadd.f32 %v1055, %v1142
        %v1144 = vpop.f32.mrb[0].mxu0
        %v1145 = vadd.f32 %v1055, %v1144
        %1146 = vmatprep.mubr.bf16.mxu0 %v1091
        %1147 = vmatmul.mubr.bf16.gmra.mrb[0].mxu0 %v1090
        %v1148 = vpop.f32.mrb[0].mxu0
        %v1149 = vadd.f32 %v1060, %v1148
        %v1150 = vpop.f32.mrb[0].mxu0
        %v1151 = vadd.f32 %v1060, %v1150
        %v1152 = vpop.f32.mrb[0].mxu0
        %v1153 = vadd.f32 %v1065, %v1152
        %v1154 = vpop.f32.mrb[0].mxu0
        %v1155 = vadd.f32 %v1065, %v1154
        %1156 = vdwg.mxu0
        %1157 = vmatprep.subr.bf16.mxu0 %v1024
        %1158 = vmatpush1.bf16.msra.mxu0 %v1023
        %1159 = vmatprep.subr.bf16.mxu0 %v1027
        %1160 = vmatpush1.bf16.msra.mxu0 %v1026
        %1161 = vmatprep.subr.bf16.mxu0 0
        %1162 = vmatpush1.bf16.msra.mxu0 0
        %1163 = vmatprep.subr.bf16.mxu0 0
        %1164 = vmatpush1.bf16.msra.mxu0 0
        %1165 = vmatprep.subr.bf16.mxu0 0
        %1166 = vmatpush1.bf16.msra.mxu0 0
        %1167 = vmatprep.subr.bf16.mxu0 0
        %1168 = vmatpush1.bf16.msra.mxu0 0
        %1169 = vmatprep.subr.bf16.mxu0 0
        %1170 = vmatpush1.bf16.msra.mxu0 0
        %1171 = vmatprep.subr.bf16.mxu0 0
        %1172 = vmatpush1.bf16.msra.mxu0 0
        %1173 = vmatprep.subr.bf16.mxu0 0
        %1174 = vmatpush1.bf16.msra.mxu0 0
        %1175 = vmatprep.subr.bf16.mxu0 0
        %1176 = vmatpush1.bf16.msra.mxu0 0
        %1177 = vmatprep.subr.bf16.mxu0 0
        %1178 = vmatpush1.bf16.msra.mxu0 0
        %1179 = vmatprep.subr.bf16.mxu0 0
        %1180 = vmatpush1.bf16.msra.mxu0 0
        %1181 = vmatprep.subr.bf16.mxu0 0
        %1182 = vmatpush1.bf16.msra.mxu0 0
        %1183 = vmatprep.subr.bf16.mxu0 0
        %1184 = vmatpush1.bf16.msra.mxu0 0
        %1185 = vmatprep.subr.bf16.mxu0 0
        %1186 = vmatpush1.bf16.msra.mxu0 0
        %1187 = vmatprep.subr.bf16.mxu0 0
        %1188 = vmatpush1.bf16.msra.mxu0 0
        %1189 = vmatprep.mubr.bf16.mxu0 0
        %1190 = vmatmul.mubr.bf16.gmra.mrb[0].mxu0 %v1099
        %v1191 = vpop.f32.mrb[0].mxu0
        %v1192 = vadd.f32 %v1139, %v1191
        %v1193 = vpop.f32.mrb[0].mxu0
        %v1194 = vadd.f32 %v1141, %v1193
        %v1195 = vpop.f32.mrb[0].mxu0
        %v1196 = vadd.f32 %v1143, %v1195
        %v1197 = vpop.f32.mrb[0].mxu0
        %v1198 = vadd.f32 %v1145, %v1197
        %1199 = vmatprep.mubr.bf16.mxu0 0
        %1200 = vmatmul.mubr.bf16.gmra.mrb[0].mxu0 %v1102
        %v1201 = vpop.f32.mrb[0].mxu0
        %v1202 = vadd.f32 %v1149, %v1201
        %v1203 = vpop.f32.mrb[0].mxu0
        %v1204 = vadd.f32 %v1151, %v1203
        %v1205 = vpop.f32.mrb[0].mxu0
        %v1206 = vadd.f32 %v1153, %v1205
        %v1207 = vpop.f32.mrb[0].mxu0
        %v1208 = vadd.f32 %v1155, %v1207
        %1209 = vdwg.mxu0
        %1210 = vmatprep.subr.bf16.mxu0 0
        %1211 = vmatpush1.bf16.msra.mxu0 %v783
        %1212 = vmatprep.subr.bf16.mxu0 0
        %1213 = vmatpush1.bf16.msra.mxu0 %v786
        %1214 = vmatprep.subr.bf16.mxu0 0
        %1215 = vmatpush1.bf16.msra.mxu0 %v822
        %1216 = vmatprep.subr.bf16.mxu0 0
        %1217 = vmatpush1.bf16.msra.mxu0 %v825
        %1218 = vmatprep.subr.bf16.mxu0 0
        %1219 = vmatpush1.bf16.msra.mxu0 %v851
        %1220 = vmatprep.subr.bf16.mxu0 0
        %1221 = vmatpush1.bf16.msra.mxu0 %v854
        %1222 = vmatprep.subr.bf16.mxu0 0
        %1223 = vmatpush1.bf16.msra.mxu0 %v880
        %1224 = vmatprep.subr.bf16.mxu0 0
        %1225 = vmatpush1.bf16.msra.mxu0 %v883
        %1226 = vmatprep.subr.bf16.mxu0 0
        %1227 = vmatpush1.bf16.msra.mxu0 %v909
        %1228 = vmatprep.subr.bf16.mxu0 0
        %1229 = vmatpush1.bf16.msra.mxu0 %v912
        %1230 = vmatprep.subr.bf16.mxu0 0
        %1231 = vmatpush1.bf16.msra.mxu0 %v938
        %1232 = vmatprep.subr.bf16.mxu0 0
        %1233 = vmatpush1.bf16.msra.mxu0 %v941
        %1234 = vmatprep.subr.bf16.mxu0 0
        %1235 = vmatpush1.bf16.msra.mxu0 %v967
        %1236 = vmatprep.subr.bf16.mxu0 0
        %1237 = vmatpush1.bf16.msra.mxu0 %v970
        %1238 = vmatprep.subr.bf16.mxu0 0
        %1239 = vmatpush1.bf16.msra.mxu0 %v996
        %1240 = vmatprep.subr.bf16.mxu0 0
        %1241 = vmatpush1.bf16.msra.mxu0 %v999
        %1242 = vmatprep.mubr.bf16.mxu0 %v1088
        %1243 = vmatmul.mubr.bf16.gmra.mrb[0].mxu0 %v1087
        %v1244 = vpop.f32.mrb[0].mxu0
        %v1245 = vadd.f32 %v1050, %v1244
        %v1246 = vpop.f32.mrb[0].mxu0
        %v1247 = vpop.f32.mrb[0].mxu0
        %v1248 = vadd.f32 %v1055, %v1247
        %v1249 = vpop.f32.mrb[0].mxu0
        %1250 = vmatprep.mubr.bf16.mxu0 %v1091
        %1251 = vmatmul.mubr.bf16.gmra.mrb[0].mxu0 %v1090
        %v1252 = vpop.f32.mrb[0].mxu0
        %v1253 = vadd.f32 %v1060, %v1252
        %v1254 = vpop.f32.mrb[0].mxu0
        %v1255 = vpop.f32.mrb[0].mxu0
        %v1256 = vadd.f32 %v1065, %v1255
        %v1257 = vpop.f32.mrb[0].mxu0
        %1258 = vdwg.mxu0
        %1259 = vmatprep.subr.bf16.mxu0 0
        %1260 = vmatpush1.bf16.msra.mxu0 %v1025
        %1261 = vmatprep.subr.bf16.mxu0 0
        %1262 = vmatpush1.bf16.msra.mxu0 %v1028
        %1263 = vmatprep.subr.bf16.mxu0 0
        %1264 = vmatpush1.bf16.msra.mxu0 0
        %1265 = vmatprep.subr.bf16.mxu0 0
        %1266 = vmatpush1.bf16.msra.mxu0 0
        %1267 = vmatprep.subr.bf16.mxu0 0
        %1268 = vmatpush1.bf16.msra.mxu0 0
        %1269 = vmatprep.subr.bf16.mxu0 0
        %1270 = vmatpush1.bf16.msra.mxu0 0
        %1271 = vmatprep.subr.bf16.mxu0 0
        %1272 = vmatpush1.bf16.msra.mxu0 0
        %1273 = vmatprep.subr.bf16.mxu0 0
        %1274 = vmatpush1.bf16.msra.mxu0 0
        %1275 = vmatprep.subr.bf16.mxu0 0
        %1276 = vmatpush1.bf16.msra.mxu0 0
        %1277 = vmatprep.subr.bf16.mxu0 0
        %1278 = vmatpush1.bf16.msra.mxu0 0
        %1279 = vmatprep.subr.bf16.mxu0 0
        %1280 = vmatpush1.bf16.msra.mxu0 0
        %1281 = vmatprep.subr.bf16.mxu0 0
        %1282 = vmatpush1.bf16.msra.mxu0 0
        %1283 = vmatprep.subr.bf16.mxu0 0
        %1284 = vmatpush1.bf16.msra.mxu0 0
        %1285 = vmatprep.subr.bf16.mxu0 0
        %1286 = vmatpush1.bf16.msra.mxu0 0
        %1287 = vmatprep.subr.bf16.mxu0 0
        %1288 = vmatpush1.bf16.msra.mxu0 0
        %1289 = vmatprep.subr.bf16.mxu0 0
        %1290 = vmatpush1.bf16.msra.mxu0 0
        %1291 = vmatprep.mubr.bf16.mxu0 0
        %1292 = vmatmul.mubr.bf16.gmra.mrb[0].mxu0 %v1099
        %v1293 = vpop.f32.mrb[0].mxu0
        %v1294 = vadd.f32 %v1245, %v1293
        %v1295 = vpop.f32.mrb[0].mxu0
        %v1296 = vpop.f32.mrb[0].mxu0
        %v1297 = vadd.f32 %v1248, %v1296
        %v1298 = vpop.f32.mrb[0].mxu0
        %1299 = vmatprep.mubr.bf16.mxu0 0
        %1300 = vmatmul.mubr.bf16.gmra.mrb[0].mxu0 %v1102
        %v1301 = vpop.f32.mrb[0].mxu0
        %v1302 = vadd.f32 %v1253, %v1301
        %v1303 = vpop.f32.mrb[0].mxu0
        %v1304 = vpop.f32.mrb[0].mxu0
        %v1305 = vadd.f32 %v1256, %v1304
        %v1306 = vpop.f32.mrb[0].mxu0
        %1307 = vdwg.mxu0
        %vm1308 = vcmp.ge.f32.partialorder %v1192, 0.0
        %vm1309 = vcmp.ge.f32.partialorder %v1194, 0.0
        %vm1310 = vcmp.ge.f32.partialorder %v1294, 0.0
        %vm1311 = vcmp.ge.f32.partialorder %v1196, 0.0
        %vm1312 = vcmp.ge.f32.partialorder %v1198, 0.0
        %vm1313 = vcmp.ge.f32.partialorder %v1297, 0.0
        %vm1314 = vcmp.ge.f32.partialorder %v1202, 0.0
        %vm1315 = vcmp.ge.f32.partialorder %v1204, 0.0
        %vm1316 = vcmp.ge.f32.partialorder %v1302, 0.0
        %vm1317 = vcmp.ge.f32.partialorder %v1206, 0.0
        %vm1318 = vcmp.ge.f32.partialorder %v1208, 0.0
        %vm1319 = vcmp.ge.f32.partialorder %v1305, 0.0
        %v1320 = vmul.f32 %v1192, 0.2
        %v1321 = vmul.f32 %v1194, 0.2
        %v1322 = vmul.f32 %v1294, 0.2
        %v1323 = vmul.f32 %v1196, 0.2
        %v1324 = vmul.f32 %v1198, 0.2
        %v1325 = vmul.f32 %v1297, 0.2
        %v1326 = vmul.f32 %v1202, 0.2
        %v1327 = vmul.f32 %v1204, 0.2
        %v1328 = vmul.f32 %v1302, 0.2
        %v1329 = vmul.f32 %v1206, 0.2
        %v1330 = vmul.f32 %v1208, 0.2
        %v1331 = vmul.f32 %v1305, 0.2
        %v1332 = vsel %vm1308, %v1192, %v1320
        %v1333 = vsel %vm1309, %v1194, %v1321
        %v1334 = vsel %vm1310, %v1294, %v1322
        %v1335 = vsel %vm1311, %v1196, %v1323
        %v1336 = vsel %vm1312, %v1198, %v1324
        %v1337 = vsel %vm1313, %v1297, %v1325
        %v1338 = vsel %vm1314, %v1202, %v1326
        %v1339 = vsel %vm1315, %v1204, %v1327
        %v1340 = vsel %vm1316, %v1302, %v1328
        %v1341 = vsel %vm1317, %v1206, %v1329
        %v1342 = vsel %vm1318, %v1208, %v1330
        %v1343 = vsel %vm1319, %v1305, %v1331
        %v1344 = vpack.c.bf16 %v1335, %v1332
        %v1345 = vpack.c.bf16 %v1336, %v1333
        %v1346 = vpack.c.bf16 %v1337, %v1334
        %v1347 = vpack.c.bf16 %v1341, %v1338
        %v1348 = vpack.c.bf16 %v1342, %v1339
        %v1349 = vpack.c.bf16 %v1343, %v1340
        %v1356 = vunpack.c.l.b16 %v1344
        %v1357 = vunpack.c.l.b16 %v1345
        %v1358 = vunpack.c.l.b16 %v1346
        %v1359 = vunpack.c.h.b16 %v1344
        %v1360 = vunpack.c.h.b16 %v1345
        %v1361 = vunpack.c.h.b16 %v1346
        %v1362 = vunpack.c.l.b16 %v1347
        %v1363 = vunpack.c.l.b16 %v1348
        %v1364 = vunpack.c.l.b16 %v1349
        %v1365 = vunpack.c.h.b16 %v1347
        %v1366 = vunpack.c.h.b16 %v1348
        %v1367 = vunpack.c.h.b16 %v1349
        %v1368 = vpack.c.b16 %v1357, %v1356
        %v1369 = vpack.c.b16 %v1358, %v1358
        %v1370 = vpack.c.b16 %v1360, %v1359
        %v1371 = vpack.c.b16 %v1361, %v1361
        %v1372 = vpack.c.b16 %v1363, %v1362
        %v1373 = vpack.c.b16 %v1364, %v1364
        %v1374 = vpack.c.b16 %v1366, %v1365
        %v1375 = vpack.c.b16 %v1367, %v1367
        %1384 = vst [vmem:[%s746] sm:$0xff] %v1368
        %1385 = vst [vmem:[%s746 + $0x8] sm:$0xf] %v1369
        %1386 = vst [vmem:[%s746 + $0xc] sm:$0xff] %v1370
        %1387 = vst [vmem:[%s746 + $0x14] sm:$0xf] %v1371
        %1388 = vst [vmem:[%s746 + $0x18] sm:$0xff] %v1372
        %1389 = vst [vmem:[%s746 + $0x20] sm:$0xf] %v1373
        %1390 = vst [vmem:[%s746 + $0x24] sm:$0xff] %v1374
        %1391 = vst [vmem:[%s746 + $0x2c] sm:$0xf] %v1375
        %s1392 = smul.u32 3, %s20
        %p1393 = scmp.lt.s32.totalorder %s19, 1
        %s1394 = scalar_select %p1393, %s19, 1
        %p1395 = scmp.lt.s32.totalorder %s1392, 2
        %s1396 = scalar_select %p1395, %s1392, 2
        %s1397 = smul.addr %s1394, 12
        %s1398 = sadd.s32 %s1396, %s1397
        %s1399 = smul.addr %s1398, 4
        %s1400 = scalar_lea.vmem %s4, %s1399
        // Predicated region
        $region144: #{resblock_forward.3} parent=134 // pred_check
          %p1401 = pneg %p149
        $region145: #{resblock_forward.3} parent=134 // pred_check_branch
          %1403 = sbr.rel (%p1401) target = $region147
        $region146: #{resblock_forward.3} parent=134 // pred_region
          %s1404 = smul.u32 3, %s20
        $region147: #{resblock_forward.3} parent=134 // pred_fallthru
          _
      $region135: #{resblock_forward.3} parent=5 // pred_fallthru
        _
      %p1405 = scmp.le.s32.totalorder 2, %s10
      // Predicated region
      $region148: #{resblock_forward.3} parent=5 // pred_check
        %p1406 = pneg %p1405
      $region149: #{resblock_forward.3} parent=5 // pred_check_branch
        %1408 = sbr.rel (%p1406) target = $region151
      $region150: #{resblock_forward.3} parent=5 // pred_region
        %s1409 = ssub.s32 %s10, 2
        // Predicated region
        $region152: #{resblock_forward.3} parent=150 // pred_check
          %p1410 = pneg %p155
        $region153: #{resblock_forward.3} parent=150 // pred_check_branch
          %1412 = sbr.rel (%p1410) target = $region155
        $region154: #{resblock_forward.3} parent=150 // pred_region
          %s1413 = smul.u32 3, %s22
          %p1414 = scmp.lt.s32.totalorder %s21, 1
          %s1415 = scalar_select %p1414, %s21, 1
          %p1416 = scmp.lt.s32.totalorder %s1413, 2
          %s1417 = scalar_select %p1416, %s1413, 2
          %s1418 = smul.addr %s1415, 12
          %s1419 = sadd.s32 %s1417, %s1418
          %s1420 = smul.addr %s1419, 4
          %s1421 = scalar_lea.vmem %s4, %s1420
        $region155: #{resblock_forward.3} parent=150 // pred_fallthru
          _
      $region151: #{resblock_forward.3} parent=5 // pred_fallthru
        _
    $region6: #{resblock_forward.3} parent=1 // loop_footer
      %s14 = sadd.s32 1, %s10
    $region7: #{resblock_forward.3} parent=1 // loop_footer_branch
      %9 = sbr.rel target = $region3
    $region8: #{resblock_forward.3} parent=1 // loop_exit
      _

// kernel: resblock_forward.5
$region0: #{resblock_forward.5}
  #allocation0 [shape = 'u32[]', space=smem, size = 0x4, offset = 0x4, fixed_abs, tag = 'smem constant byte address 0x4 - core index']
  #allocation1 [shape = 'u32[144,128]{1,0:T(1,128)}', space=vmem, size = 0x12000, scoped, tag = 'internal scratch']
  %s0 = inlined_call_operand.vmem [shape: bf16[2,128,256], index: 0, kind: input, shape index: {}, may-alias: {0,1}]
  %s1 = inlined_call_operand.vmem [shape: bf16[2,128,256], index: 1, kind: input, shape index: {}, may-alias: {0,1}]
  %s2 = inlined_call_operand.vmem [shape: bf16[64,1152], index: 2, kind: input, shape index: {}]
  %s3 = inlined_call_operand.vmem [shape: f32[64,1], index: 3, kind: input, shape index: {}]
  %s4 = inlined_call_operand.vmem [shape: f32[2,64,128], index: 4, kind: input, shape index: {}]
  %s5 = inlined_call_operand.vmem [shape: f32[2,64,128], index: 5, kind: output, shape index: {}]
  %s6 = sld [smem:[#allocation0]]
  $region135: #{resblock_forward.5} parent=0
    _
  %s8 = ssub.s32 1, %s6
  %s9 = scalar_select 0, %s8, %s6
  $region1: #{resblock_forward.5} parent=0
    #allocation2 [shape = 'u8[65536]{0}', space=vmem, size = 0x10000, scoped, tag = 'input window, operand 0']
    #allocation3 [shape = 'u8[65536]{0}', space=vmem, size = 0x10000, scoped, tag = 'input window, operand 1']
    loop: start=0, step=1, limit=4
    $region2: #{resblock_forward.5} parent=1 // loop_pre_header
      _
    $region3: #{resblock_forward.5} parent=1 // loop_header
      %s11 = sphi 0, %s15
      %p12 = scmp.ge.s32.totalorder %s11, 4
      %s18 = sphi 0, %s30
      %s19 = sphi 0, %s26
      %s20 = sphi 0, %s18
      %s21 = sphi 0, %s19
      %s22 = sphi 0, %s20
      %s23 = sphi 0, %s21
      %s35 = sphi 0, %s37
      %s38 = sphi 0, %s35
      %s39 = sphi 0, %s38
      %s55 = sphi 0, %s39
      %s65 = sphi 0, %s67
      %s68 = sphi 0, %s65
      %s69 = sphi 0, %s68
      %s85 = sphi 0, %s69
      %s89 = sphi 0, %s89
      %s91 = sphi 0, %s89
      %s92 = sphi 0, %s91
      %s106 = sphi 0, %s92
      %s110 = sphi 0, %s110
      %s112 = sphi 0, %s110
      %s113 = sphi 0, %s112
      %s127 = sphi 0, %s113
      %s135 = sphi 0, %s137
      %s138 = sphi 0, %s135
      %s139 = sphi 0, %s138
      %s155 = sphi 0, %s139
      %s163 = sphi 0, %s165
      %s166 = sphi 0, %s163
      %s167 = sphi 0, %s166
      %s183 = sphi 0, %s167
    $region4: #{resblock_forward.5} parent=1 // loop_header_branch
      %14 = sbr.rel (%p12) target = $region8
    $region5: #{resblock_forward.5} parent=1 // loop_body
      %s16 = ssub.s32 %s11, 1
      %s17 = ssub.s32 %s11, 2
      %s24 = sadd.s32 1, %s19
      %p25 = scmp.ge.s32.totalorder %s24, 1
      %s26 = scalar_select %p25, 0, %s24
      %s27 = sadd.s32 1, %s18
      %s28 = scalar_select %p25, %s27, %s18
      %p29 = scmp.ge.s32.totalorder %s28, 2
      %s30 = scalar_select %p29, 0, %s28
      %s31 = ssub.s32 %s18, %s30
      %s32 = ssub.s32 %s19, %s26
      %s33 = sor.u32 %s31, %s32
      %p34 = scmp.eq.s32.totalorder %s33, 0
      %s36 = sadd.s32 %s35, 1
      %s37 = scalar_select %p34, %s35, %s36
      %p40 = pneg %p34
      %p41 = scmp.eq.s32.totalorder %s11, 1
      %p42 = por %p40, %p41
      %p43 = scmp.ne.s32.totalorder %s35, %s38
      %p44 = scmp.eq.s32.totalorder %s11, 0
      %p45 = por %p43, %p44
      %p46 = scmp.ne.s32.totalorder %s35, %s38
      %p47 = scmp.eq.s32.totalorder %s16, 1
      %p48 = por %p46, %p47
      %p49 = scmp.ne.s32.totalorder %s38, %s39
      %p50 = scmp.eq.s32.totalorder %s16, 0
      %p51 = por %p49, %p50
      %p52 = scmp.ne.s32.totalorder %s38, %s39
      %p53 = scmp.eq.s32.totalorder %s17, 1
      %p54 = por %p52, %p53
      %p56 = scmp.ne.s32.totalorder %s39, %s55
      %p57 = scmp.eq.s32.totalorder %s17, 0
      %p58 = por %p56, %p57
      %s59 = sadd.s32 %s19, 1
      %s60 = sadd.s32 %s26, 1
      %s61 = ssub.s32 %s18, %s30
      %s62 = ssub.s32 %s59, %s60
      %s63 = sor.u32 %s61, %s62
      %p64 = scmp.eq.s32.totalorder %s63, 0
      %s66 = sadd.s32 %s65, 1
      %s67 = scalar_select %p64, %s65, %s66
      %p70 = pneg %p64
      %p71 = scmp.eq.s32.totalorder %s11, 1
      %p72 = por %p70, %p71
      %p73 = scmp.ne.s32.totalorder %s65, %s68
      %p74 = scmp.eq.s32.totalorder %s11, 0
      %p75 = por %p73, %p74
      %p76 = scmp.ne.s32.totalorder %s65, %s68
      %p77 = scmp.eq.s32.totalorder %s16, 1
      %p78 = por %p76, %p77
      %p79 = scmp.ne.s32.totalorder %s68, %s69
      %p80 = scmp.eq.s32.totalorder %s16, 0
      %p81 = por %p79, %p80
      %p82 = scmp.ne.s32.totalorder %s68, %s69
      %p83 = scmp.eq.s32.totalorder %s17, 1
      %p84 = por %p82, %p83
      %p86 = scmp.ne.s32.totalorder %s69, %s85
      %p87 = scmp.eq.s32.totalorder %s17, 0
      %p88 = por %p86, %p87
      %s90 = sadd.s32 %s89, 1
      %p93 = scmp.eq.s32.totalorder %s11, 1
      %p94 = scmp.ne.s32.totalorder %s89, %s91
      %p95 = scmp.eq.s32.totalorder %s11, 0
      %p96 = por %p94, %p95
      %p97 = scmp.ne.s32.totalorder %s89, %s91
      %p98 = scmp.eq.s32.totalorder %s16, 1
      %p99 = por %p97, %p98
      %p100 = scmp.ne.s32.totalorder %s91, %s92
      %p101 = scmp.eq.s32.totalorder %s16, 0
      %p102 = por %p100, %p101
      %p103 = scmp.ne.s32.totalorder %s91, %s92
      %p104 = scmp.eq.s32.totalorder %s17, 1
      %p105 = por %p103, %p104
      %p107 = scmp.ne.s32.totalorder %s92, %s106
      %p108 = scmp.eq.s32.totalorder %s17, 0
      %p109 = por %p107, %p108
      %s111 = sadd.s32 %s110, 1
      %p114 = scmp.eq.s32.totalorder %s11, 1
      %p115 = scmp.ne.s32.totalorder %s110, %s112
      %p116 = scmp.eq.s32.totalorder %s11, 0
      %p117 = por %p115, %p116
      %p118 = scmp.ne.s32.totalorder %s110, %s112
      %p119 = scmp.eq.s32.totalorder %s16, 1
      %p120 = por %p118, %p119
      %p121 = scmp.ne.s32.totalorder %s112, %s113
      %p122 = scmp.eq.s32.totalorder %s16, 0
      %p123 = por %p121, %p122
      %p124 = scmp.ne.s32.totalorder %s112, %s113
      %p125 = scmp.eq.s32.totalorder %s17, 1
      %p126 = por %p124, %p125
      %p128 = scmp.ne.s32.totalorder %s113, %s127
      %p129 = scmp.eq.s32.totalorder %s17, 0
      %p130 = por %p128, %p129
      %s131 = ssub.s32 %s18, %s30
      %s132 = ssub.s32 %s19, %s26
      %s133 = sor.u32 %s131, %s132
      %p134 = scmp.eq.s32.totalorder %s133, 0
      %s136 = sadd.s32 %s135, 1
      %s137 = scalar_select %p134, %s135, %s136
      %p140 = pneg %p134
      %p141 = scmp.eq.s32.totalorder %s11, 1
      %p142 = por %p140, %p141
      %p143 = scmp.ne.s32.totalorder %s135, %s138
      %p144 = scmp.eq.s32.totalorder %s11, 0
      %p145 = por %p143, %p144
      %p146 = scmp.ne.s32.totalorder %s135, %s138
      %p147 = scmp.eq.s32.totalorder %s16, 1
      %p148 = por %p146, %p147
      %p149 = scmp.ne.s32.totalorder %s138, %s139
      %p150 = scmp.eq.s32.totalorder %s16, 0
      %p151 = por %p149, %p150
      %p152 = scmp.ne.s32.totalorder %s138, %s139
      %p153 = scmp.eq.s32.totalorder %s17, 1
      %p154 = por %p152, %p153
      %p156 = scmp.ne.s32.totalorder %s139, %s155
      %p157 = scmp.eq.s32.totalorder %s17, 0
      %p158 = por %p156, %p157
      %s159 = ssub.s32 %s18, %s30
      %s160 = ssub.s32 %s19, %s26
      %s161 = sor.u32 %s159, %s160
      %p162 = scmp.eq.s32.totalorder %s161, 0
      %s164 = sadd.s32 %s163, 1
      %s165 = scalar_select %p162, %s163, %s164
      %p168 = pneg %p162
      %p169 = scmp.eq.s32.totalorder %s11, 1
      %p170 = por %p168, %p169
      %p171 = scmp.ne.s32.totalorder %s163, %s166
      %p172 = scmp.eq.s32.totalorder %s11, 0
      %p173 = por %p171, %p172
      %p174 = scmp.ne.s32.totalorder %s163, %s166
      %p175 = scmp.eq.s32.totalorder %s16, 1
      %p176 = por %p174, %p175
      %p177 = scmp.ne.s32.totalorder %s166, %s167
      %p178 = scmp.eq.s32.totalorder %s16, 0
      %p179 = por %p177, %p178
      %p180 = scmp.ne.s32.totalorder %s166, %s167
      %p181 = scmp.eq.s32.totalorder %s17, 1
      %p182 = por %p180, %p181
      %p184 = scmp.ne.s32.totalorder %s167, %s183
      %p185 = scmp.eq.s32.totalorder %s17, 0
      %p186 = por %p184, %p185
      %p187 = scmp.le.s32.totalorder 1, %s11
      %p188 = scmp.lt.s32.totalorder %s11, 3
      %p189 = pnand %p187, %p188
      %p190 = pneg %p189
      // Predicated region
      $region9: #{resblock_forward.5} parent=5 // pred_check
        _
      $region10: #{resblock_forward.5} parent=5 // pred_check_branch
        %192 = sbr.rel (%p189) target = $region12
      $region11: #{resblock_forward.5} parent=5 // pred_region
        %s193 = ssub.s32 %s11, 1
        // Predicated region
        $region13: #{resblock_forward.5} parent=11 // pred_check
          %p194 = pneg %p102
        $region14: #{resblock_forward.5} parent=11 // pred_check_branch
          %196 = sbr.rel (%p194) target = $region16
        $region15: #{resblock_forward.5} parent=11 // pred_region
          _
        $region16: #{resblock_forward.5} parent=11 // pred_fallthru
          _
        // Predicated region
        $region17: #{resblock_forward.5} parent=11 // pred_check
          %p197 = pneg %p123
        $region18: #{resblock_forward.5} parent=11 // pred_check_branch
          %199 = sbr.rel (%p197) target = $region20
        $region19: #{resblock_forward.5} parent=11 // pred_region
          _
        $region20: #{resblock_forward.5} parent=11 // pred_fallthru
          _
      $region12: #{resblock_forward.5} parent=5 // pred_fallthru
        _
      %p200 = scmp.lt.s32.totalorder %s11, 2
      // Predicated region
      $region21: #{resblock_forward.5} parent=5 // pred_check
        %p201 = pneg %p200
      $region22: #{resblock_forward.5} parent=5 // pred_check_branch
        %203 = sbr.rel (%p201) target = $region24
      $region23: #{resblock_forward.5} parent=5 // pred_region
        // Predicated region
        $region25: #{resblock_forward.5} parent=23 // pred_check
          %p204 = pneg %p45
        $region26: #{resblock_forward.5} parent=23 // pred_check_branch
          %206 = sbr.rel (%p204) target = $region28
        $region27: #{resblock_forward.5} parent=23 // pred_region
          %s207 = sand.u32 %s35, 1
          %s208 = sand.u32 %s35, 1
          %s209 = smul.addr %s208, 64
          %s210 = scalar_lea.vmem [#allocation2], %s209
          %s211 = smul.addr %s18, 32
          %s212 = sadd.s32 %s19, %s211
          %s213 = smul.addr %s212, 4
          %s214 = scalar_lea.vmem %s0, %s213
          // Predicated region
          $region29: #{resblock_forward.5} parent=27 // pred_check
            _
          $region30: #{resblock_forward.5} parent=27 // pred_check_branch
            %216 = sbr.rel (0) target = $region32
          $region31: #{resblock_forward.5} parent=27 // pred_region
            // Predicated region
            $region33: #{resblock_forward.5} parent=31 // pred_check
              _
            $region34: #{resblock_forward.5} parent=31 // pred_check_branch
              %218 = sbr.rel target = $region36
            $region35: #{resblock_forward.5} parent=31 // pred_region
              // Predicated region
              $region48: #{resblock_forward.5} parent=35 // pred_check
                _
              $region49: #{resblock_forward.5} parent=35 // pred_check_branch
                %263 = sbr.rel (0) target = $region51
              $region50: #{resblock_forward.5} parent=35 // pred_region
                loop: start=0, step=1, limit=1
                $region52: #{resblock_forward.5} parent=50 // loop_pre_header
                  _
                $region53: #{resblock_forward.5} parent=50 // loop_header
                  %s265 = sphi 0, %s269
                  %p266 = scmp.ge.s32.totalorder %s265, 1
                  %s270 = sphi %s214, %s214
                  %s271 = sphi %s210, %s210
                $region54: #{resblock_forward.5} parent=50 // loop_header_branch
                  %268 = sbr.rel (%p266) target = $region58
                $region55: #{resblock_forward.5} parent=50 // loop_body
                  _
                $region56: #{resblock_forward.5} parent=50 // loop_footer
                  %s269 = sadd.s32 1, %s265
                $region57: #{resblock_forward.5} parent=50 // loop_footer_branch
                  %264 = sbr.rel target = $region53
                $region58: #{resblock_forward.5} parent=50 // loop_exit
                  _
                loop: start=0, step=1, limit=1
                $region59: #{resblock_forward.5} parent=50 // loop_pre_header
                  _
                $region60: #{resblock_forward.5} parent=50 // loop_header
                  %s274 = sphi 0, %s278
                  %p275 = scmp.ge.s32.totalorder %s274, 1
                  %s279 = sphi %s214, %s214
                  %s280 = sphi %s210, %s210
                $region61: #{resblock_forward.5} parent=50 // loop_header_branch
                  %277 = sbr.rel (%p275) target = $region65
                $region62: #{resblock_forward.5} parent=50 // loop_body
                  %v281 = vld [vmem:[%s279] sm:$0xf]
                  %282 = vst [vmem:[%s280] sm:$0xf] %v281
                  %v283 = vld [vmem:[%s279 + $0x8] sm:$0xf]
                  %284 = vst [vmem:[%s280 + $0x4] sm:$0xf] %v283
                  %v285 = vld [vmem:[%s279 + $0x10] sm:$0xf]
                  %286 = vst [vmem:[%s280 + $0x8] sm:$0xf] %v285
                  %v287 = vld [vmem:[%s279 + $0x18] sm:$0xf]
                  %288 = vst [vmem:[%s280 + $0xc] sm:$0xf] %v287
                  %v289 = vld [vmem:[%s279 + $0x20] sm:$0xf]
                  %290 = vst [vmem:[%s280 + $0x10] sm:$0xf] %v289
                  %v291 = vld [vmem:[%s279 + $0x28] sm:$0xf]
                  %292 = vst [vmem:[%s280 + $0x14] sm:$0xf] %v291
                  %v293 = vld [vmem:[%s279 + $0x30] sm:$0xf]
                  %294 = vst [vmem:[%s280 + $0x18] sm:$0xf] %v293
                  %v295 = vld [vmem:[%s279 + $0x38] sm:$0xf]
                  %296 = vst [vmem:[%s280 + $0x1c] sm:$0xf] %v295
                  %v297 = vld [vmem:[%s279 + $0x40] sm:$0xf]
                  %298 = vst [vmem:[%s280 + $0x20] sm:$0xf] %v297
                  %v299 = vld [vmem:[%s279 + $0x48] sm:$0xf]
                  %300 = vst [vmem:[%s280 + $0x24] sm:$0xf] %v299
                  %v301 = vld [vmem:[%s279 + $0x50] sm:$0xf]
                  %302 = vst [vmem:[%s280 + $0x28] sm:$0xf] %v301
                  %v303 = vld [vmem:[%s279 + $0x58] sm:$0xf]
                  %304 = vst [vmem:[%s280 + $0x2c] sm:$0xf] %v303
                  %v305 = vld [vmem:[%s279 + $0x60] sm:$0xf]
                  %306 = vst [vmem:[%s280 + $0x30] sm:$0xf] %v305
                  %v307 = vld [vmem:[%s279 + $0x68] sm:$0xf]
                  %308 = vst [vmem:[%s280 + $0x34] sm:$0xf] %v307
                  %v309 = vld [vmem:[%s279 + $0x70] sm:$0xf]
                  %310 = vst [vmem:[%s280 + $0x38] sm:$0xf] %v309
                  %v311 = vld [vmem:[%s279 + $0x78] sm:$0xf]
                  %312 = vst [vmem:[%s280 + $0x3c] sm:$0xf] %v311
                $region63: #{resblock_forward.5} parent=50 // loop_footer
                  %s278 = sadd.s32 1, %s274
                $region64: #{resblock_forward.5} parent=50 // loop_footer_branch
                  %273 = sbr.rel target = $region60
                $region65: #{resblock_forward.5} parent=50 // loop_exit
                  _
              $region51: #{resblock_forward.5} parent=35 // pred_fallthru
                _
            $region36: #{resblock_forward.5} parent=31 // pred_fallthru
              _
            // Predicated region
            $region37: #{resblock_forward.5} parent=31 // pred_check
              _
            $region38: #{resblock_forward.5} parent=31 // pred_check_branch
              %220 = sbr.rel (0) target = $region40
            $region39: #{resblock_forward.5} parent=31 // pred_region
              loop: start=0, step=1, limit=1
              $region41: #{resblock_forward.5} parent=39 // loop_pre_header
                _
              $region42: #{resblock_forward.5} parent=39 // loop_header
                %s223 = sphi 0, %s227
                %p224 = scmp.ge.s32.totalorder %s223, 1
                %s228 = sphi %s214, %s214
                %s229 = sphi %s210, %s210
              $region43: #{resblock_forward.5} parent=39 // loop_header_branch
                %226 = sbr.rel (%p224) target = $region47
              $region44: #{resblock_forward.5} parent=39 // loop_body
                %v230 = vld [vmem:[%s228] sm:$0xf]
                %231 = vst [vmem:[%s229] sm:$0xf] %v230
                %v232 = vld [vmem:[%s228 + $0x8] sm:$0xf]
                %233 = vst [vmem:[%s229 + $0x4] sm:$0xf] %v232
                %v234 = vld [vmem:[%s228 + $0x10] sm:$0xf]
                %235 = vst [vmem:[%s229 + $0x8] sm:$0xf] %v234
                %v236 = vld [vmem:[%s228 + $0x18] sm:$0xf]
                %237 = vst [vmem:[%s229 + $0xc] sm:$0xf] %v236
                %v238 = vld [vmem:[%s228 + $0x20] sm:$0xf]
                %239 = vst [vmem:[%s229 + $0x10] sm:$0xf] %v238
                %v240 = vld [vmem:[%s228 + $0x28] sm:$0xf]
                %241 = vst [vmem:[%s229 + $0x14] sm:$0xf] %v240
                %v242 = vld [vmem:[%s228 + $0x30] sm:$0xf]
                %243 = vst [vmem:[%s229 + $0x18] sm:$0xf] %v242
                %v244 = vld [vmem:[%s228 + $0x38] sm:$0xf]
                %245 = vst [vmem:[%s229 + $0x1c] sm:$0xf] %v244
                %v246 = vld [vmem:[%s228 + $0x40] sm:$0xf]
                %247 = vst [vmem:[%s229 + $0x20] sm:$0xf] %v246
                %v248 = vld [vmem:[%s228 + $0x48] sm:$0xf]
                %249 = vst [vmem:[%s229 + $0x24] sm:$0xf] %v248
                %v250 = vld [vmem:[%s228 + $0x50] sm:$0xf]
                %251 = vst [vmem:[%s229 + $0x28] sm:$0xf] %v250
                %v252 = vld [vmem:[%s228 + $0x58] sm:$0xf]
                %253 = vst [vmem:[%s229 + $0x2c] sm:$0xf] %v252
                %v254 = vld [vmem:[%s228 + $0x60] sm:$0xf]
                %255 = vst [vmem:[%s229 + $0x30] sm:$0xf] %v254
                %v256 = vld [vmem:[%s228 + $0x68] sm:$0xf]
                %257 = vst [vmem:[%s229 + $0x34] sm:$0xf] %v256
                %v258 = vld [vmem:[%s228 + $0x70] sm:$0xf]
                %259 = vst [vmem:[%s229 + $0x38] sm:$0xf] %v258
                %v260 = vld [vmem:[%s228 + $0x78] sm:$0xf]
                %261 = vst [vmem:[%s229 + $0x3c] sm:$0xf] %v260
              $region45: #{resblock_forward.5} parent=39 // loop_footer
                %s227 = sadd.s32 1, %s223
              $region46: #{resblock_forward.5} parent=39 // loop_footer_branch
                %222 = sbr.rel target = $region42
              $region47: #{resblock_forward.5} parent=39 // loop_exit
                _
            $region40: #{resblock_forward.5} parent=31 // pred_fallthru
              _
          $region32: #{resblock_forward.5} parent=27 // pred_fallthru
            _
          %313 = vnop
        $region28: #{resblock_forward.5} parent=23 // pred_fallthru
          _
        // Predicated region
        $region66: #{resblock_forward.5} parent=23 // pred_check
          %p314 = pneg %p75
        $region67: #{resblock_forward.5} parent=23 // pred_check_branch
          %316 = sbr.rel (%p314) target = $region69
        $region68: #{resblock_forward.5} parent=23 // pred_region
          %s317 = sand.u32 %s65, 1
          %s318 = sand.u32 %s65, 1
          %s319 = smul.addr %s318, 64
          %s320 = scalar_lea.vmem [#allocation3], %s319
          %s321 = sadd.s32 %s19, 1
          %s322 = smul.addr %s18, 32
          %s323 = sadd.s32 %s321, %s322
          %s324 = smul.addr %s323, 4
          %s325 = scalar_lea.vmem %s1, %s324
          // Predicated region
          $region70: #{resblock_forward.5} parent=68 // pred_check
            _
          $region71: #{resblock_forward.5} parent=68 // pred_check_branch
            %327 = sbr.rel (0) target = $region73
          $region72: #{resblock_forward.5} parent=68 // pred_region
            // Predicated region
            $region74: #{resblock_forward.5} parent=72 // pred_check
              _
            $region75: #{resblock_forward.5} parent=72 // pred_check_branch
              %329 = sbr.rel target = $region77
            $region76: #{resblock_forward.5} parent=72 // pred_region
              // Predicated region
              $region89: #{resblock_forward.5} parent=76 // pred_check
                _
              $region90: #{resblock_forward.5} parent=76 // pred_check_branch
                %374 = sbr.rel (0) target = $region92
              $region91: #{resblock_forward.5} parent=76 // pred_region
                loop: start=0, step=1, limit=1
                $region93: #{resblock_forward.5} parent=91 // loop_pre_header
                  _
                $region94: #{resblock_forward.5} parent=91 // loop_header
                  %s376 = sphi 0, %s380
                  %p377 = scmp.ge.s32.totalorder %s376, 1
                  %s381 = sphi %s325, %s325
                  %s382 = sphi %s320, %s320
                $region95: #{resblock_forward.5} parent=91 // loop_header_branch
                  %379 = sbr.rel (%p377) target = $region99
                $region96: #{resblock_forward.5} parent=91 // loop_body
                  _
                $region97: #{resblock_forward.5} parent=91 // loop_footer
                  %s380 = sadd.s32 1, %s376
                $region98: #{resblock_forward.5} parent=91 // loop_footer_branch
                  %375 = sbr.rel target = $region94
                $region99: #{resblock_forward.5} parent=91 // loop_exit
                  _
                loop: start=0, step=1, limit=1
                $region100: #{resblock_forward.5} parent=91 // loop_pre_header
                  _
                $region101: #{resblock_forward.5} parent=91 // loop_header
                  %s385 = sphi 0, %s389
                  %p386 = scmp.ge.s32.totalorder %s385, 1
                  %s390 = sphi %s325, %s325
                  %s391 = sphi %s320, %s320
                $region102: #{resblock_forward.5} parent=91 // loop_header_branch
                  %388 = sbr.rel (%p386) target = $region106
                $region103: #{resblock_forward.5} parent=91 // loop_body
                  %v392 = vld [vmem:[%s390] sm:$0xf]
                  %393 = vst [vmem:[%s391] sm:$0xf] %v392
                  %v394 = vld [vmem:[%s390 + $0x8] sm:$0xf]
                  %395 = vst [vmem:[%s391 + $0x4] sm:$0xf] %v394
                  %v396 = vld [vmem:[%s390 + $0x10] sm:$0xf]
                  %397 = vst [vmem:[%s391 + $0x8] sm:$0xf] %v396
                  %v398 = vld [vmem:[%s390 + $0x18] sm:$0xf]
                  %399 = vst [vmem:[%s391 + $0xc] sm:$0xf] %v398
                  %v400 = vld [vmem:[%s390 + $0x20] sm:$0xf]
                  %401 = vst [vmem:[%s391 + $0x10] sm:$0xf] %v400
                  %v402 = vld [vmem:[%s390 + $0x28] sm:$0xf]
                  %403 = vst [vmem:[%s391 + $0x14] sm:$0xf] %v402
                  %v404 = vld [vmem:[%s390 + $0x30] sm:$0xf]
                  %405 = vst [vmem:[%s391 + $0x18] sm:$0xf] %v404
                  %v406 = vld [vmem:[%s390 + $0x38] sm:$0xf]
                  %407 = vst [vmem:[%s391 + $0x1c] sm:$0xf] %v406
                  %v408 = vld [vmem:[%s390 + $0x40] sm:$0xf]
                  %409 = vst [vmem:[%s391 + $0x20] sm:$0xf] %v408
                  %v410 = vld [vmem:[%s390 + $0x48] sm:$0xf]
                  %411 = vst [vmem:[%s391 + $0x24] sm:$0xf] %v410
                  %v412 = vld [vmem:[%s390 + $0x50] sm:$0xf]
                  %413 = vst [vmem:[%s391 + $0x28] sm:$0xf] %v412
                  %v414 = vld [vmem:[%s390 + $0x58] sm:$0xf]
                  %415 = vst [vmem:[%s391 + $0x2c] sm:$0xf] %v414
                  %v416 = vld [vmem:[%s390 + $0x60] sm:$0xf]
                  %417 = vst [vmem:[%s391 + $0x30] sm:$0xf] %v416
                  %v418 = vld [vmem:[%s390 + $0x68] sm:$0xf]
                  %419 = vst [vmem:[%s391 + $0x34] sm:$0xf] %v418
                  %v420 = vld [vmem:[%s390 + $0x70] sm:$0xf]
                  %421 = vst [vmem:[%s391 + $0x38] sm:$0xf] %v420
                  %v422 = vld [vmem:[%s390 + $0x78] sm:$0xf]
                  %423 = vst [vmem:[%s391 + $0x3c] sm:$0xf] %v422
                $region104: #{resblock_forward.5} parent=91 // loop_footer
                  %s389 = sadd.s32 1, %s385
                $region105: #{resblock_forward.5} parent=91 // loop_footer_branch
                  %384 = sbr.rel target = $region101
                $region106: #{resblock_forward.5} parent=91 // loop_exit
                  _
              $region92: #{resblock_forward.5} parent=76 // pred_fallthru
                _
            $region77: #{resblock_forward.5} parent=72 // pred_fallthru
              _
            // Predicated region
            $region78: #{resblock_forward.5} parent=72 // pred_check
              _
            $region79: #{resblock_forward.5} parent=72 // pred_check_branch
              %331 = sbr.rel (0) target = $region81
            $region80: #{resblock_forward.5} parent=72 // pred_region
              loop: start=0, step=1, limit=1
              $region82: #{resblock_forward.5} parent=80 // loop_pre_header
                _
              $region83: #{resblock_forward.5} parent=80 // loop_header
                %s334 = sphi 0, %s338
                %p335 = scmp.ge.s32.totalorder %s334, 1
                %s339 = sphi %s325, %s325
                %s340 = sphi %s320, %s320
              $region84: #{resblock_forward.5} parent=80 // loop_header_branch
                %337 = sbr.rel (%p335) target = $region88
              $region85: #{resblock_forward.5} parent=80 // loop_body
                %v341 = vld [vmem:[%s339] sm:$0xf]
                %342 = vst [vmem:[%s340] sm:$0xf] %v341
                %v343 = vld [vmem:[%s339 + $0x8] sm:$0xf]
                %344 = vst [vmem:[%s340 + $0x4] sm:$0xf] %v343
                %v345 = vld [vmem:[%s339 + $0x10] sm:$0xf]
                %346 = vst [vmem:[%s340 + $0x8] sm:$0xf] %v345
                %v347 = vld [vmem:[%s339 + $0x18] sm:$0xf]
                %348 = vst [vmem:[%s340 + $0xc] sm:$0xf] %v347
                %v349 = vld [vmem:[%s339 + $0x20] sm:$0xf]
                %350 = vst [vmem:[%s340 + $0x10] sm:$0xf] %v349
                %v351 = vld [vmem:[%s339 + $0x28] sm:$0xf]
                %352 = vst [vmem:[%s340 + $0x14] sm:$0xf] %v351
                %v353 = vld [vmem:[%s339 + $0x30] sm:$0xf]
                %354 = vst [vmem:[%s340 + $0x18] sm:$0xf] %v353
                %v355 = vld [vmem:[%s339 + $0x38] sm:$0xf]
                %356 = vst [vmem:[%s340 + $0x1c] sm:$0xf] %v355
                %v357 = vld [vmem:[%s339 + $0x40] sm:$0xf]
                %358 = vst [vmem:[%s340 + $0x20] sm:$0xf] %v357
                %v359 = vld [vmem:[%s339 + $0x48] sm:$0xf]
                %360 = vst [vmem:[%s340 + $0x24] sm:$0xf] %v359
                %v361 = vld [vmem:[%s339 + $0x50] sm:$0xf]
                %362 = vst [vmem:[%s340 + $0x28] sm:$0xf] %v361
                %v363 = vld [vmem:[%s339 + $0x58] sm:$0xf]
                %364 = vst [vmem:[%s340 + $0x2c] sm:$0xf] %v363
                %v365 = vld [vmem:[%s339 + $0x60] sm:$0xf]
                %366 = vst [vmem:[%s340 + $0x30] sm:$0xf] %v365
                %v367 = vld [vmem:[%s339 + $0x68] sm:$0xf]
                %368 = vst [vmem:[%s340 + $0x34] sm:$0xf] %v367
                %v369 = vld [vmem:[%s339 + $0x70] sm:$0xf]
                %370 = vst [vmem:[%s340 + $0x38] sm:$0xf] %v369
                %v371 = vld [vmem:[%s339 + $0x78] sm:$0xf]
                %372 = vst [vmem:[%s340 + $0x3c] sm:$0xf] %v371
              $region86: #{resblock_forward.5} parent=80 // loop_footer
                %s338 = sadd.s32 1, %s334
              $region87: #{resblock_forward.5} parent=80 // loop_footer_branch
                %333 = sbr.rel target = $region83
              $region88: #{resblock_forward.5} parent=80 // loop_exit
                _
            $region81: #{resblock_forward.5} parent=72 // pred_fallthru
              _
          $region73: #{resblock_forward.5} parent=68 // pred_fallthru
            _
          %424 = vnop
        $region69: #{resblock_forward.5} parent=23 // pred_fallthru
          _
        // Predicated region
        $region107: #{resblock_forward.5} parent=23 // pred_check
          %p425 = pneg %p145
        $region108: #{resblock_forward.5} parent=23 // pred_check_branch
          %427 = sbr.rel (%p425) target = $region110
        $region109: #{resblock_forward.5} parent=23 // pred_region
          %p428 = scmp.lt.s32.totalorder %s18, 1
          %s429 = scalar_select %p428, %s18, 1
          %p430 = scmp.lt.s32.totalorder %s19, 0
          %s431 = scalar_select %p430, %s19, 0
          %s432 = smul.addr %s429, 8
          %s433 = sadd.s32 %s431, %s432
          %s434 = smul.addr %s433, 8
          %s435 = scalar_lea.vmem %s4, %s434
        $region110: #{resblock_forward.5} parent=23 // pred_fallthru
          _
      $region24: #{resblock_forward.5} parent=5 // pred_fallthru
        _
      %p436 = scmp.le.s32.totalorder 1, %s11
      %p437 = scmp.lt.s32.totalorder %s11, 3
      %p438 = pnand %p436, %p437
      %p439 = pneg %p438
      // Predicated region
      $region111: #{resblock_forward.5} parent=5 // pred_check
        _
      $region112: #{resblock_forward.5} parent=5 // pred_check_branch
        %441 = sbr.rel (%p438) target = $region114
      $region113: #{resblock_forward.5} parent=5 // pred_region
        %s442 = ssub.s32 %s11, 1
        %s443 = sand.u32 %s38, 1
        %s444 = sand.u32 %s38, 1
        %s445 = smul.addr %s444, 64
        %s446 = scalar_lea.vmem [#allocation2], %s445
        // Predicated region
        $region115: #{resblock_forward.5} parent=113 // pred_check
          %p447 = pneg %p51
        $region116: #{resblock_forward.5} parent=113 // pred_check_branch
          %449 = sbr.rel (%p447) target = $region118
        $region117: #{resblock_forward.5} parent=113 // pred_region
          _
        $region118: #{resblock_forward.5} parent=113 // pred_fallthru
          _
        %s450 = sand.u32 %s68, 1
        %s451 = sand.u32 %s68, 1
        %s452 = smul.addr %s451, 64
        %s453 = scalar_lea.vmem [#allocation3], %s452
        // Predicated region
        $region119: #{resblock_forward.5} parent=113 // pred_check
          %p454 = pneg %p81
        $region120: #{resblock_forward.5} parent=113 // pred_check_branch
          %456 = sbr.rel (%p454) target = $region122
        $region121: #{resblock_forward.5} parent=113 // pred_region
          _
        $region122: #{resblock_forward.5} parent=113 // pred_fallthru
          _
        %s457 = sand.u32 %s38, 1
        %s458 = sand.u32 %s38, 1
        %s459 = smul.addr %s458, 64
        %s460 = scalar_lea.vmem [#allocation2], %s459
        %p461 = pneg %p51
        %p462 = pneg %p48
        %s463 = sand.u32 %s68, 1
        %s464 = sand.u32 %s68, 1
        %s465 = smul.addr %s464, 64
        %s466 = scalar_lea.vmem [#allocation3], %s465
        %p467 = pneg %p81
        %p468 = pneg %p78
        %p469 = pneg %p102
        %p470 = pneg %p99
        %p471 = pneg %p123
        %p472 = pneg %p120
        %p473 = scmp.lt.s32.totalorder %s20, 1
        %s474 = scalar_select %p473, %s20, 1
        %p475 = scmp.lt.s32.totalorder %s21, 0
        %s476 = scalar_select %p475, %s21, 0
        %s477 = smul.addr %s474, 8
        %s478 = sadd.s32 %s476, %s477
        %s479 = smul.addr %s478, 8
        %s480 = scalar_lea.vmem %s4, %s479
        %p481 = pneg %p151
        %p482 = pneg %p148
        %p483 = pneg %p179
        %p484 = pneg %p176
        %p485 = scmp.lt.s32.totalorder %s20, 1
        %s486 = scalar_select %p485, %s20, 1
        %p487 = scmp.lt.s32.totalorder %s21, 0
        %s488 = scalar_select %p487, %s21, 0
        %s489 = smul.addr %s486, 8
        %s490 = sadd.s32 %s488, %s489
        %s491 = smul.addr %s490, 8
        %s492 = scalar_lea.vmem %s5, %s491
        %s493 = sadd.s32 %s21, 1
        %p494 = scmp.lt.s32.totalorder %s20, 1
        %s495 = scalar_select %p494, %s20, 1
        %p496 = scmp.lt.s32.totalorder %s21, 0
        %s497 = scalar_select %p496, %s21, 0
        %s498 = smul.addr %s495, 8
        %s499 = sadd.s32 %s497, %s498
        %s500 = smul.addr %s499, 8
        %s501 = scalar_lea.vmem %s4, %s500
        %p502 = scmp.lt.s32.totalorder %s20, 1
        %s503 = scalar_select %p502, %s20, 1
        %p504 = scmp.lt.s32.totalorder %s21, 0
        %s505 = scalar_select %p504, %s21, 0
        %s506 = smul.addr %s503, 8
        %s507 = sadd.s32 %s505, %s506
        %s508 = smul.addr %s507, 8
        %s509 = scalar_lea.vmem %s5, %s508
        %v511 = vld [vmem:[%s446] sm:$0xf]
        %v512 = vld [vmem:[%s446 + $0x4] sm:$0xf]
        %v513 = vld [vmem:[%s446 + $0x8] sm:$0xf]
        %v514 = vld [vmem:[%s446 + $0xc] sm:$0xf]
        %v515 = vld [vmem:[%s446 + $0x10] sm:$0xf]
        %v516 = vld [vmem:[%s446 + $0x14] sm:$0xf]
        %v517 = vld [vmem:[%s446 + $0x18] sm:$0xf]
        %v518 = vld [vmem:[%s446 + $0x1c] sm:$0xf]
        %v519 = vld [vmem:[%s446 + $0x20] sm:$0xf]
        %v520 = vld [vmem:[%s446 + $0x24] sm:$0xf]
        %v521 = vld [vmem:[%s446 + $0x28] sm:$0xf]
        %v522 = vld [vmem:[%s446 + $0x2c] sm:$0xf]
        %v523 = vld [vmem:[%s446 + $0x30] sm:$0xf]
        %v524 = vld [vmem:[%s446 + $0x34] sm:$0xf]
        %v525 = vld [vmem:[%s446 + $0x38] sm:$0xf]
        %v526 = vld [vmem:[%s446 + $0x3c] sm:$0xf]
        %v527 = vld [vmem:[%s453] sm:$0xf]
        %v528 = vld [vmem:[%s453 + $0x4] sm:$0xf]
        %v529 = vld [vmem:[%s453 + $0x8] sm:$0xf]
        %v530 = vld [vmem:[%s453 + $0xc] sm:$0xf]
        %v531 = vld [vmem:[%s453 + $0x10] sm:$0xf]
        %v532 = vld [vmem:[%s453 + $0x14] sm:$0xf]
        %v533 = vld [vmem:[%s453 + $0x18] sm:$0xf]
        %v534 = vld [vmem:[%s453 + $0x1c] sm:$0xf]
        %v535 = vld [vmem:[%s453 + $0x20] sm:$0xf]
        %v536 = vld [vmem:[%s453 + $0x24] sm:$0xf]
        %v537 = vld [vmem:[%s453 + $0x28] sm:$0xf]
        %v538 = vld [vmem:[%s453 + $0x2c] sm:$0xf]
        %v539 = vld [vmem:[%s453 + $0x30] sm:$0xf]
        %v540 = vld [vmem:[%s453 + $0x34] sm:$0xf]
        %v541 = vld [vmem:[%s453 + $0x38] sm:$0xf]
        %v542 = vld [vmem:[%s453 + $0x3c] sm:$0xf]
        %v559 = vunpack.c.l.b16 %v511
        %v560 = vunpack.c.l.b16 %v512
        %v561 = vunpack.c.l.b16 %v513
        %v562 = vunpack.c.l.b16 %v514
        %v563 = vunpack.c.l.b16 %v515
        %v564 = vunpack.c.l.b16 %v516
        %v565 = vunpack.c.l.b16 %v517
        %v566 = vunpack.c.l.b16 %v518
        %v567 = vunpack.c.l.b16 %v519
        %v568 = vunpack.c.l.b16 %v520
        %v569 = vunpack.c.l.b16 %v521
        %v570 = vunpack.c.l.b16 %v522
        %v571 = vunpack.c.l.b16 %v523
        %v572 = vunpack.c.l.b16 %v524
        %v573 = vunpack.c.l.b16 %v525
        %v574 = vunpack.c.l.b16 %v526
        %v575 = vpack.c.b16 %v560, %v559
        %v576 = vpack.c.b16 %v562, %v561
        %v577 = vpack.c.b16 %v564, %v563
        %v578 = vpack.c.b16 %v566, %v565
        %v579 = vpack.c.b16 %v568, %v567
        %v580 = vpack.c.b16 %v570, %v569
        %v581 = vpack.c.b16 %v572, %v571
        %v582 = vpack.c.b16 %v574, %v573
        %v607 = vunpack.c.l.b16 %v527
        %v608 = vunpack.c.l.b16 %v528
        %v609 = vunpack.c.l.b16 %v529
        %v610 = vunpack.c.l.b16 %v530
        %v611 = vunpack.c.l.b16 %v531
        %v612 = vunpack.c.l.b16 %v532
        %v613 = vunpack.c.l.b16 %v533
        %v614 = vunpack.c.l.b16 %v534
        %v615 = vunpack.c.l.b16 %v535
        %v616 = vunpack.c.l.b16 %v536
        %v617 = vunpack.c.l.b16 %v537
        %v618 = vunpack.c.l.b16 %v538
        %v619 = vunpack.c.l.b16 %v539
        %v620 = vunpack.c.l.b16 %v540
        %v621 = vunpack.c.l.b16 %v541
        %v622 = vunpack.c.l.b16 %v542
        %v623 = vpack.c.b16 %v608, %v607
        %v624 = vpack.c.b16 %v610, %v609
        %v625 = vpack.c.b16 %v612, %v611
        %v626 = vpack.c.b16 %v614, %v613
        %v627 = vpack.c.b16 %v616, %v615
        %v628 = vpack.c.b16 %v618, %v617
        %v629 = vpack.c.b16 %v620, %v619
        %v630 = vpack.c.b16 %v622, %v621
        %631 = vrot.lane.b32.xlu0 %v575, 127
        %v632 = vpop.permute.xlu0 %631
        %633 = vrot.lane.b32.xlu0 %v623, 127
        %v634 = vpop.permute.xlu0 %633
        %635 = vrot.lane.b32.xlu0 %v576, 127
        %v636 = vpop.permute.xlu0 %635
        %637 = vrot.lane.b32.xlu0 %v624, 127
        %v638 = vpop.permute.xlu0 %637
        %639 = vrot.lane.b32.xlu0 %v577, 127
        %v640 = vpop.permute.xlu0 %639
        %641 = vrot.lane.b32.xlu0 %v625, 127
        %v642 = vpop.permute.xlu0 %641
        %643 = vrot.lane.b32.xlu0 %v578, 127
        %v644 = vpop.permute.xlu0 %643
        %645 = vrot.lane.b32.xlu0 %v626, 127
        %v646 = vpop.permute.xlu0 %645
        %647 = vrot.lane.b32.xlu0 %v579, 127
        %v648 = vpop.permute.xlu0 %647
        %649 = vrot.lane.b32.xlu0 %v627, 127
        %v650 = vpop.permute.xlu0 %649
        %651 = vrot.lane.b32.xlu0 %v580, 127
        %v652 = vpop.permute.xlu0 %651
        %653 = vrot.lane.b32.xlu0 %v628, 127
        %v654 = vpop.permute.xlu0 %653
        %655 = vrot.lane.b32.xlu0 %v581, 127
        %v656 = vpop.permute.xlu0 %655
        %657 = vrot.lane.b32.xlu0 %v629, 127
        %v658 = vpop.permute.xlu0 %657
        %659 = vrot.lane.b32.xlu0 %v582, 127
        %v660 = vpop.permute.xlu0 %659
        %661 = vrot.lane.b32.xlu0 %v630, 127
        %v662 = vpop.permute.xlu0 %661
        %vm663 = vcmask 1039360
        %v664 = vsel %vm663, %v632, %v634
        %v665 = vsel %vm663, %v636, %v638
        %v666 = vsel %vm663, %v640, %v642
        %v667 = vsel %vm663, %v644, %v646
        %v668 = vsel %vm663, %v648, %v650
        %v669 = vsel %vm663, %v652, %v654
        %v670 = vsel %vm663, %v656, %v658
        %v671 = vsel %vm663, %v660, %v662
        %680 = vrot.lane.b32.xlu0 %v575, 126
        %v681 = vpop.permute.xlu0 %680
        %682 = vrot.lane.b32.xlu0 %v623, 126
        %v683 = vpop.permute.xlu0 %682
        %684 = vrot.lane.b32.xlu0 %v576, 126
        %v685 = vpop.permute.xlu0 %684
        %686 = vrot.lane.b32.xlu0 %v624, 126
        %v687 = vpop.permute.xlu0 %686
        %688 = vrot.lane.b32.xlu0 %v577, 126
        %v689 = vpop.permute.xlu0 %688
        %690 = vrot.lane.b32.xlu0 %v625, 126
        %v691 = vpop.permute.xlu0 %690
        %692 = vrot.lane.b32.xlu0 %v578, 126
        %v693 = vpop.permute.xlu0 %692
        %694 = vrot.lane.b32.xlu0 %v626, 126
        %v695 = vpop.permute.xlu0 %694
        %696 = vrot.lane.b32.xlu0 %v579, 126
        %v697 = vpop.permute.xlu0 %696
        %698 = vrot.lane.b32.xlu0 %v627, 126
        %v699 = vpop.permute.xlu0 %698
        %700 = vrot.lane.b32.xlu0 %v580, 126
        %v701 = vpop.permute.xlu0 %700
        %702 = vrot.lane.b32.xlu0 %v628, 126
        %v703 = vpop.permute.xlu0 %702
        %704 = vrot.lane.b32.xlu0 %v581, 126
        %v705 = vpop.permute.xlu0 %704
        %706 = vrot.lane.b32.xlu0 %v629, 126
        %v707 = vpop.permute.xlu0 %706
        %708 = vrot.lane.b32.xlu0 %v582, 126
        %v709 = vpop.permute.xlu0 %708
        %710 = vrot.lane.b32.xlu0 %v630, 126
        %v711 = vpop.permute.xlu0 %710
        %vm712 = vcmask 1031168
        %v713 = vsel %vm712, %v681, %v683
        %v714 = vsel %vm712, %v685, %v687
        %v715 = vsel %vm712, %v689, %v691
        %v716 = vsel %vm712, %v693, %v695
        %v717 = vsel %vm712, %v697, %v699
        %v718 = vsel %vm712, %v701, %v703
        %v719 = vsel %vm712, %v705, %v707
        %v720 = vsel %vm712, %v709, %v711
        %729 = vrot.lane.b32.xlu0 %v575, 118
        %v730 = vpop.permute.xlu0 %729
        %731 = vrot.lane.b32.xlu0 %v623, 118
        %v732 = vpop.permute.xlu0 %731
        %733 = vrot.lane.b32.xlu0 %v576, 118
        %v734 = vpop.permute.xlu0 %733
        %735 = vrot.lane.b32.xlu0 %v624, 118
        %v736 = vpop.permute.xlu0 %735
        %737 = vrot.lane.b32.xlu0 %v577, 118
        %v738 = vpop.permute.xlu0 %737
        %739 = vrot.lane.b32.xlu0 %v625, 118
        %v740 = vpop.permute.xlu0 %739
        %741 = vrot.lane.b32.xlu0 %v578, 118
        %v742 = vpop.permute.xlu0 %741
        %743 = vrot.lane.b32.xlu0 %v626, 118
        %v744 = vpop.permute.xlu0 %743
        %745 = vrot.lane.b32.xlu0 %v579, 118
        %v746 = vpop.permute.xlu0 %745
        %747 = vrot.lane.b32.xlu0 %v627, 118
        %v748 = vpop.permute.xlu0 %747
        %749 = vrot.lane.b32.xlu0 %v580, 118
        %v750 = vpop.permute.xlu0 %749
        %751 = vrot.lane.b32.xlu0 %v628, 118
        %v752 = vpop.permute.xlu0 %751
        %753 = vrot.lane.b32.xlu0 %v581, 118
        %v754 = vpop.permute.xlu0 %753
        %755 = vrot.lane.b32.xlu0 %v629, 118
        %v756 = vpop.permute.xlu0 %755
        %757 = vrot.lane.b32.xlu0 %v582, 118
        %v758 = vpop.permute.xlu0 %757
        %759 = vrot.lane.b32.xlu0 %v630, 118
        %v760 = vpop.permute.xlu0 %759
        %vm761 = vcmask 965632
        %v762 = vsel %vm761, %v730, %v732
        %v763 = vsel %vm761, %v734, %v736
        %v764 = vsel %vm761, %v738, %v740
        %v765 = vsel %vm761, %v742, %v744
        %v766 = vsel %vm761, %v746, %v748
        %v767 = vsel %vm761, %v750, %v752
        %v768 = vsel %vm761, %v754, %v756
        %v769 = vsel %vm761, %v758, %v760
        %778 = vrot.lane.b32.xlu0 %v575, 117
        %v779 = vpop.permute.xlu0 %778
        %780 = vrot.lane.b32.xlu0 %v623, 117
        %v781 = vpop.permute.xlu0 %780
        %782 = vrot.lane.b32.xlu0 %v576, 117
        %v783 = vpop.permute.xlu0 %782
        %784 = vrot.lane.b32.xlu0 %v624, 117
        %v785 = vpop.permute.xlu0 %784
        %786 = vrot.lane.b32.xlu0 %v577, 117
        %v787 = vpop.permute.xlu0 %786
        %788 = vrot.lane.b32.xlu0 %v625, 117
        %v789 = vpop.permute.xlu0 %788
        %790 = vrot.lane.b32.xlu0 %v578, 117
        %v791 = vpop.permute.xlu0 %790
        %792 = vrot.lane.b32.xlu0 %v626, 117
        %v793 = vpop.permute.xlu0 %792
        %794 = vrot.lane.b32.xlu0 %v579, 117
        %v795 = vpop.permute.xlu0 %794
        %796 = vrot.lane.b32.xlu0 %v627, 117
        %v797 = vpop.permute.xlu0 %796
        %798 = vrot.lane.b32.xlu0 %v580, 117
        %v799 = vpop.permute.xlu0 %798
        %800 = vrot.lane.b32.xlu0 %v628, 117
        %v801 = vpop.permute.xlu0 %800
        %802 = vrot.lane.b32.xlu0 %v581, 117
        %v803 = vpop.permute.xlu0 %802
        %804 = vrot.lane.b32.xlu0 %v629, 117
        %v805 = vpop.permute.xlu0 %804
        %806 = vrot.lane.b32.xlu0 %v582, 117
        %v807 = vpop.permute.xlu0 %806
        %808 = vrot.lane.b32.xlu0 %v630, 117
        %v809 = vpop.permute.xlu0 %808
        %vm810 = vcmask 957440
        %v811 = vsel %vm810, %v779, %v781
        %v812 = vsel %vm810, %v783, %v785
        %v813 = vsel %vm810, %v787, %v789
        %v814 = vsel %vm810, %v791, %v793
        %v815 = vsel %vm810, %v795, %v797
        %v816 = vsel %vm810, %v799, %v801
        %v817 = vsel %vm810, %v803, %v805
        %v818 = vsel %vm810, %v807, %v809
        %827 = vrot.lane.b32.xlu0 %v575, 116
        %v828 = vpop.permute.xlu0 %827
        %829 = vrot.lane.b32.xlu0 %v623, 116
        %v830 = vpop.permute.xlu0 %829
        %831 = vrot.lane.b32.xlu0 %v576, 116
        %v832 = vpop.permute.xlu0 %831
        %833 = vrot.lane.b32.xlu0 %v624, 116
        %v834 = vpop.permute.xlu0 %833
        %835 = vrot.lane.b32.xlu0 %v577, 116
        %v836 = vpop.permute.xlu0 %835
        %837 = vrot.lane.b32.xlu0 %v625, 116
        %v838 = vpop.permute.xlu0 %837
        %839 = vrot.lane.b32.xlu0 %v578, 116
        %v840 = vpop.permute.xlu0 %839
        %841 = vrot.lane.b32.xlu0 %v626, 116
        %v842 = vpop.permute.xlu0 %841
        %843 = vrot.lane.b32.xlu0 %v579, 116
        %v844 = vpop.permute.xlu0 %843
        %845 = vrot.lane.b32.xlu0 %v627, 116
        %v846 = vpop.permute.xlu0 %845
        %847 = vrot.lane.b32.xlu0 %v580, 116
        %v848 = vpop.permute.xlu0 %847
        %849 = vrot.lane.b32.xlu0 %v628, 116
        %v850 = vpop.permute.xlu0 %849
        %851 = vrot.lane.b32.xlu0 %v581, 116
        %v852 = vpop.permute.xlu0 %851
        %853 = vrot.lane.b32.xlu0 %v629, 116
        %v854 = vpop.permute.xlu0 %853
        %855 = vrot.lane.b32.xlu0 %v582, 116
        %v856 = vpop.permute.xlu0 %855
        %857 = vrot.lane.b32.xlu0 %v630, 116
        %v858 = vpop.permute.xlu0 %857
        %vm859 = vcmask 949248
        %v860 = vsel %vm859, %v828, %v830
        %v861 = vsel %vm859, %v832, %v834
        %v862 = vsel %vm859, %v836, %v838
        %v863 = vsel %vm859, %v840, %v842
        %v864 = vsel %vm859, %v844, %v846
        %v865 = vsel %vm859, %v848, %v850
        %v866 = vsel %vm859, %v852, %v854
        %v867 = vsel %vm859, %v856, %v858
        %876 = vrot.lane.b32.xlu0 %v575, 108
        %v877 = vpop.permute.xlu0 %876
        %878 = vrot.lane.b32.xlu0 %v623, 108
        %v879 = vpop.permute.xlu0 %878
        %880 = vrot.lane.b32.xlu0 %v576, 108
        %v881 = vpop.permute.xlu0 %880
        %882 = vrot.lane.b32.xlu0 %v624, 108
        %v883 = vpop.permute.xlu0 %882
        %884 = vrot.lane.b32.xlu0 %v577, 108
        %v885 = vpop.permute.xlu0 %884
        %886 = vrot.lane.b32.xlu0 %v625, 108
        %v887 = vpop.permute.xlu0 %886
        %888 = vrot.lane.b32.xlu0 %v578, 108
        %v889 = vpop.permute.xlu0 %888
        %890 = vrot.lane.b32.xlu0 %v626, 108
        %v891 = vpop.permute.xlu0 %890
        %892 = vrot.lane.b32.xlu0 %v579, 108
        %v893 = vpop.permute.xlu0 %892
        %894 = vrot.lane.b32.xlu0 %v627, 108
        %v895 = vpop.permute.xlu0 %894
        %896 = vrot.lane.b32.xlu0 %v580, 108
        %v897 = vpop.permute.xlu0 %896
        %898 = vrot.lane.b32.xlu0 %v628, 108
        %v899 = vpop.permute.xlu0 %898
        %900 = vrot.lane.b32.xlu0 %v581, 108
        %v901 = vpop.permute.xlu0 %900
        %902 = vrot.lane.b32.xlu0 %v629, 108
        %v903 = vpop.permute.xlu0 %902
        %904 = vrot.lane.b32.xlu0 %v582, 108
        %v905 = vpop.permute.xlu0 %904
        %906 = vrot.lane.b32.xlu0 %v630, 108
        %v907 = vpop.permute.xlu0 %906
        %vm908 = vcmask 883712
        %v909 = vsel %vm908, %v877, %v879
        %v910 = vsel %vm908, %v881, %v883
        %v911 = vsel %vm908, %v885, %v887
        %v912 = vsel %vm908, %v889, %v891
        %v913 = vsel %vm908, %v893, %v895
        %v914 = vsel %vm908, %v897, %v899
        %v915 = vsel %vm908, %v901, %v903
        %v916 = vsel %vm908, %v905, %v907
        %925 = vrot.lane.b32.xlu0 %v575, 107
        %v926 = vpop.permute.xlu0 %925
        %927 = vrot.lane.b32.xlu0 %v623, 107
        %v928 = vpop.permute.xlu0 %927
        %929 = vrot.lane.b32.xlu0 %v576, 107
        %v930 = vpop.permute.xlu0 %929
        %931 = vrot.lane.b32.xlu0 %v624, 107
        %v932 = vpop.permute.xlu0 %931
        %933 = vrot.lane.b32.xlu0 %v577, 107
        %v934 = vpop.permute.xlu0 %933
        %935 = vrot.lane.b32.xlu0 %v625, 107
        %v936 = vpop.permute.xlu0 %935
        %937 = vrot.lane.b32.xlu0 %v578, 107
        %v938 = vpop.permute.xlu0 %937
        %939 = vrot.lane.b32.xlu0 %v626, 107
        %v940 = vpop.permute.xlu0 %939
        %941 = vrot.lane.b32.xlu0 %v579, 107
        %v942 = vpop.permute.xlu0 %941
        %943 = vrot.lane.b32.xlu0 %v627, 107
        %v944 = vpop.permute.xlu0 %943
        %945 = vrot.lane.b32.xlu0 %v580, 107
        %v946 = vpop.permute.xlu0 %945
        %947 = vrot.lane.b32.xlu0 %v628, 107
        %v948 = vpop.permute.xlu0 %947
        %949 = vrot.lane.b32.xlu0 %v581, 107
        %v950 = vpop.permute.xlu0 %949
        %951 = vrot.lane.b32.xlu0 %v629, 107
        %v952 = vpop.permute.xlu0 %951
        %953 = vrot.lane.b32.xlu0 %v582, 107
        %v954 = vpop.permute.xlu0 %953
        %955 = vrot.lane.b32.xlu0 %v630, 107
        %v956 = vpop.permute.xlu0 %955
        %vm957 = vcmask 875520
        %v958 = vsel %vm957, %v926, %v928
        %v959 = vsel %vm957, %v930, %v932
        %v960 = vsel %vm957, %v934, %v936
        %v961 = vsel %vm957, %v938, %v940
        %v962 = vsel %vm957, %v942, %v944
        %v963 = vsel %vm957, %v946, %v948
        %v964 = vsel %vm957, %v950, %v952
        %v965 = vsel %vm957, %v954, %v956
        %974 = vrot.lane.b32.xlu0 %v575, 106
        %v975 = vpop.permute.xlu0 %974
        %976 = vrot.lane.b32.xlu0 %v623, 106
        %v977 = vpop.permute.xlu0 %976
        %978 = vrot.lane.b32.xlu0 %v576, 106
        %v979 = vpop.permute.xlu0 %978
        %980 = vrot.lane.b32.xlu0 %v624, 106
        %v981 = vpop.permute.xlu0 %980
        %982 = vrot.lane.b32.xlu0 %v577, 106
        %v983 = vpop.permute.xlu0 %982
        %984 = vrot.lane.b32.xlu0 %v625, 106
        %v985 = vpop.permute.xlu0 %984
        %986 = vrot.lane.b32.xlu0 %v578, 106
        %v987 = vpop.permute.xlu0 %986
        %988 = vrot.lane.b32.xlu0 %v626, 106
        %v989 = vpop.permute.xlu0 %988
        %990 = vrot.lane.b32.xlu0 %v579, 106
        %v991 = vpop.permute.xlu0 %990
        %992 = vrot.lane.b32.xlu0 %v627, 106
        %v993 = vpop.permute.xlu0 %992
        %994 = vrot.lane.b32.xlu0 %v580, 106
        %v995 = vpop.permute.xlu0 %994
        %996 = vrot.lane.b32.xlu0 %v628, 106
        %v997 = vpop.permute.xlu0 %996
        %998 = vrot.lane.b32.xlu0 %v581, 106
        %v999 = vpop.permute.xlu0 %998
        %1000 = vrot.lane.b32.xlu0 %v629, 106
        %v1001 = vpop.permute.xlu0 %1000
        %1002 = vrot.lane.b32.xlu0 %v582, 106
        %v1003 = vpop.permute.xlu0 %1002
        %1004 = vrot.lane.b32.xlu0 %v630, 106
        %v1005 = vpop.permute.xlu0 %1004
        %vm1006 = vcmask 867328
        %v1007 = vsel %vm1006, %v975, %v977
        %v1008 = vsel %vm1006, %v979, %v981
        %v1009 = vsel %vm1006, %v983, %v985
        %v1010 = vsel %vm1006, %v987, %v989
        %v1011 = vsel %vm1006, %v991, %v993
        %v1012 = vsel %vm1006, %v995, %v997
        %v1013 = vsel %vm1006, %v999, %v1001
        %v1014 = vsel %vm1006, %v1003, %v1005
        %v1023 = vld [vmem:[%s2] sm:$0xff]
        %v1024 = vld [vmem:[%s2 + $0x8] sm:$0xff]
        %v1025 = vld [vmem:[%s2 + $0x10] sm:$0xff]
        %v1026 = vld [vmem:[%s2 + $0x18] sm:$0xff]
        %v1027 = vld [vmem:[%s2 + $0x20] sm:$0xf]
        %v1028 = vld [vmem:[%s2 + $0x24] sm:$0xff]
        %v1029 = vld [vmem:[%s2 + $0x2c] sm:$0xff]
        %v1030 = vld [vmem:[%s2 + $0x34] sm:$0xff]
        %v1031 = vld [vmem:[%s2 + $0x3c] sm:$0xff]
        %v1032 = vld [vmem:[%s2 + $0x44] sm:$0xf]
        %v1033 = vld [vmem:[%s2 + $0x48] sm:$0xff]
        %v1034 = vld [vmem:[%s2 + $0x50] sm:$0xff]
        %v1035 = vld [vmem:[%s2 + $0x58] sm:$0xff]
        %v1036 = vld [vmem:[%s2 + $0x60] sm:$0xff]
        %v1037 = vld [vmem:[%s2 + $0x68] sm:$0xf]
        %v1038 = vld [vmem:[%s2 + $0x6c] sm:$0xff]
        %v1039 = vld [vmem:[%s2 + $0x74] sm:$0xff]
        %v1040 = vld [vmem:[%s2 + $0x7c] sm:$0xff]
        %v1041 = vld [vmem:[%s2 + $0x84] sm:$0xff]
        %v1042 = vld [vmem:[%s2 + $0x8c] sm:$0xf]
        %v1043 = vld [vmem:[%s2 + $0x90] sm:$0xff]
        %v1044 = vld [vmem:[%s2 + $0x98] sm:$0xff]
        %v1045 = vld [vmem:[%s2 + $0xa0] sm:$0xff]
        %v1046 = vld [vmem:[%s2 + $0xa8] sm:$0xff]
        %v1047 = vld [vmem:[%s2 + $0xb0] sm:$0xf]
        %v1048 = vld [vmem:[%s2 + $0xb4] sm:$0xff]
        %v1049 = vld [vmem:[%s2 + $0xbc] sm:$0xff]
        %v1050 = vld [vmem:[%s2 + $0xc4] sm:$0xff]
        %v1051 = vld [vmem:[%s2 + $0xcc] sm:$0xff]
        %v1052 = vld [vmem:[%s2 + $0xd4] sm:$0xf]
        %v1053 = vld [vmem:[%s2 + $0xd8] sm:$0xff]
        %v1054 = vld [vmem:[%s2 + $0xe0] sm:$0xff]
        %v1055 = vld [vmem:[%s2 + $0xe8] sm:$0xff]
        %v1056 = vld [vmem:[%s2 + $0xf0] sm:$0xff]
        %v1057 = vld [vmem:[%s2 + $0xf8] sm:$0xf]
        %v1058 = vld [vmem:[%s2 + $0xfc] sm:$0xff]
        %v1059 = vld [vmem:[%s2 + $0x104] sm:$0xff]
        %v1060 = vld [vmem:[%s2 + $0x10c] sm:$0xff]
        %v1061 = vld [vmem:[%s2 + $0x114] sm:$0xff]
        %v1062 = vld [vmem:[%s2 + $0x11c] sm:$0xf]
        %v1063 = vld [vmem:[%s3] sm:$0xff]
        %v1064 = vld [vmem:[%s3 + $0x8] sm:$0xff]
        %v1065 = vld [vmem:[%s3 + $0x10] sm:$0xff]
        %v1066 = vld [vmem:[%s3 + $0x18] sm:$0xff]
        %v1067 = vld [vmem:[%s3 + $0x20] sm:$0xff]
        %v1068 = vld [vmem:[%s3 + $0x28] sm:$0xff]
        %v1069 = vld [vmem:[%s3 + $0x30] sm:$0xff]
        %v1070 = vld [vmem:[%s3 + $0x38] sm:$0xff]
        %1072 = vset.pattern.permute.xlu0 0
        %1073 = vperm.xlu0 %1072, %v1063
        %v1074 = vpop.permute.xlu0 %1073
        %1077 = vset.pattern.permute.xlu0 0
        %1078 = vperm.xlu0 %1077, %v1064
        %v1079 = vpop.permute.xlu0 %1078
        %1082 = vset.pattern.permute.xlu0 0
        %1083 = vperm.xlu0 %1082, %v1065
        %v1084 = vpop.permute.xlu0 %1083
        %1087 = vset.pattern.permute.xlu0 0
        %1088 = vperm.xlu0 %1087, %v1066
        %v1089 = vpop.permute.xlu0 %1088
        %1092 = vset.pattern.permute.xlu0 0
        %1093 = vperm.xlu0 %1092, %v1067
        %v1094 = vpop.permute.xlu0 %1093
        %1097 = vset.pattern.permute.xlu0 0
        %1098 = vperm.xlu0 %1097, %v1068
        %v1099 = vpop.permute.xlu0 %1098
        %1102 = vset.pattern.permute.xlu0 0
        %1103 = vperm.xlu0 %1102, %v1069
        %v1104 = vpop.permute.xlu0 %1103
        %1107 = vset.pattern.permute.xlu0 0
        %1108 = vperm.xlu0 %1107, %v1070
        %v1109 = vpop.permute.xlu0 %1108
        %v1151 = vunpack.c.l.b16 %v1023
        %v1152 = vunpack.c.h.b16 %v1023
        %v1153 = vunpack.c.l.b16 %v1024
        %v1154 = vunpack.c.h.b16 %v1024
        %v1155 = vunpack.c.l.b16 %v1025
        %v1156 = vunpack.c.h.b16 %v1025
        %v1157 = vunpack.c.l.b16 %v1026
        %v1158 = vunpack.c.h.b16 %v1026
        %v1159 = vunpack.c.l.b16 %v1027
        %v1160 = vunpack.c.l.b16 %v1028
        %v1161 = vunpack.c.h.b16 %v1028
        %v1162 = vunpack.c.l.b16 %v1029
        %v1163 = vunpack.c.h.b16 %v1029
        %v1164 = vunpack.c.l.b16 %v1030
        %v1165 = vunpack.c.h.b16 %v1030
        %v1166 = vunpack.c.l.b16 %v1031
        %v1167 = vunpack.c.h.b16 %v1031
        %v1168 = vunpack.c.l.b16 %v1032
        %v1169 = vunpack.c.l.b16 %v1033
        %v1170 = vunpack.c.h.b16 %v1033
        %v1171 = vunpack.c.l.b16 %v1034
        %v1172 = vunpack.c.h.b16 %v1034
        %v1173 = vunpack.c.l.b16 %v1035
        %v1174 = vunpack.c.h.b16 %v1035
        %v1175 = vunpack.c.l.b16 %v1036
        %v1176 = vunpack.c.h.b16 %v1036
        %v1177 = vunpack.c.l.b16 %v1037
        %v1178 = vunpack.c.l.b16 %v1038
        %v1179 = vunpack.c.h.b16 %v1038
        %v1180 = vunpack.c.l.b16 %v1039
        %v1181 = vunpack.c.h.b16 %v1039
        %v1182 = vunpack.c.l.b16 %v1040
        %v1183 = vunpack.c.h.b16 %v1040
        %v1184 = vunpack.c.l.b16 %v1041
        %v1185 = vunpack.c.h.b16 %v1041
        %v1186 = vunpack.c.l.b16 %v1042
        %v1187 = vunpack.c.l.b16 %v1043
        %v1188 = vunpack.c.h.b16 %v1043
        %v1189 = vunpack.c.l.b16 %v1044
        %v1190 = vunpack.c.h.b16 %v1044
        %v1191 = vunpack.c.l.b16 %v1045
        %v1192 = vunpack.c.h.b16 %v1045
        %v1193 = vunpack.c.l.b16 %v1046
        %v1194 = vunpack.c.h.b16 %v1046
        %v1195 = vunpack.c.l.b16 %v1047
        %v1196 = vunpack.c.l.b16 %v1048
        %v1197 = vunpack.c.h.b16 %v1048
        %v1198 = vunpack.c.l.b16 %v1049
        %v1199 = vunpack.c.h.b16 %v1049
        %v1200 = vunpack.c.l.b16 %v1050
        %v1201 = vunpack.c.h.b16 %v1050
        %v1202 = vunpack.c.l.b16 %v1051
        %v1203 = vunpack.c.h.b16 %v1051
        %v1204 = vunpack.c.l.b16 %v1052
        %v1205 = vunpack.c.l.b16 %v1053
        %v1206 = vunpack.c.h.b16 %v1053
        %v1207 = vunpack.c.l.b16 %v1054
        %v1208 = vunpack.c.h.b16 %v1054
        %v1209 = vunpack.c.l.b16 %v1055
        %v1210 = vunpack.c.h.b16 %v1055
        %v1211 = vunpack.c.l.b16 %v1056
        %v1212 = vunpack.c.h.b16 %v1056
        %v1213 = vunpack.c.l.b16 %v1057
        %v1214 = vunpack.c.l.b16 %v1058
        %v1215 = vunpack.c.h.b16 %v1058
        %v1216 = vunpack.c.l.b16 %v1059
        %v1217 = vunpack.c.h.b16 %v1059
        %v1218 = vunpack.c.l.b16 %v1060
        %v1219 = vunpack.c.h.b16 %v1060
        %v1220 = vunpack.c.l.b16 %v1061
        %v1221 = vunpack.c.h.b16 %v1061
        %v1222 = vunpack.c.l.b16 %v1062
        %v1223 = vpack.c.b16 %v1160, %v1151
        %v1224 = vpack.c.b16 %v1161, %v1152
        %v1225 = vpack.c.b16 %v1162, %v1153
        %v1226 = vpack.c.b16 %v1163, %v1154
        %v1227 = vpack.c.b16 %v1164, %v1155
        %v1228 = vpack.c.b16 %v1165, %v1156
        %v1229 = vpack.c.b16 %v1166, %v1157
        %v1230 = vpack.c.b16 %v1167, %v1158
        %v1231 = vpack.c.b16 %v1168, %v1159
        %v1232 = vpack.c.b16 %v1178, %v1169
        %v1233 = vpack.c.b16 %v1179, %v1170
        %v1234 = vpack.c.b16 %v1180, %v1171
        %v1235 = vpack.c.b16 %v1181, %v1172
        %v1236 = vpack.c.b16 %v1182, %v1173
        %v1237 = vpack.c.b16 %v1183, %v1174
        %v1238 = vpack.c.b16 %v1184, %v1175
        %v1239 = vpack.c.b16 %v1185, %v1176
        %v1240 = vpack.c.b16 %v1186, %v1177
        %v1241 = vpack.c.b16 %v1196, %v1187
        %v1242 = vpack.c.b16 %v1197, %v1188
        %v1243 = vpack.c.b16 %v1198, %v1189
        %v1244 = vpack.c.b16 %v1199, %v1190
        %v1245 = vpack.c.b16 %v1200, %v1191
        %v1246 = vpack.c.b16 %v1201, %v1192
        %v1247 = vpack.c.b16 %v1202, %v1193
        %v1248 = vpack.c.b16 %v1203, %v1194
        %v1249 = vpack.c.b16 %v1204, %v1195
        %v1250 = vpack.c.b16 %v1214, %v1205
        %v1251 = vpack.c.b16 %v1215, %v1206
        %v1252 = vpack.c.b16 %v1216, %v1207
        %v1253 = vpack.c.b16 %v1217, %v1208
        %v1254 = vpack.c.b16 %v1218, %v1209
        %v1255 = vpack.c.b16 %v1219, %v1210
        %v1256 = vpack.c.b16 %v1220, %v1211
        %v1257 = vpack.c.b16 %v1221, %v1212
        %v1258 = vpack.c.b16 %v1222, %v1213
        %1295 = vmatprep.subr.bf16.mxu0 0
        %1296 = vmatpush1.bf16.msra.mxu0 %v575
        %1297 = vmatprep.subr.bf16.mxu0 0
        %1298 = vmatpush1.bf16.msra.mxu0 %v576
        %1299 = vmatprep.subr.bf16.mxu0 0
        %1300 = vmatpush1.bf16.msra.mxu0 %v577
        %1301 = vmatprep.subr.bf16.mxu0 0
        %1302 = vmatpush1.bf16.msra.mxu0 %v578
        %1303 = vmatprep.subr.bf16.mxu0 0
        %1304 = vmatpush1.bf16.msra.mxu0 %v579
        %1305 = vmatprep.subr.bf16.mxu0 0
        %1306 = vmatpush1.bf16.msra.mxu0 %v580
        %1307 = vmatprep.subr.bf16.mxu0 0
        %1308 = vmatpush1.bf16.msra.mxu0 %v581
        %1309 = vmatprep.subr.bf16.mxu0 0
        %1310 = vmatpush1.bf16.msra.mxu0 %v582
        %1311 = vmatprep.subr.bf16.mxu0 0
        %1312 = vmatpush1.bf16.msra.mxu0 %v664
        %1313 = vmatprep.subr.bf16.mxu0 0
        %1314 = vmatpush1.bf16.msra.mxu0 %v665
        %1315 = vmatprep.subr.bf16.mxu0 0
        %1316 = vmatpush1.bf16.msra.mxu0 %v666
        %1317 = vmatprep.subr.bf16.mxu0 0
        %1318 = vmatpush1.bf16.msra.mxu0 %v667
        %1319 = vmatprep.subr.bf16.mxu0 0
        %1320 = vmatpush1.bf16.msra.mxu0 %v668
        %1321 = vmatprep.subr.bf16.mxu0 0
        %1322 = vmatpush1.bf16.msra.mxu0 %v669
        %1323 = vmatprep.subr.bf16.mxu0 0
        %1324 = vmatpush1.bf16.msra.mxu0 %v670
        %1325 = vmatprep.subr.bf16.mxu0 0
        %1326 = vmatpush1.bf16.msra.mxu0 %v671
        %1327 = vmatprep.mubr.bf16.mxu0 %v1224
        %1328 = vmatmul.mubr.bf16.gmra.mrb[0].mxu0 %v1223
        %v1329 = vpop.f32.mrb[0].mxu0
        %v1330 = vadd.f32 %v1074, %v1329
        %v1331 = vpop.f32.mrb[0].mxu0
        %v1332 = vpop.f32.mrb[0].mxu0
        %v1333 = vadd.f32 %v1079, %v1332
        %v1334 = vpop.f32.mrb[0].mxu0
        %1335 = vmatprep.mubr.bf16.mxu0 %v1233
        %1336 = vmatmul.mubr.bf16.gmra.mrb[0].mxu0 %v1232
        %v1337 = vpop.f32.mrb[0].mxu0
        %v1338 = vadd.f32 %v1084, %v1337
        %v1339 = vpop.f32.mrb[0].mxu0
        %v1340 = vpop.f32.mrb[0].mxu0
        %v1341 = vadd.f32 %v1089, %v1340
        %v1342 = vpop.f32.mrb[0].mxu0
        %1343 = vmatprep.mubr.bf16.mxu0 %v1242
        %1344 = vmatmul.mubr.bf16.gmra.mrb[0].mxu0 %v1241
        %v1345 = vpop.f32.mrb[0].mxu0
        %v1346 = vadd.f32 %v1094, %v1345
        %v1347 = vpop.f32.mrb[0].mxu0
        %v1348 = vpop.f32.mrb[0].mxu0
        %v1349 = vadd.f32 %v1099, %v1348
        %v1350 = vpop.f32.mrb[0].mxu0
        %1351 = vmatprep.mubr.bf16.mxu0 %v1251
        %1352 = vmatmul.mubr.bf16.gmra.mrb[0].mxu0 %v1250
        %v1353 = vpop.f32.mrb[0].mxu0
        %v1354 = vadd.f32 %v1104, %v1353
        %v1355 = vpop.f32.mrb[0].mxu0
        %v1356 = vpop.f32.mrb[0].mxu0
        %v1357 = vadd.f32 %v1109, %v1356
        %v1358 = vpop.f32.mrb[0].mxu0
        %1359 = vdwg.mxu0
        %1360 = vmatprep.subr.bf16.mxu0 0
        %1361 = vmatpush1.bf16.msra.mxu0 %v713
        %1362 = vmatprep.subr.bf16.mxu0 0
        %1363 = vmatpush1.bf16.msra.mxu0 %v714
        %1364 = vmatprep.subr.bf16.mxu0 0
        %1365 = vmatpush1.bf16.msra.mxu0 %v715
        %1366 = vmatprep.subr.bf16.mxu0 0
        %1367 = vmatpush1.bf16.msra.mxu0 %v716
        %1368 = vmatprep.subr.bf16.mxu0 0
        %1369 = vmatpush1.bf16.msra.mxu0 %v717
        %1370 = vmatprep.subr.bf16.mxu0 0
        %1371 = vmatpush1.bf16.msra.mxu0 %v718
        %1372 = vmatprep.subr.bf16.mxu0 0
        %1373 = vmatpush1.bf16.msra.mxu0 %v719
        %1374 = vmatprep.subr.bf16.mxu0 0
        %1375 = vmatpush1.bf16.msra.mxu0 %v720
        %1376 = vmatprep.subr.bf16.mxu0 0
        %1377 = vmatpush1.bf16.msra.mxu0 %v762
        %1378 = vmatprep.subr.bf16.mxu0 0
        %1379 = vmatpush1.bf16.msra.mxu0 %v763
        %1380 = vmatprep.subr.bf16.mxu0 0
        %1381 = vmatpush1.bf16.msra.mxu0 %v764
        %1382 = vmatprep.subr.bf16.mxu0 0
        %1383 = vmatpush1.bf16.msra.mxu0 %v765
        %1384 = vmatprep.subr.bf16.mxu0 0
        %1385 = vmatpush1.bf16.msra.mxu0 %v766
        %1386 = vmatprep.subr.bf16.mxu0 0
        %1387 = vmatpush1.bf16.msra.mxu0 %v767
        %1388 = vmatprep.subr.bf16.mxu0 0
        %1389 = vmatpush1.bf16.msra.mxu0 %v768
        %1390 = vmatprep.subr.bf16.mxu0 0
        %1391 = vmatpush1.bf16.msra.mxu0 %v769
        %1392 = vmatprep.mubr.bf16.mxu0 %v1226
        %1393 = vmatmul.mubr.bf16.gmra.mrb[0].mxu0 %v1225
        %v1394 = vpop.f32.mrb[0].mxu0
        %v1395 = vadd.f32 %v1330, %v1394
        %v1396 = vpop.f32.mrb[0].mxu0
        %v1397 = vpop.f32.mrb[0].mxu0
        %v1398 = vadd.f32 %v1333, %v1397
        %v1399 = vpop.f32.mrb[0].mxu0
        %1400 = vmatprep.mubr.bf16.mxu0 %v1235
        %1401 = vmatmul.mubr.bf16.gmra.mrb[0].mxu0 %v1234
        %v1402 = vpop.f32.mrb[0].mxu0
        %v1403 = vadd.f32 %v1338, %v1402
        %v1404 = vpop.f32.mrb[0].mxu0
        %v1405 = vpop.f32.mrb[0].mxu0
        %v1406 = vadd.f32 %v1341, %v1405
        %v1407 = vpop.f32.mrb[0].mxu0
        %1408 = vmatprep.mubr.bf16.mxu0 %v1244
        %1409 = vmatmul.mubr.bf16.gmra.mrb[0].mxu0 %v1243
        %v1410 = vpop.f32.mrb[0].mxu0
        %v1411 = vadd.f32 %v1346, %v1410
        %v1412 = vpop.f32.mrb[0].mxu0
        %v1413 = vpop.f32.mrb[0].mxu0
        %v1414 = vadd.f32 %v1349, %v1413
        %v1415 = vpop.f32.mrb[0].mxu0
        %1416 = vmatprep.mubr.bf16.mxu0 %v1253
        %1417 = vmatmul.mubr.bf16.gmra.mrb[0].mxu0 %v1252
        %v1418 = vpop.f32.mrb[0].mxu0
        %v1419 = vadd.f32 %v1354, %v1418
        %v1420 = vpop.f32.mrb[0].mxu0
        %v1421 = vpop.f32.mrb[0].mxu0
        %v1422 = vadd.f32 %v1357, %v1421
        %v1423 = vpop.f32.mrb[0].mxu0
        %1424 = vdwg.mxu0
        %1425 = vmatprep.subr.bf16.mxu0 0
        %1426 = vmatpush1.bf16.msra.mxu0 %v811
        %1427 = vmatprep.subr.bf16.mxu0 0
        %1428 = vmatpush1.bf16.msra.mxu0 %v812
        %1429 = vmatprep.subr.bf16.mxu0 0
        %1430 = vmatpush1.bf16.msra.mxu0 %v813
        %1431 = vmatprep.subr.bf16.mxu0 0
        %1432 = vmatpush1.bf16.msra.mxu0 %v814
        %1433 = vmatprep.subr.bf16.mxu0 0
        %1434 = vmatpush1.bf16.msra.mxu0 %v815
        %1435 = vmatprep.subr.bf16.mxu0 0
        %1436 = vmatpush1.bf16.msra.mxu0 %v816
        %1437 = vmatprep.subr.bf16.mxu0 0
        %1438 = vmatpush1.bf16.msra.mxu0 %v817
        %1439 = vmatprep.subr.bf16.mxu0 0
        %1440 = vmatpush1.bf16.msra.mxu0 %v818
        %1441 = vmatprep.subr.bf16.mxu0 0
        %1442 = vmatpush1.bf16.msra.mxu0 %v860
        %1443 = vmatprep.subr.bf16.mxu0 0
        %1444 = vmatpush1.bf16.msra.mxu0 %v861
        %1445 = vmatprep.subr.bf16.mxu0 0
        %1446 = vmatpush1.bf16.msra.mxu0 %v862
        %1447 = vmatprep.subr.bf16.mxu0 0
        %1448 = vmatpush1.bf16.msra.mxu0 %v863
        %1449 = vmatprep.subr.bf16.mxu0 0
        %1450 = vmatpush1.bf16.msra.mxu0 %v864
        %1451 = vmatprep.subr.bf16.mxu0 0
        %1452 = vmatpush1.bf16.msra.mxu0 %v865
        %1453 = vmatprep.subr.bf16.mxu0 0
        %1454 = vmatpush1.bf16.msra.mxu0 %v866
        %1455 = vmatprep.subr.bf16.mxu0 0
        %1456 = vmatpush1.bf16.msra.mxu0 %v867
        %1457 = vmatprep.mubr.bf16.mxu0 %v1228
        %1458 = vmatmul.mubr.bf16.gmra.mrb[0].mxu0 %v1227
        %v1459 = vpop.f32.mrb[0].mxu0
        %v1460 = vadd.f32 %v1395, %v1459
        %v1461 = vpop.f32.mrb[0].mxu0
        %v1462 = vpop.f32.mrb[0].mxu0
        %v1463 = vadd.f32 %v1398, %v1462
        %v1464 = vpop.f32.mrb[0].mxu0
        %1465 = vmatprep.mubr.bf16.mxu0 %v1237
        %1466 = vmatmul.mubr.bf16.gmra.mrb[0].mxu0 %v1236
        %v1467 = vpop.f32.mrb[0].mxu0
        %v1468 = vadd.f32 %v1403, %v1467
        %v1469 = vpop.f32.mrb[0].mxu0
        %v1470 = vpop.f32.mrb[0].mxu0
        %v1471 = vadd.f32 %v1406, %v1470
        %v1472 = vpop.f32.mrb[0].mxu0
        %1473 = vmatprep.mubr.bf16.mxu0 %v1246
        %1474 = vmatmul.mubr.bf16.gmra.mrb[0].mxu0 %v1245
        %v1475 = vpop.f32.mrb[0].mxu0
        %v1476 = vadd.f32 %v1411, %v1475
        %v1477 = vpop.f32.mrb[0].mxu0
        %v1478 = vpop.f32.mrb[0].mxu0
        %v1479 = vadd.f32 %v1414, %v1478
        %v1480 = vpop.f32.mrb[0].mxu0
        %1481 = vmatprep.mubr.bf16.mxu0 %v1255
        %1482 = vmatmul.mubr.bf16.gmra.mrb[0].mxu0 %v1254
        %v1483 = vpop.f32.mrb[0].mxu0
        %v1484 = vadd.f32 %v1419, %v1483
        %v1485 = vpop.f32.mrb[0].mxu0
        %v1486 = vpop.f32.mrb[0].mxu0
        %v1487 = vadd.f32 %v1422, %v1486
        %v1488 = vpop.f32.mrb[0].mxu0
        %1489 = vdwg.mxu0
        %1490 = vmatprep.subr.bf16.mxu0 0
        %1491 = vmatpush1.bf16.msra.mxu0 %v909
        %1492 = vmatprep.subr.bf16.mxu0 0
        %1493 = vmatpush1.bf16.msra.mxu0 %v910
        %1494 = vmatprep.subr.bf16.mxu0 0
        %1495 = vmatpush1.bf16.msra.mxu0 %v911
        %1496 = vmatprep.subr.bf16.mxu0 0
        %1497 = vmatpush1.bf16.msra.mxu0 %v912
        %1498 = vmatprep.subr.bf16.mxu0 0
        %1499 = vmatpush1.bf16.msra.mxu0 %v913
        %1500 = vmatprep.subr.bf16.mxu0 0
        %1501 = vmatpush1.bf16.msra.mxu0 %v914
        %1502 = vmatprep.subr.bf16.mxu0 0
        %1503 = vmatpush1.bf16.msra.mxu0 %v915
        %1504 = vmatprep.subr.bf16.mxu0 0
        %1505 = vmatpush1.bf16.msra.mxu0 %v916
        %1506 = vmatprep.subr.bf16.mxu0 0
        %1507 = vmatpush1.bf16.msra.mxu0 %v958
        %1508 = vmatprep.subr.bf16.mxu0 0
        %1509 = vmatpush1.bf16.msra.mxu0 %v959
        %1510 = vmatprep.subr.bf16.mxu0 0
        %1511 = vmatpush1.bf16.msra.mxu0 %v960
        %1512 = vmatprep.subr.bf16.mxu0 0
        %1513 = vmatpush1.bf16.msra.mxu0 %v961
        %1514 = vmatprep.subr.bf16.mxu0 0
        %1515 = vmatpush1.bf16.msra.mxu0 %v962
        %1516 = vmatprep.subr.bf16.mxu0 0
        %1517 = vmatpush1.bf16.msra.mxu0 %v963
        %1518 = vmatprep.subr.bf16.mxu0 0
        %1519 = vmatpush1.bf16.msra.mxu0 %v964
        %1520 = vmatprep.subr.bf16.mxu0 0
        %1521 = vmatpush1.bf16.msra.mxu0 %v965
        %1522 = vmatprep.mubr.bf16.mxu0 %v1230
        %1523 = vmatmul.mubr.bf16.gmra.mrb[0].mxu0 %v1229
        %v1524 = vpop.f32.mrb[0].mxu0
        %v1525 = vadd.f32 %v1460, %v1524
        %v1526 = vpop.f32.mrb[0].mxu0
        %v1527 = vpop.f32.mrb[0].mxu0
        %v1528 = vadd.f32 %v1463, %v1527
        %v1529 = vpop.f32.mrb[0].mxu0
        %1530 = vmatprep.mubr.bf16.mxu0 %v1239
        %1531 = vmatmul.mubr.bf16.gmra.mrb[0].mxu0 %v1238
        %v1532 = vpop.f32.mrb[0].mxu0
        %v1533 = vadd.f32 %v1468, %v1532
        %v1534 = vpop.f32.mrb[0].mxu0
        %v1535 = vpop.f32.mrb[0].mxu0
        %v1536 = vadd.f32 %v1471, %v1535
        %v1537 = vpop.f32.mrb[0].mxu0
        %1538 = vmatprep.mubr.bf16.mxu0 %v1248
        %1539 = vmatmul.mubr.bf16.gmra.mrb[0].mxu0 %v1247
        %v1540 = vpop.f32.mrb[0].mxu0
        %v1541 = vadd.f32 %v1476, %v1540
        %v1542 = vpop.f32.mrb[0].mxu0
        %v1543 = vpop.f32.mrb[0].mxu0
        %v1544 = vadd.f32 %v1479, %v1543
        %v1545 = vpop.f32.mrb[0].mxu0
        %1546 = vmatprep.mubr.bf16.mxu0 %v1257
        %1547 = vmatmul.mubr.bf16.gmra.mrb[0].mxu0 %v1256
        %v1548 = vpop.f32.mrb[0].mxu0
        %v1549 = vadd.f32 %v1484, %v1548
        %v1550 = vpop.f32.mrb[0].mxu0
        %v1551 = vpop.f32.mrb[0].mxu0
        %v1552 = vadd.f32 %v1487, %v1551
        %v1553 = vpop.f32.mrb[0].mxu0
        %1554 = vdwg.mxu0
        %1555 = vmatprep.subr.bf16.mxu0 0
        %1556 = vmatpush1.bf16.msra.mxu0 %v1007
        %1557 = vmatprep.subr.bf16.mxu0 0
        %1558 = vmatpush1.bf16.msra.mxu0 %v1008
        %1559 = vmatprep.subr.bf16.mxu0 0
        %1560 = vmatpush1.bf16.msra.mxu0 %v1009
        %1561 = vmatprep.subr.bf16.mxu0 0
        %1562 = vmatpush1.bf16.msra.mxu0 %v1010
        %1563 = vmatprep.subr.bf16.mxu0 0
        %1564 = vmatpush1.bf16.msra.mxu0 %v1011
        %1565 = vmatprep.subr.bf16.mxu0 0
        %1566 = vmatpush1.bf16.msra.mxu0 %v1012
        %1567 = vmatprep.subr.bf16.mxu0 0
        %1568 = vmatpush1.bf16.msra.mxu0 %v1013
        %1569 = vmatprep.subr.bf16.mxu0 0
        %1570 = vmatpush1.bf16.msra.mxu0 %v1014
        %1571 = vmatprep.subr.bf16.mxu0 0
        %1572 = vmatpush1.bf16.msra.mxu0 0
        %1573 = vmatprep.subr.bf16.mxu0 0
        %1574 = vmatpush1.bf16.msra.mxu0 0
        %1575 = vmatprep.subr.bf16.mxu0 0
        %1576 = vmatpush1.bf16.msra.mxu0 0
        %1577 = vmatprep.subr.bf16.mxu0 0
        %1578 = vmatpush1.bf16.msra.mxu0 0
        %1579 = vmatprep.subr.bf16.mxu0 0
        %1580 = vmatpush1.bf16.msra.mxu0 0
        %1581 = vmatprep.subr.bf16.mxu0 0
        %1582 = vmatpush1.bf16.msra.mxu0 0
        %1583 = vmatprep.subr.bf16.mxu0 0
        %1584 = vmatpush1.bf16.msra.mxu0 0
        %1585 = vmatprep.subr.bf16.mxu0 0
        %1586 = vmatpush1.bf16.msra.mxu0 0
        %1587 = vmatprep.mubr.bf16.mxu0 0
        %1588 = vmatmul.mubr.bf16.gmra.mrb[0].mxu0 %v1231
        %v1589 = vpop.f32.mrb[0].mxu0
        %v1590 = vadd.f32 %v1525, %v1589
        %v1591 = vpop.f32.mrb[0].mxu0
        %v1592 = vpop.f32.mrb[0].mxu0
        %v1593 = vadd.f32 %v1528, %v1592
        %v1594 = vpop.f32.mrb[0].mxu0
        %1595 = vmatprep.mubr.bf16.mxu0 0
        %1596 = vmatmul.mubr.bf16.gmra.mrb[0].mxu0 %v1240
        %v1597 = vpop.f32.mrb[0].mxu0
        %v1598 = vadd.f32 %v1533, %v1597
        %v1599 = vpop.f32.mrb[0].mxu0
        %v1600 = vpop.f32.mrb[0].mxu0
        %v1601 = vadd.f32 %v1536, %v1600
        %v1602 = vpop.f32.mrb[0].mxu0
        %1603 = vmatprep.mubr.bf16.mxu0 0
        %1604 = vmatmul.mubr.bf16.gmra.mrb[0].mxu0 %v1249
        %v1605 = vpop.f32.mrb[0].mxu0
        %v1606 = vadd.f32 %v1541, %v1605
        %v1607 = vpop.f32.mrb[0].mxu0
        %v1608 = vpop.f32.mrb[0].mxu0
        %v1609 = vadd.f32 %v1544, %v1608
        %v1610 = vpop.f32.mrb[0].mxu0
        %1611 = vmatprep.mubr.bf16.mxu0 0
        %1612 = vmatmul.mubr.bf16.gmra.mrb[0].mxu0 %v1258
        %v1613 = vpop.f32.mrb[0].mxu0
        %v1614 = vadd.f32 %v1549, %v1613
        %v1615 = vpop.f32.mrb[0].mxu0
        %v1616 = vpop.f32.mrb[0].mxu0
        %v1617 = vadd.f32 %v1552, %v1616
        %v1618 = vpop.f32.mrb[0].mxu0
        %1619 = vdwg.mxu0
        %vm1620 = vcmp.ge.f32.partialorder %v1590, 0.0
        %vm1621 = vcmp.ge.f32.partialorder %v1593, 0.0
        %vm1622 = vcmp.ge.f32.partialorder %v1598, 0.0
        %vm1623 = vcmp.ge.f32.partialorder %v1601, 0.0
        %vm1624 = vcmp.ge.f32.partialorder %v1606, 0.0
        %vm1625 = vcmp.ge.f32.partialorder %v1609, 0.0
        %vm1626 = vcmp.ge.f32.partialorder %v1614, 0.0
        %vm1627 = vcmp.ge.f32.partialorder %v1617, 0.0
        %v1628 = vmul.f32 %v1590, 0.2
        %v1629 = vmul.f32 %v1593, 0.2
        %v1630 = vmul.f32 %v1598, 0.2
        %v1631 = vmul.f32 %v1601, 0.2
        %v1632 = vmul.f32 %v1606, 0.2
        %v1633 = vmul.f32 %v1609, 0.2
        %v1634 = vmul.f32 %v1614, 0.2
        %v1635 = vmul.f32 %v1617, 0.2
        %v1636 = vsel %vm1620, %v1590, %v1628
        %v1637 = vsel %vm1621, %v1593, %v1629
        %v1638 = vsel %vm1622, %v1598, %v1630
        %v1639 = vsel %vm1623, %v1601, %v1631
        %v1640 = vsel %vm1624, %v1606, %v1632
        %v1641 = vsel %vm1625, %v1609, %v1633
        %v1642 = vsel %vm1626, %v1614, %v1634
        %v1643 = vsel %vm1627, %v1617, %v1635
        %v1644 = vld [vmem:[%s501] sm:$0xff]
        %v1645 = vld [vmem:[%s501 + $0x8] sm:$0xff]
        %v1646 = vld [vmem:[%s501 + $0x10] sm:$0xff]
        %v1647 = vld [vmem:[%s501 + $0x18] sm:$0xff]
        %v1648 = vld [vmem:[%s501 + $0x20] sm:$0xff]
        %v1649 = vld [vmem:[%s501 + $0x28] sm:$0xff]
        %v1650 = vld [vmem:[%s501 + $0x30] sm:$0xff]
        %v1651 = vld [vmem:[%s501 + $0x38] sm:$0xff]
        %v1652 = vadd.f32 %v1636, %v1644
        %v1653 = vadd.f32 %v1637, %v1645
        %v1654 = vadd.f32 %v1638, %v1646
        %v1655 = vadd.f32 %v1639, %v1647
        %v1656 = vadd.f32 %v1640, %v1648
        %v1657 = vadd.f32 %v1641, %v1649
        %v1658 = vadd.f32 %v1642, %v1650
        %v1659 = vadd.f32 %v1643, %v1651
        %1660 = vst [vmem:[%s509] sm:$0xff] %v1652
        %1661 = vst [vmem:[%s509 + $0x8] sm:$0xff] %v1653
        %1662 = vst [vmem:[%s509 + $0x10] sm:$0xff] %v1654
        %1663 = vst [vmem:[%s509 + $0x18] sm:$0xff] %v1655
        %1664 = vst [vmem:[%s509 + $0x20] sm:$0xff] %v1656
        %1665 = vst [vmem:[%s509 + $0x28] sm:$0xff] %v1657
        %1666 = vst [vmem:[%s509 + $0x30] sm:$0xff] %v1658
        %1667 = vst [vmem:[%s509 + $0x38] sm:$0xff] %v1659
        %p1668 = scmp.lt.s32.totalorder %s20, 1
        %s1669 = scalar_select %p1668, %s20, 1
        %p1670 = scmp.lt.s32.totalorder %s21, 0
        %s1671 = scalar_select %p1670, %s21, 0
        %s1672 = smul.addr %s1669, 8
        %s1673 = sadd.s32 %s1671, %s1672
        %s1674 = smul.addr %s1673, 8
        %s1675 = scalar_lea.vmem %s5, %s1674
        // Predicated region
        $region123: #{resblock_forward.5} parent=113 // pred_check
          %p1676 = pneg %p176
        $region124: #{resblock_forward.5} parent=113 // pred_check_branch
          %1678 = sbr.rel (%p1676) target = $region126
        $region125: #{resblock_forward.5} parent=113 // pred_region
          _
        $region126: #{resblock_forward.5} parent=113 // pred_fallthru
          _
      $region114: #{resblock_forward.5} parent=5 // pred_fallthru
        _
      %p1679 = scmp.le.s32.totalorder 2, %s11
      // Predicated region
      $region127: #{resblock_forward.5} parent=5 // pred_check
        %p1680 = pneg %p1679
      $region128: #{resblock_forward.5} parent=5 // pred_check_branch
        %1682 = sbr.rel (%p1680) target = $region130
      $region129: #{resblock_forward.5} parent=5 // pred_region
        %s1683 = ssub.s32 %s11, 2
        // Predicated region
        $region131: #{resblock_forward.5} parent=129 // pred_check
          %p1684 = pneg %p182
        $region132: #{resblock_forward.5} parent=129 // pred_check_branch
          %1686 = sbr.rel (%p1684) target = $region134
        $region133: #{resblock_forward.5} parent=129 // pred_region
          %p1687 = scmp.lt.s32.totalorder %s22, 1
          %s1688 = scalar_select %p1687, %s22, 1
          %p1689 = scmp.lt.s32.totalorder %s23, 0
          %s1690 = scalar_select %p1689, %s23, 0
          %s1691 = smul.addr %s1688, 8
          %s1692 = sadd.s32 %s1690, %s1691
          %s1693 = smul.addr %s1692, 8
          %s1694 = scalar_lea.vmem %s5, %s1693
        $region134: #{resblock_forward.5} parent=129 // pred_fallthru
          _
      $region130: #{resblock_forward.5} parent=5 // pred_fallthru
        _
    $region6: #{resblock_forward.5} parent=1 // loop_footer
      %s15 = sadd.s32 1, %s11
    $region7: #{resblock_forward.5} parent=1 // loop_footer_branch
      %10 = sbr.rel target = $region3
    $region8: #{resblock_forward.5} parent=1 // loop_exit
      _

</llo_original>
